<compile_context>
chip_gen: v7x
topology: tpu7x:2x2x1
jax: 0.10.0
libtpu: 0.0.40
codegen_flags: <defaults>
</compile_context>

<pallas_src>
import jax
import jax.numpy as jnp
from jax.experimental import pallas as pl
from jax.experimental.pallas import tpu as pltpu

_PATCH = 32   # synthetic CLIP patch size


# -----------------------------------------------------------------------------
# Kernel 1: preprocessing for one batch element
#   out[c] = (Rh @ x[c] @ Rw) * scale[c] + bias[c]
# where scale = 0.5/std and bias = (0.5 - mean)/std fold the (x+1)*0.5 affine and
# the Normalize into the matmul epilogue (bilinear rows sum to 1).
# grid = (B,)
# -----------------------------------------------------------------------------
def _preprocess_kernel(scale_ref, bias_ref, x_ref, rw_ref, rh_ref, o_ref):
    rw = rw_ref[...]                                   # (W, OW)   lane-dense
    rh = rh_ref[...]                                   # (OH, H)
    C = o_ref.shape[1]
    for c in range(C):                                 # C=3, unrolled at trace time
        img = x_ref[0, c, :, :]                        # (H, W)
        t = jnp.dot(img, rw, preferred_element_type=jnp.float32)   # (H, OW)
        r = jnp.dot(rh, t, preferred_element_type=jnp.float32)     # (OH, OW)
        o_ref[0, c, :, :] = r * scale_ref[c] + bias_ref[c]


def preprocess(x, rw, rh, scale, bias):
    B, C, H, W = x.shape
    OW = rw.shape[1]
    OH = rh.shape[0]
    return pl.pallas_call(
        _preprocess_kernel,
        out_shape=jax.ShapeDtypeStruct((B, C, OH, OW), jnp.float32),
        grid=(B,),
        in_specs=[
            pl.BlockSpec(memory_space=pltpu.MemorySpace.SMEM),       # scale (C,)
            pl.BlockSpec(memory_space=pltpu.MemorySpace.SMEM),       # bias  (C,)
            pl.BlockSpec((1, C, H, W), lambda b: (b, 0, 0, 0)),      # x
            pl.BlockSpec((W, OW), lambda b: (0, 0)),                 # Rw
            pl.BlockSpec((OH, H), lambda b: (0, 0)),                 # Rh
        ],
        out_specs=pl.BlockSpec((1, C, OH, OW), lambda b: (b, 0, 0, 0)),
        compiler_params=pltpu.CompilerParams(
            dimension_semantics=("parallel",)),
    )(scale, bias, x, rw, rh)


# -----------------------------------------------------------------------------
# Kernel 2: fused synthetic-CLIP head (single launch, no grid)
#   feats  = patches(bf16) @ w_patch(bf16)           (B*P, D)  f32 accumulate
#   img_f  = l2norm(pool_mat @ feats)                (B, D)    mean-pool as matmul
#   txt_f  = l2norm(y_mean @ (embed @ w_text))       (T, D)    text weights pre-folded
#   out    = -logit_scale * img_f @ txt_f.T          (B, T)
# -----------------------------------------------------------------------------
def _clip_head_kernel(ls_ref, patches_ref, wp_ref, pool_ref, ymean_ref, wt_ref, o_ref):
    feats = jnp.dot(patches_ref[...], wp_ref[...],
                    preferred_element_type=jnp.float32)              # (B*P, D)
    pooled = jnp.dot(pool_ref[...], feats,
                     preferred_element_type=jnp.float32)             # (B, D)
    img_f = pooled * jax.lax.rsqrt(
        jnp.sum(pooled * pooled, axis=-1, keepdims=True) + 1e-8)

    txt = jnp.dot(ymean_ref[...], wt_ref[...],
                  preferred_element_type=jnp.float32)                # (T, D)
    txt_f = txt * jax.lax.rsqrt(
        jnp.sum(txt * txt, axis=-1, keepdims=True) + 1e-8)

    logits = jax.lax.dot_general(                                    # img_f @ txt_f.T
        img_f, txt_f, (((1,), (1,)), ((), ())),
        preferred_element_type=jnp.float32)                          # (B, T)
    o_ref[...] = -ls_ref[0] * logits


def clip_head(patches_flat, w_patch, pool_mat, y_mean, w_txt, logit_scale):
    B = pool_mat.shape[0]
    T = y_mean.shape[0]
    return pl.pallas_call(
        _clip_head_kernel,
        out_shape=jax.ShapeDtypeStruct((B, T), jnp.float32),
        in_specs=[
            pl.BlockSpec(memory_space=pltpu.MemorySpace.SMEM),   # logit_scale (1,)
            pl.BlockSpec(memory_space=pltpu.MemorySpace.VMEM),   # patches (B*P, PD) bf16
            pl.BlockSpec(memory_space=pltpu.MemorySpace.VMEM),   # w_patch (PD, D) bf16
            pl.BlockSpec(memory_space=pltpu.MemorySpace.VMEM),   # pool_mat (B, B*P)
            pl.BlockSpec(memory_space=pltpu.MemorySpace.VMEM),   # y_mean (T, V)
            pl.BlockSpec(memory_space=pltpu.MemorySpace.VMEM),   # w_txt (V, D)
        ],
        out_specs=pl.BlockSpec(memory_space=pltpu.MemorySpace.VMEM),
    )(logit_scale, patches_flat, w_patch, pool_mat, y_mean, w_txt)


# -----------------------------------------------------------------------------
# Glue
# -----------------------------------------------------------------------------
def bilinear_matrix(in_size, out_size):
    """Row-stochastic bilinear interpolation matrix (out_size, in_size),
    half-pixel centers (torchvision / align_corners=False), edge taps clamped."""
    scale = in_size / out_size
    coords = (jnp.arange(out_size, dtype=jnp.float32) + 0.5) * scale - 0.5
    lo = jnp.floor(coords)
    frac = coords - lo
    lo_i = jnp.clip(lo.astype(jnp.int32), 0, in_size - 1)
    hi_i = jnp.clip(lo.astype(jnp.int32) + 1, 0, in_size - 1)   # clamp from UNclipped lo
    m = ((1.0 - frac)[:, None] * jax.nn.one_hot(lo_i, in_size, dtype=jnp.float32)
         + frac[:, None] * jax.nn.one_hot(hi_i, in_size, dtype=jnp.float32))
    return m


def extract_patches(x, patch):
    """NCHW -> (B, n_patches, C*patch*patch)."""
    B, C, H, W = x.shape
    ph, pw = H // patch, W // patch
    x = x.reshape(B, C, ph, patch, pw, patch)
    x = x.transpose(0, 2, 4, 1, 3, 5)               # (B, ph, pw, C, patch, patch)
    return x.reshape(B, ph * pw, C * patch * patch)


@jax.jit
def clip_forward(x, y_onehot, params):
    scale, bias, rw, rh, w_patch, w_txt, pool_mat, logit_scale = params
    pre = preprocess(x, rw, rh, scale, bias)                    # (B, 3, 224, 224)
    patches = extract_patches(pre, _PATCH)                      # (B, 49, 3072)
    B, P, PD = patches.shape
    patches_flat = patches.reshape(B * P, PD).astype(jnp.bfloat16)
    y_mean = jnp.mean(y_onehot, axis=1)                         # (T, V)
    return clip_head(patches_flat, w_patch, pool_mat, y_mean, w_txt, logit_scale)


if __name__ == "__main__":
    B, C, H, W = 2, 3, 16, 16       # image batch (NCHW, values in [-1, 1])
    T, S, V = 2, 8, 64              # text batch, sequence length, vocab
    OH = OW = 224                   # CLIP input resolution
    D = 128                         # synthetic feature dim, padded to one MXU tile

    key = jax.random.PRNGKey(0)
    kx, ky, kw1, kw2, kw3 = jax.random.split(key, 5)

    x = jax.random.uniform(kx, (B, C, H, W), jnp.float32, minval=-1.0, maxval=1.0)
    y_tokens = jax.random.randint(ky, (T, S), 0, V)
    y_onehot = jax.nn.one_hot(y_tokens, V, dtype=jnp.float32)   # (T, S, V)

    # Deterministic synthetic CLIP parameters.
    w_patch = (jax.random.normal(kw1, (C * _PATCH * _PATCH, D), jnp.float32)
               * 0.02).astype(jnp.bfloat16)                     # bf16 MXU operand
    embed = jax.random.normal(kw2, (V, D), jnp.float32) * 0.02
    w_text = jax.random.normal(kw3, (D, D), jnp.float32) * 0.02
    w_txt = embed @ w_text                                      # fold: mean(1hot@E)@W == mean(1hot)@(E@W)
    logit_scale = jnp.array([100.0], jnp.float32)

    mean = jnp.array([0.485, 0.456, 0.406], jnp.float32)
    std = jnp.array([0.229, 0.224, 0.225], jnp.float32)
    scale = 0.5 / std                                           # folds (x+1)*0.5 + Normalize
    bias = (0.5 - mean) / std

    rh = bilinear_matrix(H, OH)                                 # (224, 16)
    rw = bilinear_matrix(W, OW).T                               # (16, 224)

    P = (OH // _PATCH) * (OW // _PATCH)                         # 49
    pool_mat = jnp.repeat(jnp.eye(B, dtype=jnp.float32), P, axis=1) / P   # (B, B*P) mean-pool

    params = (scale, bias, rw, rh, w_patch, w_txt, pool_mat, logit_scale)

    out = clip_forward(x, y_onehot, params)
    jax.block_until_ready(out)
    assert out.shape == (B, T) and out.dtype == jnp.float32
    print("KERNEL_OK")
</pallas_src>

<mosaic_0001>
module attributes {stable_mosaic.version = 11 : i64} {
  func.func @_preprocess_kernel(%arg0: i32, %arg1: memref<3xf32, #tpu.memory_space<smem>>, %arg2: memref<3xf32, #tpu.memory_space<smem>>, %arg3: memref<1x3x16x16xf32, #tpu.memory_space<vmem>>, %arg4: memref<16x224xf32, #tpu.memory_space<vmem>>, %arg5: memref<224x16xf32, #tpu.memory_space<vmem>>, %arg6: memref<1x3x224x224xf32, #tpu.memory_space<vmem>>) attributes {dimension_semantics = [#tpu.dimension_semantics<parallel>], iteration_bounds = array<i64: 2>, scalar_prefetch = 0 : i64, scratch_operands = 0 : i64, tpu.core_type = #tpu.core_type<tc>, window_params = [{transform_indices = @transform_0, window_bounds = array<i64: 3>}, {transform_indices = @transform_1, window_bounds = array<i64: 3>}, {transform_indices = @transform_2, window_bounds = array<i64: 1, 3, 16, 16>}, {pipeline_mode = #tpu.pipeline_mode<synchronous>, transform_indices = @transform_3, window_bounds = array<i64: 16, 224>}, {pipeline_mode = #tpu.pipeline_mode<synchronous>, transform_indices = @transform_4, window_bounds = array<i64: 224, 16>}, {transform_indices = @transform_5, window_bounds = array<i64: 1, 3, 224, 224>}]} {
    %c0 = arith.constant 0 : index
    %c0_0 = arith.constant 0 : index
    %0 = vector.load %arg4[%c0, %c0_0] : memref<16x224xf32, #tpu.memory_space<vmem>>, vector<16x224xf32>
    %c0_1 = arith.constant 0 : index
    %c0_2 = arith.constant 0 : index
    %1 = vector.load %arg5[%c0_1, %c0_2] : memref<224x16xf32, #tpu.memory_space<vmem>>, vector<224x16xf32>
    %c0_3 = arith.constant 0 : index
    %c0_4 = arith.constant 0 : index
    %c0_5 = arith.constant 0 : index
    %c0_6 = arith.constant 0 : index
    %2 = vector.load %arg3[%c0_3, %c0_4, %c0_5, %c0_6] : memref<1x3x16x16xf32, #tpu.memory_space<vmem>>, vector<1x1x16x16xf32>
    %3 = vector.shape_cast %2 : vector<1x1x16x16xf32> to vector<16x16xf32>
    %cst = arith.constant dense<0.000000e+00> : vector<16x224xf32>
    %4 = tpu.matmul %3, %0, %cst {dimension_numbers = #tpu.dot_dimension_numbers<[1], [0], [0], [1], [0, 0, 1, 1], [], []>} : vector<16x16xf32>, vector<16x224xf32>, vector<16x224xf32> -> vector<16x224xf32>
    %cst_7 = arith.constant dense<0.000000e+00> : vector<224x224xf32>
    %5 = tpu.matmul %1, %4, %cst_7 {dimension_numbers = #tpu.dot_dimension_numbers<[1], [0], [0], [1], [0, 0, 1, 1], [], []>} : vector<224x16xf32>, vector<16x224xf32>, vector<224x224xf32> -> vector<224x224xf32>
    %c0_8 = arith.constant 0 : index
    %6 = memref.load %arg1[%c0_8] : memref<3xf32, #tpu.memory_space<smem>>
    %7 = vector.broadcast %6 : f32 to vector<224x224xf32>
    %8 = arith.mulf %5, %7 : vector<224x224xf32>
    %c0_9 = arith.constant 0 : index
    %9 = memref.load %arg2[%c0_9] : memref<3xf32, #tpu.memory_space<smem>>
    %10 = vector.broadcast %9 : f32 to vector<224x224xf32>
    %11 = arith.addf %8, %10 : vector<224x224xf32>
    %c0_10 = arith.constant 0 : index
    %c0_11 = arith.constant 0 : index
    %c0_12 = arith.constant 0 : index
    %c0_13 = arith.constant 0 : index
    %12 = vector.load %arg6[%c0_10, %c0_11, %c0_12, %c0_13] : memref<1x3x224x224xf32, #tpu.memory_space<vmem>>, vector<1x1x224x224xf32>
    %13 = vector.shape_cast %12 : vector<1x1x224x224xf32> to vector<224x224xf32>
    %14 = vector.shape_cast %11 : vector<224x224xf32> to vector<1x1x224x224xf32>
    tpu.vector_store %arg6[%c0_10, %c0_11, %c0_12, %c0_13], %14 {strides = array<i32>} : memref<1x3x224x224xf32, #tpu.memory_space<vmem>>, vector<1x1x224x224xf32>,
    %c0_14 = arith.constant 0 : index
    %c1 = arith.constant 1 : index
    %c0_15 = arith.constant 0 : index
    %c0_16 = arith.constant 0 : index
    %15 = vector.load %arg3[%c0_14, %c1, %c0_15, %c0_16] : memref<1x3x16x16xf32, #tpu.memory_space<vmem>>, vector<1x1x16x16xf32>
    %16 = vector.shape_cast %15 : vector<1x1x16x16xf32> to vector<16x16xf32>
    %cst_17 = arith.constant dense<0.000000e+00> : vector<16x224xf32>
    %17 = tpu.matmul %16, %0, %cst_17 {dimension_numbers = #tpu.dot_dimension_numbers<[1], [0], [0], [1], [0, 0, 1, 1], [], []>} : vector<16x16xf32>, vector<16x224xf32>, vector<16x224xf32> -> vector<16x224xf32>
    %cst_18 = arith.constant dense<0.000000e+00> : vector<224x224xf32>
    %18 = tpu.matmul %1, %17, %cst_18 {dimension_numbers = #tpu.dot_dimension_numbers<[1], [0], [0], [1], [0, 0, 1, 1], [], []>} : vector<224x16xf32>, vector<16x224xf32>, vector<224x224xf32> -> vector<224x224xf32>
    %c1_19 = arith.constant 1 : index
    %19 = memref.load %arg1[%c1_19] : memref<3xf32, #tpu.memory_space<smem>>
    %20 = vector.broadcast %19 : f32 to vector<224x224xf32>
    %21 = arith.mulf %18, %20 : vector<224x224xf32>
    %c1_20 = arith.constant 1 : index
    %22 = memref.load %arg2[%c1_20] : memref<3xf32, #tpu.memory_space<smem>>
    %23 = vector.broadcast %22 : f32 to vector<224x224xf32>
    %24 = arith.addf %21, %23 : vector<224x224xf32>
    %c0_21 = arith.constant 0 : index
    %c1_22 = arith.constant 1 : index
    %c0_23 = arith.constant 0 : index
    %c0_24 = arith.constant 0 : index
    %25 = vector.load %arg6[%c0_21, %c1_22, %c0_23, %c0_24] : memref<1x3x224x224xf32, #tpu.memory_space<vmem>>, vector<1x1x224x224xf32>
    %26 = vector.shape_cast %25 : vector<1x1x224x224xf32> to vector<224x224xf32>
    %27 = vector.shape_cast %24 : vector<224x224xf32> to vector<1x1x224x224xf32>
    tpu.vector_store %arg6[%c0_21, %c1_22, %c0_23, %c0_24], %27 {strides = array<i32>} : memref<1x3x224x224xf32, #tpu.memory_space<vmem>>, vector<1x1x224x224xf32>,
    %c0_25 = arith.constant 0 : index
    %c2 = arith.constant 2 : index
    %c0_26 = arith.constant 0 : index
    %c0_27 = arith.constant 0 : index
    %28 = vector.load %arg3[%c0_25, %c2, %c0_26, %c0_27] : memref<1x3x16x16xf32, #tpu.memory_space<vmem>>, vector<1x1x16x16xf32>
    %29 = vector.shape_cast %28 : vector<1x1x16x16xf32> to vector<16x16xf32>
    %cst_28 = arith.constant dense<0.000000e+00> : vector<16x224xf32>
    %30 = tpu.matmul %29, %0, %cst_28 {dimension_numbers = #tpu.dot_dimension_numbers<[1], [0], [0], [1], [0, 0, 1, 1], [], []>} : vector<16x16xf32>, vector<16x224xf32>, vector<16x224xf32> -> vector<16x224xf32>
    %cst_29 = arith.constant dense<0.000000e+00> : vector<224x224xf32>
    %31 = tpu.matmul %1, %30, %cst_29 {dimension_numbers = #tpu.dot_dimension_numbers<[1], [0], [0], [1], [0, 0, 1, 1], [], []>} : vector<224x16xf32>, vector<16x224xf32>, vector<224x224xf32> -> vector<224x224xf32>
    %c2_30 = arith.constant 2 : index
    %32 = memref.load %arg1[%c2_30] : memref<3xf32, #tpu.memory_space<smem>>
    %33 = vector.broadcast %32 : f32 to vector<224x224xf32>
    %34 = arith.mulf %31, %33 : vector<224x224xf32>
    %c2_31 = arith.constant 2 : index
    %35 = memref.load %arg2[%c2_31] : memref<3xf32, #tpu.memory_space<smem>>
    %36 = vector.broadcast %35 : f32 to vector<224x224xf32>
    %37 = arith.addf %34, %36 : vector<224x224xf32>
    %c0_32 = arith.constant 0 : index
    %c2_33 = arith.constant 2 : index
    %c0_34 = arith.constant 0 : index
    %c0_35 = arith.constant 0 : index
    %38 = vector.load %arg6[%c0_32, %c2_33, %c0_34, %c0_35] : memref<1x3x224x224xf32, #tpu.memory_space<vmem>>, vector<1x1x224x224xf32>
    %39 = vector.shape_cast %38 : vector<1x1x224x224xf32> to vector<224x224xf32>
    %40 = vector.shape_cast %37 : vector<224x224xf32> to vector<1x1x224x224xf32>
    tpu.vector_store %arg6[%c0_32, %c2_33, %c0_34, %c0_35], %40 {strides = array<i32>} : memref<1x3x224x224xf32, #tpu.memory_space<vmem>>, vector<1x1x224x224xf32>,
    return
  }
  func.func @transform_0(%arg0: i32) -> i32 {
    %c0_i32 = arith.constant 0 : i32
    %c0_i32_0 = arith.constant 0 : i32
    return %c0_i32 : i32
  }
  func.func @transform_1(%arg0: i32) -> i32 {
    %c0_i32 = arith.constant 0 : i32
    %c0_i32_0 = arith.constant 0 : i32
    return %c0_i32 : i32
  }
  func.func @transform_2(%arg0: i32) -> (i32, i32, i32, i32) {
    %c0_i32 = arith.constant 0 : i32
    %c0_i32_0 = arith.constant 0 : i32
    %c0_i32_1 = arith.constant 0 : i32
    %c0_i32_2 = arith.constant 0 : i32
    return %arg0, %c0_i32, %c0_i32_0, %c0_i32_1 : i32, i32, i32, i32
  }
  func.func @transform_3(%arg0: i32) -> (i32, i32) {
    %c0_i32 = arith.constant 0 : i32
    %c0_i32_0 = arith.constant 0 : i32
    %c0_i32_1 = arith.constant 0 : i32
    return %c0_i32, %c0_i32_0 : i32, i32
  }
  func.func @transform_4(%arg0: i32) -> (i32, i32) {
    %c0_i32 = arith.constant 0 : i32
    %c0_i32_0 = arith.constant 0 : i32
    %c0_i32_1 = arith.constant 0 : i32
    return %c0_i32, %c0_i32_0 : i32, i32
  }
  func.func @transform_5(%arg0: i32) -> (i32, i32, i32, i32) {
    %c0_i32 = arith.constant 0 : i32
    %c0_i32_0 = arith.constant 0 : i32
    %c0_i32_1 = arith.constant 0 : i32
    %c0_i32_2 = arith.constant 0 : i32
    return %arg0, %c0_i32, %c0_i32_0, %c0_i32_1 : i32, i32, i32, i32
  }
}

module attributes {stable_mosaic.version = 11 : i64} {
  func.func @_clip_head_kernel(%arg0: memref<1xf32, #tpu.memory_space<smem>>, %arg1: memref<98x3072xbf16, #tpu.memory_space<vmem>>, %arg2: memref<3072x128xbf16, #tpu.memory_space<vmem>>, %arg3: memref<2x98xf32, #tpu.memory_space<vmem>>, %arg4: memref<2x64xf32, #tpu.memory_space<vmem>>, %arg5: memref<64x128xf32, #tpu.memory_space<vmem>>, %arg6: memref<2x2xf32, #tpu.memory_space<vmem>>) attributes {dimension_semantics = [], scalar_prefetch = 0 : i64, scratch_operands = 0 : i64, tpu.core_type = #tpu.core_type<tc>} {
    %c0 = arith.constant 0 : index
    %c0_0 = arith.constant 0 : index
    %0 = vector.load %arg1[%c0, %c0_0] : memref<98x3072xbf16, #tpu.memory_space<vmem>>, vector<98x3072xbf16>
    %c0_1 = arith.constant 0 : index
    %c0_2 = arith.constant 0 : index
    %1 = vector.load %arg2[%c0_1, %c0_2] : memref<3072x128xbf16, #tpu.memory_space<vmem>>, vector<3072x128xbf16>
    %cst = arith.constant dense<0.000000e+00> : vector<98x128xf32>
    %2 = tpu.matmul %0, %1, %cst {dimension_numbers = #tpu.dot_dimension_numbers<[1], [0], [0], [1], [0, 0, 1, 1], [], []>} : vector<98x3072xbf16>, vector<3072x128xbf16>, vector<98x128xf32> -> vector<98x128xf32>
    %c0_3 = arith.constant 0 : index
    %c0_4 = arith.constant 0 : index
    %3 = vector.load %arg3[%c0_3, %c0_4] : memref<2x98xf32, #tpu.memory_space<vmem>>, vector<2x98xf32>
    %cst_5 = arith.constant dense<0.000000e+00> : vector<2x128xf32>
    %4 = tpu.matmul %3, %2, %cst_5 {dimension_numbers = #tpu.dot_dimension_numbers<[1], [0], [0], [1], [0, 0, 1, 1], [], []>} : vector<2x98xf32>, vector<98x128xf32>, vector<2x128xf32> -> vector<2x128xf32>
    %5 = arith.mulf %4, %4 : vector<2x128xf32>
    %cst_6 = arith.constant dense<0.000000e+00> : vector<2xf32>
    %6 = vector.multi_reduction <add>, %5, %cst_6 [1] : vector<2x128xf32> to vector<2xf32>
    %7 = vector.shape_cast %6 : vector<2xf32> to vector<2x1xf32>
    %cst_7 = arith.constant 9.99999993E-9 : f32
    %8 = vector.broadcast %cst_7 : f32 to vector<2x1xf32>
    %9 = arith.addf %7, %8 : vector<2x1xf32>
    %10 = math.rsqrt %9 : vector<2x1xf32>
    %11 = vector.broadcast %10 : vector<2x1xf32> to vector<2x128xf32>
    %12 = arith.mulf %4, %11 : vector<2x128xf32>
    %c0_8 = arith.constant 0 : index
    %c0_9 = arith.constant 0 : index
    %13 = vector.load %arg4[%c0_8, %c0_9] : memref<2x64xf32, #tpu.memory_space<vmem>>, vector<2x64xf32>
    %c0_10 = arith.constant 0 : index
    %c0_11 = arith.constant 0 : index
    %14 = vector.load %arg5[%c0_10, %c0_11] : memref<64x128xf32, #tpu.memory_space<vmem>>, vector<64x128xf32>
    %cst_12 = arith.constant dense<0.000000e+00> : vector<2x128xf32>
    %15 = tpu.matmul %13, %14, %cst_12 {dimension_numbers = #tpu.dot_dimension_numbers<[1], [0], [0], [1], [0, 0, 1, 1], [], []>} : vector<2x64xf32>, vector<64x128xf32>, vector<2x128xf32> -> vector<2x128xf32>
    %16 = arith.mulf %15, %15 : vector<2x128xf32>
    %cst_13 = arith.constant dense<0.000000e+00> : vector<2xf32>
    %17 = vector.multi_reduction <add>, %16, %cst_13 [1] : vector<2x128xf32> to vector<2xf32>
    %18 = vector.shape_cast %17 : vector<2xf32> to vector<2x1xf32>
    %cst_14 = arith.constant 9.99999993E-9 : f32
    %19 = vector.broadcast %cst_14 : f32 to vector<2x1xf32>
    %20 = arith.addf %18, %19 : vector<2x1xf32>
    %21 = math.rsqrt %20 : vector<2x1xf32>
    %22 = vector.broadcast %21 : vector<2x1xf32> to vector<2x128xf32>
    %23 = arith.mulf %15, %22 : vector<2x128xf32>
    %cst_15 = arith.constant dense<0.000000e+00> : vector<2x2xf32>
    %24 = tpu.matmul %12, %23, %cst_15 {dimension_numbers = #tpu.dot_dimension_numbers<[1], [1], [0], [0], [0, 0, 1, 0], [], []>} : vector<2x128xf32>, vector<2x128xf32>, vector<2x2xf32> -> vector<2x2xf32>
    %c0_16 = arith.constant 0 : index
    %25 = memref.load %arg0[%c0_16] : memref<1xf32, #tpu.memory_space<smem>>
    %cst_17 = arith.constant 0.000000e+00 : f32
    %26 = arith.subf %cst_17, %25 : f32
    %27 = vector.broadcast %26 : f32 to vector<2x2xf32>
    %28 = arith.mulf %27, %24 : vector<2x2xf32>
    %c0_18 = arith.constant 0 : index
    %c0_19 = arith.constant 0 : index
    %29 = vector.load %arg6[%c0_18, %c0_19] : memref<2x2xf32, #tpu.memory_space<vmem>>, vector<2x2xf32>
    tpu.vector_store %arg6[%c0_18, %c0_19], %28 {strides = array<i32>} : memref<2x2xf32, #tpu.memory_space<vmem>>, vector<2x2xf32>,
    return
  }
}

</mosaic_0001>

<llo_original>
// kernel: clip_forward.2
$region0: #{clip_forward.2}
  #allocation0 [shape = 'u32[]', space=smem, size = 0x4, offset = 0x4, fixed_abs, tag = 'smem constant byte address 0x4 - core index']
  #allocation1 [shape = 'u32[144,128]{1,0:T(1,128)}', space=vmem, size = 0x12000, scoped, tag = 'internal scratch']
  %s0 = inlined_call_operand.hbm [shape: f32[3], index: 0, kind: input, shape index: {}]
  %s1 = inlined_call_operand.hbm [shape: f32[3], index: 1, kind: input, shape index: {}]
  %s2 = inlined_call_operand.hbm [shape: f32[2,3,16,16], index: 2, kind: input, shape index: {}]
  %s3 = inlined_call_operand.hbm [shape: f32[16,224], index: 3, kind: input, shape index: {}]
  %s4 = inlined_call_operand.vmem [shape: f32[224,16], index: 4, kind: input, shape index: {}]
  %s5 = inlined_call_operand.vmem [shape: f32[2,3,224,224], index: 5, kind: output, shape index: {}]
  %s6 = sld [smem:[#allocation0]]
  $region69: #{clip_forward.2} parent=0
    _
  %s8 = ssub.s32 1, %s6
  %s9 = scalar_select 0, %s8, %s6
  $region1: #{clip_forward.2} parent=0
    #allocation2 [shape = 'u8[512]{0}', space=smem, size = 0x200, scoped, tag = 'input window, operand 0, single buffered']
    #allocation3 [shape = 's32[2]{0}', space=sflag, size = 0x8, scoped, tag = 'scoped memory for clip_forward.2']
    #allocation4 [shape = 's32[2]{0}', space=sflag, size = 0x8, scoped, tag = 'scoped memory for clip_forward.2']
    #allocation5 [shape = 'u8[512]{0}', space=smem, size = 0x200, scoped, tag = 'input window, operand 1, single buffered']
    #allocation6 [shape = 's32[1]{0}', space=sflag, size = 0x4, scoped, tag = 'scoped memory for clip_forward.2']
    #allocation7 [shape = 'u8[49152]{0}', space=vmem, size = 0xc000, scoped, tag = 'input window, operand 2']
    #allocation8 [shape = 'u8[16384]{0}', space=vmem, size = 0x4000, scoped, tag = 'input window, operand 3, single buffered']
    #allocation9 [shape = 's32[1]{0}', space=sflag, size = 0x4, scoped, tag = 'scoped memory for clip_forward.2']
    %10 = vsyncpa [#allocation4], 0
    %11 = vsyncpa [#allocation6], 0
    %12 = vsyncpa [#allocation3], 0
    %s13 = scalar_lea.sflag [#allocation3], 1
    %14 = vsyncpa %s13, 0
    %15 = vsyncpa [#allocation9], 0
    loop: start=0, step=1, limit=4
    $region2: #{clip_forward.2} parent=1 // loop_pre_header
      _
    $region3: #{clip_forward.2} parent=1 // loop_header
      %s17 = sphi 0, %s21
      %p18 = scmp.ge.s32.totalorder %s17, 4
      %s25 = sphi 0, %s25
      %s27 = sphi 0, %s25
      %s28 = sphi 0, %s27
      %s42 = sphi 0, %s28
      %s46 = sphi 0, %s46
      %s48 = sphi 0, %s46
      %s49 = sphi 0, %s48
      %s63 = sphi 0, %s49
      %s69 = sphi 0, %s71
      %s72 = sphi 0, %s69
      %s73 = sphi 0, %s72
      %s89 = sphi 0, %s73
      %s93 = sphi 0, %s93
      %s95 = sphi 0, %s93
      %s96 = sphi 0, %s95
      %s110 = sphi 0, %s96
      %s114 = sphi 0, %s114
      %s116 = sphi 0, %s114
      %s117 = sphi 0, %s116
      %s131 = sphi 0, %s117
      %s137 = sphi 0, %s139
      %s140 = sphi 0, %s137
      %s141 = sphi 0, %s140
      %s157 = sphi 0, %s141
    $region4: #{clip_forward.2} parent=1 // loop_header_branch
      %20 = sbr.rel (%p18) target = $region8
    $region5: #{clip_forward.2} parent=1 // loop_body
      %s22 = ssub.s32 %s17, 1
      %s23 = ssub.s32 %s17, 2
      %s24 = sadd.s32 %s17, 1
      %s26 = sadd.s32 %s25, 1
      %p29 = scmp.eq.s32.totalorder %s17, 1
      %p30 = scmp.ne.s32.totalorder %s25, %s27
      %p31 = scmp.eq.s32.totalorder %s17, 0
      %p32 = por %p30, %p31
      %p33 = scmp.ne.s32.totalorder %s25, %s27
      %p34 = scmp.eq.s32.totalorder %s22, 1
      %p35 = por %p33, %p34
      %p36 = scmp.ne.s32.totalorder %s27, %s28
      %p37 = scmp.eq.s32.totalorder %s22, 0
      %p38 = por %p36, %p37
      %p39 = scmp.ne.s32.totalorder %s27, %s28
      %p40 = scmp.eq.s32.totalorder %s23, 1
      %p41 = por %p39, %p40
      %p43 = scmp.ne.s32.totalorder %s28, %s42
      %p44 = scmp.eq.s32.totalorder %s23, 0
      %p45 = por %p43, %p44
      %s47 = sadd.s32 %s46, 1
      %p50 = scmp.eq.s32.totalorder %s17, 1
      %p51 = scmp.ne.s32.totalorder %s46, %s48
      %p52 = scmp.eq.s32.totalorder %s17, 0
      %p53 = por %p51, %p52
      %p54 = scmp.ne.s32.totalorder %s46, %s48
      %p55 = scmp.eq.s32.totalorder %s22, 1
      %p56 = por %p54, %p55
      %p57 = scmp.ne.s32.totalorder %s48, %s49
      %p58 = scmp.eq.s32.totalorder %s22, 0
      %p59 = por %p57, %p58
      %p60 = scmp.ne.s32.totalorder %s48, %s49
      %p61 = scmp.eq.s32.totalorder %s23, 1
      %p62 = por %p60, %p61
      %p64 = scmp.ne.s32.totalorder %s49, %s63
      %p65 = scmp.eq.s32.totalorder %s23, 0
      %p66 = por %p64, %p65
      %s67 = ssub.s32 %s17, %s24
      %p68 = scmp.eq.s32.totalorder %s67, 0
      %s70 = sadd.s32 %s69, 1
      %s71 = scalar_select %p68, %s69, %s70
      %p74 = pneg %p68
      %p75 = scmp.eq.s32.totalorder %s17, 1
      %p76 = por %p74, %p75
      %p77 = scmp.ne.s32.totalorder %s69, %s72
      %p78 = scmp.eq.s32.totalorder %s17, 0
      %p79 = por %p77, %p78
      %p80 = scmp.ne.s32.totalorder %s69, %s72
      %p81 = scmp.eq.s32.totalorder %s22, 1
      %p82 = por %p80, %p81
      %p83 = scmp.ne.s32.totalorder %s72, %s73
      %p84 = scmp.eq.s32.totalorder %s22, 0
      %p85 = por %p83, %p84
      %p86 = scmp.ne.s32.totalorder %s72, %s73
      %p87 = scmp.eq.s32.totalorder %s23, 1
      %p88 = por %p86, %p87
      %p90 = scmp.ne.s32.totalorder %s73, %s89
      %p91 = scmp.eq.s32.totalorder %s23, 0
      %p92 = por %p90, %p91
      %s94 = sadd.s32 %s93, 1
      %p97 = scmp.eq.s32.totalorder %s17, 1
      %p98 = scmp.ne.s32.totalorder %s93, %s95
      %p99 = scmp.eq.s32.totalorder %s17, 0
      %p100 = por %p98, %p99
      %p101 = scmp.ne.s32.totalorder %s93, %s95
      %p102 = scmp.eq.s32.totalorder %s22, 1
      %p103 = por %p101, %p102
      %p104 = scmp.ne.s32.totalorder %s95, %s96
      %p105 = scmp.eq.s32.totalorder %s22, 0
      %p106 = por %p104, %p105
      %p107 = scmp.ne.s32.totalorder %s95, %s96
      %p108 = scmp.eq.s32.totalorder %s23, 1
      %p109 = por %p107, %p108
      %p111 = scmp.ne.s32.totalorder %s96, %s110
      %p112 = scmp.eq.s32.totalorder %s23, 0
      %p113 = por %p111, %p112
      %s115 = sadd.s32 %s114, 1
      %p118 = scmp.eq.s32.totalorder %s17, 1
      %p119 = scmp.ne.s32.totalorder %s114, %s116
      %p120 = scmp.eq.s32.totalorder %s17, 0
      %p121 = por %p119, %p120
      %p122 = scmp.ne.s32.totalorder %s114, %s116
      %p123 = scmp.eq.s32.totalorder %s22, 1
      %p124 = por %p122, %p123
      %p125 = scmp.ne.s32.totalorder %s116, %s117
      %p126 = scmp.eq.s32.totalorder %s22, 0
      %p127 = por %p125, %p126
      %p128 = scmp.ne.s32.totalorder %s116, %s117
      %p129 = scmp.eq.s32.totalorder %s23, 1
      %p130 = por %p128, %p129
      %p132 = scmp.ne.s32.totalorder %s117, %s131
      %p133 = scmp.eq.s32.totalorder %s23, 0
      %p134 = por %p132, %p133
      %s135 = ssub.s32 %s17, %s24
      %p136 = scmp.eq.s32.totalorder %s135, 0
      %s138 = sadd.s32 %s137, 1
      %s139 = scalar_select %p136, %s137, %s138
      %p142 = pneg %p136
      %p143 = scmp.eq.s32.totalorder %s17, 1
      %p144 = por %p142, %p143
      %p145 = scmp.ne.s32.totalorder %s137, %s140
      %p146 = scmp.eq.s32.totalorder %s17, 0
      %p147 = por %p145, %p146
      %p148 = scmp.ne.s32.totalorder %s137, %s140
      %p149 = scmp.eq.s32.totalorder %s22, 1
      %p150 = por %p148, %p149
      %p151 = scmp.ne.s32.totalorder %s140, %s141
      %p152 = scmp.eq.s32.totalorder %s22, 0
      %p153 = por %p151, %p152
      %p154 = scmp.ne.s32.totalorder %s140, %s141
      %p155 = scmp.eq.s32.totalorder %s23, 1
      %p156 = por %p154, %p155
      %p158 = scmp.ne.s32.totalorder %s141, %s157
      %p159 = scmp.eq.s32.totalorder %s23, 0
      %p160 = por %p158, %p159
      %p161 = scmp.le.s32.totalorder 1, %s17
      %p162 = scmp.lt.s32.totalorder %s17, 3
      %p163 = pnand %p161, %p162
      %p164 = pneg %p163
      // Predicated region
      $region9: #{clip_forward.2} parent=5 // pred_check
        _
      $region10: #{clip_forward.2} parent=5 // pred_check_branch
        %166 = sbr.rel (%p163) target = $region12
      $region11: #{clip_forward.2} parent=5 // pred_region
        %s167 = ssub.s32 %s17, 1
        // Predicated region
        $region13: #{clip_forward.2} parent=11 // pred_check
          %p168 = pneg %p38
        $region14: #{clip_forward.2} parent=11 // pred_check_branch
          %170 = sbr.rel (%p168) target = $region16
        $region15: #{clip_forward.2} parent=11 // pred_region
          %s172 = ssub.s32 16, 16
          %173 = vsyncadd [#allocation4], %s172
          %176 = dma.hbm_to_smem %s0, 16, [#allocation2], [#allocation4]
        $region16: #{clip_forward.2} parent=11 // pred_fallthru
          _
        // Predicated region
        $region17: #{clip_forward.2} parent=11 // pred_check
          %p177 = pneg %p59
        $region18: #{clip_forward.2} parent=11 // pred_check_branch
          %179 = sbr.rel (%p177) target = $region20
        $region19: #{clip_forward.2} parent=11 // pred_region
          %s181 = ssub.s32 16, 16
          %182 = vsyncadd [#allocation6], %s181
          %185 = dma.hbm_to_smem %s1, 16, [#allocation5], [#allocation6]
        $region20: #{clip_forward.2} parent=11 // pred_fallthru
          _
        // Predicated region
        $region21: #{clip_forward.2} parent=11 // pred_check
          %p186 = pneg %p106
        $region22: #{clip_forward.2} parent=11 // pred_check_branch
          %188 = sbr.rel (%p186) target = $region24
        $region23: #{clip_forward.2} parent=11 // pred_region
          %s190 = ssub.s32 512, 512
          %191 = vsyncadd [#allocation9], %s190
          %s192 = sshll.u32 [#allocation8], 4
          %s193 = int_to_ptr.vmem [resolvable:$true] %s192
          %198 = dma.hbm_to_vmem [thread:$0]  %s3, 512, %s193, [#allocation9], 256, 256, 16
        $region24: #{clip_forward.2} parent=11 // pred_fallthru
          _
        // Predicated region
        $region25: #{clip_forward.2} parent=11 // pred_check
          %p199 = pneg %p127
        $region26: #{clip_forward.2} parent=11 // pred_check_branch
          %201 = sbr.rel (%p199) target = $region28
        $region27: #{clip_forward.2} parent=11 // pred_region
          _
        $region28: #{clip_forward.2} parent=11 // pred_fallthru
          _
      $region12: #{clip_forward.2} parent=5 // pred_fallthru
        _
      %p202 = scmp.lt.s32.totalorder %s17, 2
      // Predicated region
      $region29: #{clip_forward.2} parent=5 // pred_check
        %p203 = pneg %p202
      $region30: #{clip_forward.2} parent=5 // pred_check_branch
        %205 = sbr.rel (%p203) target = $region32
      $region31: #{clip_forward.2} parent=5 // pred_region
        // Predicated region
        $region33: #{clip_forward.2} parent=31 // pred_check
          %p206 = pneg %p79
        $region34: #{clip_forward.2} parent=31 // pred_check_branch
          %208 = sbr.rel (%p206) target = $region36
        $region35: #{clip_forward.2} parent=31 // pred_region
          %s209 = sand.u32 %s69, 1
          %s210 = scalar_lea.sflag [#allocation3], %s209
          %s211 = sand.u32 %s69, 1
          %s212 = smul.addr %s211, 48
          %s213 = scalar_lea.vmem [#allocation7], %s212
          %s215 = ssub.s32 768, 768
          %216 = vsyncadd %s210, %s215
          %s217 = smul.addr %s17, 6
          %s218 = smul.addr %s217, 128
          %s219 = scalar_lea.hbm %s2, %s218
          %s220 = sshll.u32 %s213, 4
          %s221 = int_to_ptr.vmem [resolvable:$true] %s220
          %226 = dma.hbm_to_vmem [thread:$0]  %s219, 768, %s221, %s210, 128, 128, 8
        $region36: #{clip_forward.2} parent=31 // pred_fallthru
          _
      $region32: #{clip_forward.2} parent=5 // pred_fallthru
        _
      %p227 = scmp.le.s32.totalorder 1, %s17
      %p228 = scmp.lt.s32.totalorder %s17, 3
      %p229 = pnand %p227, %p228
      %p230 = pneg %p229
      // Predicated region
      $region37: #{clip_forward.2} parent=5 // pred_check
        _
      $region38: #{clip_forward.2} parent=5 // pred_check_branch
        %232 = sbr.rel (%p229) target = $region40
      $region39: #{clip_forward.2} parent=5 // pred_region
        %s233 = ssub.s32 %s17, 1
        // Predicated region
        $region41: #{clip_forward.2} parent=39 // pred_check
          %p234 = pneg %p38
        $region42: #{clip_forward.2} parent=39 // pred_check_branch
          %236 = sbr.rel (%p234) target = $region44
        $region43: #{clip_forward.2} parent=39 // pred_region
          %237 = dma.done [#allocation4], 16
        $region44: #{clip_forward.2} parent=39 // pred_fallthru
          _
        // Predicated region
        $region45: #{clip_forward.2} parent=39 // pred_check
          %p238 = pneg %p59
        $region46: #{clip_forward.2} parent=39 // pred_check_branch
          %240 = sbr.rel (%p238) target = $region48
        $region47: #{clip_forward.2} parent=39 // pred_region
          %241 = dma.done [#allocation6], 16
        $region48: #{clip_forward.2} parent=39 // pred_fallthru
          _
        %s242 = sand.u32 %s72, 1
        %s243 = scalar_lea.sflag [#allocation3], %s242
        %s244 = sand.u32 %s72, 1
        %s245 = smul.addr %s244, 48
        %s246 = scalar_lea.vmem [#allocation7], %s245
        // Predicated region
        $region49: #{clip_forward.2} parent=39 // pred_check
          %p247 = pneg %p85
        $region50: #{clip_forward.2} parent=39 // pred_check_branch
          %249 = sbr.rel (%p247) target = $region52
        $region51: #{clip_forward.2} parent=39 // pred_region
          %250 = dma.done %s243, 768
        $region52: #{clip_forward.2} parent=39 // pred_fallthru
          _
        // Predicated region
        $region53: #{clip_forward.2} parent=39 // pred_check
          %p251 = pneg %p106
        $region54: #{clip_forward.2} parent=39 // pred_check_branch
          %253 = sbr.rel (%p251) target = $region56
        $region55: #{clip_forward.2} parent=39 // pred_region
          %254 = dma.done [#allocation9], 512
        $region56: #{clip_forward.2} parent=39 // pred_fallthru
          _
        %255 = sfence
        %p256 = pneg %p38
        %p257 = pneg %p35
        %p258 = pneg %p59
        %p259 = pneg %p56
        %s260 = sand.u32 %s72, 1
        %s261 = scalar_lea.sflag [#allocation3], %s260
        %s262 = sand.u32 %s72, 1
        %s263 = smul.addr %s262, 48
        %s264 = scalar_lea.vmem [#allocation7], %s263
        %p265 = pneg %p85
        %p266 = pneg %p82
        %p267 = pneg %p106
        %p268 = pneg %p103
        %p269 = pneg %p127
        %p270 = pneg %p124
        %p271 = pneg %p153
        %p272 = pneg %p150
        %p273 = scmp.lt.s32.totalorder %s22, 1
        %s274 = scalar_select %p273, %s22, 1
        %s275 = smul.addr %s274, 168
        %s276 = smul.addr %s275, 8
        %s277 = scalar_lea.vmem %s5, %s276
        %p278 = scmp.lt.s32.totalorder %s22, 1
        %s279 = scalar_select %p278, %s22, 1
        %s280 = smul.addr %s279, 168
        %s281 = smul.addr %s280, 8
        %s282 = scalar_lea.vmem %s5, %s281
        %v283 = vld [vmem:[#allocation8] sm:$0xff]
        %v284 = vld [vmem:[#allocation8 + $0x8] sm:$0xff]
        %v285 = vld [vmem:[#allocation8 + $0x10] sm:$0xff]
        %v286 = vld [vmem:[#allocation8 + $0x18] sm:$0xff]
        %v287 = vld [vmem:[%s4] sm:$0xff]
        %v288 = vld [vmem:[%s4 + $0x8] sm:$0xff]
        %v289 = vld [vmem:[%s4 + $0x10] sm:$0xff]
        %v290 = vld [vmem:[%s4 + $0x18] sm:$0xff]
        %v291 = vld [vmem:[%s4 + $0x20] sm:$0xff]
        %v292 = vld [vmem:[%s4 + $0x28] sm:$0xff]
        %v293 = vld [vmem:[%s4 + $0x30] sm:$0xff]
        %v294 = vld [vmem:[%s4 + $0x38] sm:$0xff]
        %v295 = vld [vmem:[%s4 + $0x40] sm:$0xff]
        %v296 = vld [vmem:[%s4 + $0x48] sm:$0xff]
        %v297 = vld [vmem:[%s4 + $0x50] sm:$0xff]
        %v298 = vld [vmem:[%s4 + $0x58] sm:$0xff]
        %v299 = vld [vmem:[%s4 + $0x60] sm:$0xff]
        %v300 = vld [vmem:[%s4 + $0x68] sm:$0xff]
        %v301 = vld [vmem:[%s4 + $0x70] sm:$0xff]
        %v302 = vld [vmem:[%s4 + $0x78] sm:$0xff]
        %v303 = vld [vmem:[%s4 + $0x80] sm:$0xff]
        %v304 = vld [vmem:[%s4 + $0x88] sm:$0xff]
        %v305 = vld [vmem:[%s4 + $0x90] sm:$0xff]
        %v306 = vld [vmem:[%s4 + $0x98] sm:$0xff]
        %v307 = vld [vmem:[%s4 + $0xa0] sm:$0xff]
        %v308 = vld [vmem:[%s4 + $0xa8] sm:$0xff]
        %v309 = vld [vmem:[%s4 + $0xb0] sm:$0xff]
        %v310 = vld [vmem:[%s4 + $0xb8] sm:$0xff]
        %v311 = vld [vmem:[%s4 + $0xc0] sm:$0xff]
        %v312 = vld [vmem:[%s4 + $0xc8] sm:$0xff]
        %v313 = vld [vmem:[%s4 + $0xd0] sm:$0xff]
        %v314 = vld [vmem:[%s4 + $0xd8] sm:$0xff]
        %v315 = vld [vmem:[%s246] sm:$0xff]
        %v316 = vld [vmem:[%s246 + $0x8] sm:$0xff]
        %vm317 = vcmask 130048
        %v319 = vsel %vm317, %v315, 0
        %v322 = vsel %vm317, %v316, 0
        %324 = vmatprep.subr.mxu0 %v284
        %325 = vmatpush1.msra.mxu0 %v283
        %326 = vmatprep.subr.mxu0 %v286
        %327 = vmatpush1.msra.mxu0 %v285
        %328 = vmatprep.subr.mxu0 0.0
        %329 = vmatpush1.msra.mxu0 0.0
        %330 = vmatprep.subr.mxu0 0.0
        %331 = vmatpush1.msra.mxu0 0.0
        %332 = vmatprep.subr.mxu0 0.0
        %333 = vmatpush1.msra.mxu0 0.0
        %334 = vmatprep.subr.mxu0 0.0
        %335 = vmatpush1.msra.mxu0 0.0
        %336 = vmatprep.subr.mxu0 0.0
        %337 = vmatpush1.msra.mxu0 0.0
        %338 = vmatprep.subr.mxu0 0.0
        %339 = vmatpush1.msra.mxu0 0.0
        %340 = vmatprep.subr.mxu0 0.0
        %341 = vmatpush1.msra.mxu0 0.0
        %342 = vmatprep.subr.mxu0 0.0
        %343 = vmatpush1.msra.mxu0 0.0
        %344 = vmatprep.subr.mxu0 0.0
        %345 = vmatpush1.msra.mxu0 0.0
        %346 = vmatprep.subr.mxu0 0.0
        %347 = vmatpush1.msra.mxu0 0.0
        %348 = vmatprep.subr.mxu0 0.0
        %349 = vmatpush1.msra.mxu0 0.0
        %350 = vmatprep.subr.mxu0 0.0
        %351 = vmatpush1.msra.mxu0 0.0
        %352 = vmatprep.subr.mxu0 0.0
        %353 = vmatpush1.msra.mxu0 0.0
        %354 = vmatprep.subr.mxu0 0.0
        %355 = vmatpush1.msra.mxu0 0.0
        %356 = vmatprep.subr.mxu0 0.0
        %357 = vmatpush1.msra.mxu0 0.0
        %358 = vmatprep.subr.mxu0 0.0
        %359 = vmatpush1.msra.mxu0 0.0
        %360 = vmatprep.subr.mxu0 0.0
        %361 = vmatpush1.msra.mxu0 0.0
        %362 = vmatprep.subr.mxu0 0.0
        %363 = vmatpush1.msra.mxu0 0.0
        %364 = vmatprep.subr.mxu0 0.0
        %365 = vmatpush1.msra.mxu0 0.0
        %366 = vmatprep.subr.mxu0 0.0
        %367 = vmatpush1.msra.mxu0 0.0
        %368 = vmatprep.subr.mxu0 0.0
        %369 = vmatpush1.msra.mxu0 0.0
        %370 = vmatprep.subr.mxu0 0.0
        %371 = vmatpush1.msra.mxu0 0.0
        %372 = vmatprep.subr.mxu0 0.0
        %373 = vmatpush1.msra.mxu0 0.0
        %374 = vmatprep.subr.mxu0 0.0
        %375 = vmatpush1.msra.mxu0 0.0
        %376 = vmatprep.subr.mxu0 0.0
        %377 = vmatpush1.msra.mxu0 0.0
        %378 = vmatprep.subr.mxu0 0.0
        %379 = vmatpush1.msra.mxu0 0.0
        %380 = vmatprep.subr.mxu0 0.0
        %381 = vmatpush1.msra.mxu0 0.0
        %382 = vmatprep.subr.mxu0 0.0
        %383 = vmatpush1.msra.mxu0 0.0
        %384 = vmatprep.subr.mxu0 0.0
        %385 = vmatpush1.msra.mxu0 0.0
        %386 = vmatprep.subr.mxu0 0.0
        %387 = vmatpush1.msra.mxu0 0.0
        %388 = vmatprep.mubr.f32.mxu0 0.0
        %389 = vmatmul.mubr.f32.gmra.mrb[0].mxu0 %v319
        %v390 = vpop.f32.mrb[0].mxu0
        %v391 = vadd.f32 0.0, %v390
        %v392 = vpop.f32.mrb[0].mxu0
        %v393 = vadd.f32 0.0, %v392
        %394 = vmatprep.mubr.f32.mxu0 0.0
        %395 = vmatmul.mubr.f32.gmra.mrb[0].mxu0 %v322
        %v396 = vpop.f32.mrb[0].mxu0
        %v397 = vadd.f32 0.0, %v396
        %v398 = vpop.f32.mrb[0].mxu0
        %v399 = vadd.f32 0.0, %v398
        %400 = vdwg.mxu0
        %v402 = vsel %vm317, %v287, 0
        %v405 = vsel %vm317, %v288, 0
        %v408 = vsel %vm317, %v289, 0
        %v411 = vsel %vm317, %v290, 0
        %v414 = vsel %vm317, %v291, 0
        %v417 = vsel %vm317, %v292, 0
        %v420 = vsel %vm317, %v293, 0
        %v423 = vsel %vm317, %v294, 0
        %v426 = vsel %vm317, %v295, 0
        %v429 = vsel %vm317, %v296, 0
        %v432 = vsel %vm317, %v297, 0
        %v435 = vsel %vm317, %v298, 0
        %v438 = vsel %vm317, %v299, 0
        %v441 = vsel %vm317, %v300, 0
        %v444 = vsel %vm317, %v301, 0
        %v447 = vsel %vm317, %v302, 0
        %v450 = vsel %vm317, %v303, 0
        %v453 = vsel %vm317, %v304, 0
        %v456 = vsel %vm317, %v305, 0
        %v459 = vsel %vm317, %v306, 0
        %v462 = vsel %vm317, %v307, 0
        %v465 = vsel %vm317, %v308, 0
        %v468 = vsel %vm317, %v309, 0
        %v471 = vsel %vm317, %v310, 0
        %v474 = vsel %vm317, %v311, 0
        %v477 = vsel %vm317, %v312, 0
        %v480 = vsel %vm317, %v313, 0
        %v483 = vsel %vm317, %v314, 0
        %485 = vmatprep.subr.mxu0 %v393
        %486 = vmatpush1.msra.mxu0 %v391
        %487 = vmatprep.subr.mxu0 %v399
        %488 = vmatpush1.msra.mxu0 %v397
        %489 = vmatprep.subr.mxu0 0.0
        %490 = vmatpush1.msra.mxu0 0.0
        %491 = vmatprep.subr.mxu0 0.0
        %492 = vmatpush1.msra.mxu0 0.0
        %493 = vmatprep.subr.mxu0 0.0
        %494 = vmatpush1.msra.mxu0 0.0
        %495 = vmatprep.subr.mxu0 0.0
        %496 = vmatpush1.msra.mxu0 0.0
        %497 = vmatprep.subr.mxu0 0.0
        %498 = vmatpush1.msra.mxu0 0.0
        %499 = vmatprep.subr.mxu0 0.0
        %500 = vmatpush1.msra.mxu0 0.0
        %501 = vmatprep.subr.mxu0 0.0
        %502 = vmatpush1.msra.mxu0 0.0
        %503 = vmatprep.subr.mxu0 0.0
        %504 = vmatpush1.msra.mxu0 0.0
        %505 = vmatprep.subr.mxu0 0.0
        %506 = vmatpush1.msra.mxu0 0.0
        %507 = vmatprep.subr.mxu0 0.0
        %508 = vmatpush1.msra.mxu0 0.0
        %509 = vmatprep.subr.mxu0 0.0
        %510 = vmatpush1.msra.mxu0 0.0
        %511 = vmatprep.subr.mxu0 0.0
        %512 = vmatpush1.msra.mxu0 0.0
        %513 = vmatprep.subr.mxu0 0.0
        %514 = vmatpush1.msra.mxu0 0.0
        %515 = vmatprep.subr.mxu0 0.0
        %516 = vmatpush1.msra.mxu0 0.0
        %517 = vmatprep.subr.mxu0 0.0
        %518 = vmatpush1.msra.mxu0 0.0
        %519 = vmatprep.subr.mxu0 0.0
        %520 = vmatpush1.msra.mxu0 0.0
        %521 = vmatprep.subr.mxu0 0.0
        %522 = vmatpush1.msra.mxu0 0.0
        %523 = vmatprep.subr.mxu0 0.0
        %524 = vmatpush1.msra.mxu0 0.0
        %525 = vmatprep.subr.mxu0 0.0
        %526 = vmatpush1.msra.mxu0 0.0
        %527 = vmatprep.subr.mxu0 0.0
        %528 = vmatpush1.msra.mxu0 0.0
        %529 = vmatprep.subr.mxu0 0.0
        %530 = vmatpush1.msra.mxu0 0.0
        %531 = vmatprep.subr.mxu0 0.0
        %532 = vmatpush1.msra.mxu0 0.0
        %533 = vmatprep.subr.mxu0 0.0
        %534 = vmatpush1.msra.mxu0 0.0
        %535 = vmatprep.subr.mxu0 0.0
        %536 = vmatpush1.msra.mxu0 0.0
        %537 = vmatprep.subr.mxu0 0.0
        %538 = vmatpush1.msra.mxu0 0.0
        %539 = vmatprep.subr.mxu0 0.0
        %540 = vmatpush1.msra.mxu0 0.0
        %541 = vmatprep.subr.mxu0 0.0
        %542 = vmatpush1.msra.mxu0 0.0
        %543 = vmatprep.subr.mxu0 0.0
        %544 = vmatpush1.msra.mxu0 0.0
        %545 = vmatprep.subr.mxu0 0.0
        %546 = vmatpush1.msra.mxu0 0.0
        %547 = vmatprep.subr.mxu0 0.0
        %548 = vmatpush1.msra.mxu0 0.0
        %549 = vmatprep.mubr.f32.mxu0 0.0
        %550 = vmatmul.mubr.f32.gmra.mrb[0].mxu0 %v402
        %v551 = vpop.f32.mrb[0].mxu0
        %v552 = vadd.f32 0.0, %v551
        %v553 = vpop.f32.mrb[0].mxu0
        %v554 = vadd.f32 0.0, %v553
        %555 = vmatprep.mubr.f32.mxu0 0.0
        %556 = vmatmul.mubr.f32.gmra.mrb[0].mxu0 %v405
        %v557 = vpop.f32.mrb[0].mxu0
        %v558 = vadd.f32 0.0, %v557
        %v559 = vpop.f32.mrb[0].mxu0
        %v560 = vadd.f32 0.0, %v559
        %561 = vmatprep.mubr.f32.mxu0 0.0
        %562 = vmatmul.mubr.f32.gmra.mrb[0].mxu0 %v408
        %v563 = vpop.f32.mrb[0].mxu0
        %v564 = vadd.f32 0.0, %v563
        %v565 = vpop.f32.mrb[0].mxu0
        %v566 = vadd.f32 0.0, %v565
        %567 = vmatprep.mubr.f32.mxu0 0.0
        %568 = vmatmul.mubr.f32.gmra.mrb[0].mxu0 %v411
        %v569 = vpop.f32.mrb[0].mxu0
        %v570 = vadd.f32 0.0, %v569
        %v571 = vpop.f32.mrb[0].mxu0
        %v572 = vadd.f32 0.0, %v571
        %573 = vmatprep.mubr.f32.mxu0 0.0
        %574 = vmatmul.mubr.f32.gmra.mrb[0].mxu0 %v414
        %v575 = vpop.f32.mrb[0].mxu0
        %v576 = vadd.f32 0.0, %v575
        %v577 = vpop.f32.mrb[0].mxu0
        %v578 = vadd.f32 0.0, %v577
        %579 = vmatprep.mubr.f32.mxu0 0.0
        %580 = vmatmul.mubr.f32.gmra.mrb[0].mxu0 %v417
        %v581 = vpop.f32.mrb[0].mxu0
        %v582 = vadd.f32 0.0, %v581
        %v583 = vpop.f32.mrb[0].mxu0
        %v584 = vadd.f32 0.0, %v583
        %585 = vmatprep.mubr.f32.mxu0 0.0
        %586 = vmatmul.mubr.f32.gmra.mrb[0].mxu0 %v420
        %v587 = vpop.f32.mrb[0].mxu0
        %v588 = vadd.f32 0.0, %v587
        %v589 = vpop.f32.mrb[0].mxu0
        %v590 = vadd.f32 0.0, %v589
        %591 = vmatprep.mubr.f32.mxu0 0.0
        %592 = vmatmul.mubr.f32.gmra.mrb[0].mxu0 %v423
        %v593 = vpop.f32.mrb[0].mxu0
        %v594 = vadd.f32 0.0, %v593
        %v595 = vpop.f32.mrb[0].mxu0
        %v596 = vadd.f32 0.0, %v595
        %597 = vmatprep.mubr.f32.mxu0 0.0
        %598 = vmatmul.mubr.f32.gmra.mrb[0].mxu0 %v426
        %v599 = vpop.f32.mrb[0].mxu0
        %v600 = vadd.f32 0.0, %v599
        %v601 = vpop.f32.mrb[0].mxu0
        %v602 = vadd.f32 0.0, %v601
        %603 = vmatprep.mubr.f32.mxu0 0.0
        %604 = vmatmul.mubr.f32.gmra.mrb[0].mxu0 %v429
        %v605 = vpop.f32.mrb[0].mxu0
        %v606 = vadd.f32 0.0, %v605
        %v607 = vpop.f32.mrb[0].mxu0
        %v608 = vadd.f32 0.0, %v607
        %609 = vmatprep.mubr.f32.mxu0 0.0
        %610 = vmatmul.mubr.f32.gmra.mrb[0].mxu0 %v432
        %v611 = vpop.f32.mrb[0].mxu0
        %v612 = vadd.f32 0.0, %v611
        %v613 = vpop.f32.mrb[0].mxu0
        %v614 = vadd.f32 0.0, %v613
        %615 = vmatprep.mubr.f32.mxu0 0.0
        %616 = vmatmul.mubr.f32.gmra.mrb[0].mxu0 %v435
        %v617 = vpop.f32.mrb[0].mxu0
        %v618 = vadd.f32 0.0, %v617
        %v619 = vpop.f32.mrb[0].mxu0
        %v620 = vadd.f32 0.0, %v619
        %621 = vmatprep.mubr.f32.mxu0 0.0
        %622 = vmatmul.mubr.f32.gmra.mrb[0].mxu0 %v438
        %v623 = vpop.f32.mrb[0].mxu0
        %v624 = vadd.f32 0.0, %v623
        %v625 = vpop.f32.mrb[0].mxu0
        %v626 = vadd.f32 0.0, %v625
        %627 = vmatprep.mubr.f32.mxu0 0.0
        %628 = vmatmul.mubr.f32.gmra.mrb[0].mxu0 %v441
        %v629 = vpop.f32.mrb[0].mxu0
        %v630 = vadd.f32 0.0, %v629
        %v631 = vpop.f32.mrb[0].mxu0
        %v632 = vadd.f32 0.0, %v631
        %633 = vmatprep.mubr.f32.mxu0 0.0
        %634 = vmatmul.mubr.f32.gmra.mrb[0].mxu0 %v444
        %v635 = vpop.f32.mrb[0].mxu0
        %v636 = vadd.f32 0.0, %v635
        %v637 = vpop.f32.mrb[0].mxu0
        %v638 = vadd.f32 0.0, %v637
        %639 = vmatprep.mubr.f32.mxu0 0.0
        %640 = vmatmul.mubr.f32.gmra.mrb[0].mxu0 %v447
        %v641 = vpop.f32.mrb[0].mxu0
        %v642 = vadd.f32 0.0, %v641
        %v643 = vpop.f32.mrb[0].mxu0
        %v644 = vadd.f32 0.0, %v643
        %645 = vmatprep.mubr.f32.mxu0 0.0
        %646 = vmatmul.mubr.f32.gmra.mrb[0].mxu0 %v450
        %v647 = vpop.f32.mrb[0].mxu0
        %v648 = vadd.f32 0.0, %v647
        %v649 = vpop.f32.mrb[0].mxu0
        %v650 = vadd.f32 0.0, %v649
        %651 = vmatprep.mubr.f32.mxu0 0.0
        %652 = vmatmul.mubr.f32.gmra.mrb[0].mxu0 %v453
        %v653 = vpop.f32.mrb[0].mxu0
        %v654 = vadd.f32 0.0, %v653
        %v655 = vpop.f32.mrb[0].mxu0
        %v656 = vadd.f32 0.0, %v655
        %657 = vmatprep.mubr.f32.mxu0 0.0
        %658 = vmatmul.mubr.f32.gmra.mrb[0].mxu0 %v456
        %v659 = vpop.f32.mrb[0].mxu0
        %v660 = vadd.f32 0.0, %v659
        %v661 = vpop.f32.mrb[0].mxu0
        %v662 = vadd.f32 0.0, %v661
        %663 = vmatprep.mubr.f32.mxu0 0.0
        %664 = vmatmul.mubr.f32.gmra.mrb[0].mxu0 %v459
        %v665 = vpop.f32.mrb[0].mxu0
        %v666 = vadd.f32 0.0, %v665
        %v667 = vpop.f32.mrb[0].mxu0
        %v668 = vadd.f32 0.0, %v667
        %669 = vmatprep.mubr.f32.mxu0 0.0
        %670 = vmatmul.mubr.f32.gmra.mrb[0].mxu0 %v462
        %v671 = vpop.f32.mrb[0].mxu0
        %v672 = vadd.f32 0.0, %v671
        %v673 = vpop.f32.mrb[0].mxu0
        %v674 = vadd.f32 0.0, %v673
        %675 = vmatprep.mubr.f32.mxu0 0.0
        %676 = vmatmul.mubr.f32.gmra.mrb[0].mxu0 %v465
        %v677 = vpop.f32.mrb[0].mxu0
        %v678 = vadd.f32 0.0, %v677
        %v679 = vpop.f32.mrb[0].mxu0
        %v680 = vadd.f32 0.0, %v679
        %681 = vmatprep.mubr.f32.mxu0 0.0
        %682 = vmatmul.mubr.f32.gmra.mrb[0].mxu0 %v468
        %v683 = vpop.f32.mrb[0].mxu0
        %v684 = vadd.f32 0.0, %v683
        %v685 = vpop.f32.mrb[0].mxu0
        %v686 = vadd.f32 0.0, %v685
        %687 = vmatprep.mubr.f32.mxu0 0.0
        %688 = vmatmul.mubr.f32.gmra.mrb[0].mxu0 %v471
        %v689 = vpop.f32.mrb[0].mxu0
        %v690 = vadd.f32 0.0, %v689
        %v691 = vpop.f32.mrb[0].mxu0
        %v692 = vadd.f32 0.0, %v691
        %693 = vmatprep.mubr.f32.mxu0 0.0
        %694 = vmatmul.mubr.f32.gmra.mrb[0].mxu0 %v474
        %v695 = vpop.f32.mrb[0].mxu0
        %v696 = vadd.f32 0.0, %v695
        %v697 = vpop.f32.mrb[0].mxu0
        %v698 = vadd.f32 0.0, %v697
        %699 = vmatprep.mubr.f32.mxu0 0.0
        %700 = vmatmul.mubr.f32.gmra.mrb[0].mxu0 %v477
        %v701 = vpop.f32.mrb[0].mxu0
        %v702 = vadd.f32 0.0, %v701
        %v703 = vpop.f32.mrb[0].mxu0
        %v704 = vadd.f32 0.0, %v703
        %705 = vmatprep.mubr.f32.mxu0 0.0
        %706 = vmatmul.mubr.f32.gmra.mrb[0].mxu0 %v480
        %v707 = vpop.f32.mrb[0].mxu0
        %v708 = vadd.f32 0.0, %v707
        %v709 = vpop.f32.mrb[0].mxu0
        %v710 = vadd.f32 0.0, %v709
        %711 = vmatprep.mubr.f32.mxu0 0.0
        %712 = vmatmul.mubr.f32.gmra.mrb[0].mxu0 %v483
        %v713 = vpop.f32.mrb[0].mxu0
        %v714 = vadd.f32 0.0, %v713
        %v715 = vpop.f32.mrb[0].mxu0
        %v716 = vadd.f32 0.0, %v715
        %717 = vdwg.mxu0
        %s718 = sld [smem:[#allocation2]]
        %v719 = vstv %s718
        %v720 = vmul.f32 %v552, %v719
        %v721 = vmul.f32 %v554, %v719
        %v722 = vmul.f32 %v558, %v719
        %v723 = vmul.f32 %v560, %v719
        %v724 = vmul.f32 %v564, %v719
        %v725 = vmul.f32 %v566, %v719
        %v726 = vmul.f32 %v570, %v719
        %v727 = vmul.f32 %v572, %v719
        %v728 = vmul.f32 %v576, %v719
        %v729 = vmul.f32 %v578, %v719
        %v730 = vmul.f32 %v582, %v719
        %v731 = vmul.f32 %v584, %v719
        %v732 = vmul.f32 %v588, %v719
        %v733 = vmul.f32 %v590, %v719
        %v734 = vmul.f32 %v594, %v719
        %v735 = vmul.f32 %v596, %v719
        %v736 = vmul.f32 %v600, %v719
        %v737 = vmul.f32 %v602, %v719
        %v738 = vmul.f32 %v606, %v719
        %v739 = vmul.f32 %v608, %v719
        %v740 = vmul.f32 %v612, %v719
        %v741 = vmul.f32 %v614, %v719
        %v742 = vmul.f32 %v618, %v719
        %v743 = vmul.f32 %v620, %v719
        %v744 = vmul.f32 %v624, %v719
        %v745 = vmul.f32 %v626, %v719
        %v746 = vmul.f32 %v630, %v719
        %v747 = vmul.f32 %v632, %v719
        %v748 = vmul.f32 %v636, %v719
        %v749 = vmul.f32 %v638, %v719
        %v750 = vmul.f32 %v642, %v719
        %v751 = vmul.f32 %v644, %v719
        %v752 = vmul.f32 %v648, %v719
        %v753 = vmul.f32 %v650, %v719
        %v754 = vmul.f32 %v654, %v719
        %v755 = vmul.f32 %v656, %v719
        %v756 = vmul.f32 %v660, %v719
        %v757 = vmul.f32 %v662, %v719
        %v758 = vmul.f32 %v666, %v719
        %v759 = vmul.f32 %v668, %v719
        %v760 = vmul.f32 %v672, %v719
        %v761 = vmul.f32 %v674, %v719
        %v762 = vmul.f32 %v678, %v719
        %v763 = vmul.f32 %v680, %v719
        %v764 = vmul.f32 %v684, %v719
        %v765 = vmul.f32 %v686, %v719
        %v766 = vmul.f32 %v690, %v719
        %v767 = vmul.f32 %v692, %v719
        %v768 = vmul.f32 %v696, %v719
        %v769 = vmul.f32 %v698, %v719
        %v770 = vmul.f32 %v702, %v719
        %v771 = vmul.f32 %v704, %v719
        %v772 = vmul.f32 %v708, %v719
        %v773 = vmul.f32 %v710, %v719
        %v774 = vmul.f32 %v714, %v719
        %v775 = vmul.f32 %v716, %v719
        %s776 = sld [smem:[#allocation5]]
        %v777 = vstv %s776
        %v778 = vadd.f32 %v720, %v777
        %v779 = vadd.f32 %v721, %v777
        %v780 = vadd.f32 %v722, %v777
        %v781 = vadd.f32 %v723, %v777
        %v782 = vadd.f32 %v724, %v777
        %v783 = vadd.f32 %v725, %v777
        %v784 = vadd.f32 %v726, %v777
        %v785 = vadd.f32 %v727, %v777
        %v786 = vadd.f32 %v728, %v777
        %v787 = vadd.f32 %v729, %v777
        %v788 = vadd.f32 %v730, %v777
        %v789 = vadd.f32 %v731, %v777
        %v790 = vadd.f32 %v732, %v777
        %v791 = vadd.f32 %v733, %v777
        %v792 = vadd.f32 %v734, %v777
        %v793 = vadd.f32 %v735, %v777
        %v794 = vadd.f32 %v736, %v777
        %v795 = vadd.f32 %v737, %v777
        %v796 = vadd.f32 %v738, %v777
        %v797 = vadd.f32 %v739, %v777
        %v798 = vadd.f32 %v740, %v777
        %v799 = vadd.f32 %v741, %v777
        %v800 = vadd.f32 %v742, %v777
        %v801 = vadd.f32 %v743, %v777
        %v802 = vadd.f32 %v744, %v777
        %v803 = vadd.f32 %v745, %v777
        %v804 = vadd.f32 %v746, %v777
        %v805 = vadd.f32 %v747, %v777
        %v806 = vadd.f32 %v748, %v777
        %v807 = vadd.f32 %v749, %v777
        %v808 = vadd.f32 %v750, %v777
        %v809 = vadd.f32 %v751, %v777
        %v810 = vadd.f32 %v752, %v777
        %v811 = vadd.f32 %v753, %v777
        %v812 = vadd.f32 %v754, %v777
        %v813 = vadd.f32 %v755, %v777
        %v814 = vadd.f32 %v756, %v777
        %v815 = vadd.f32 %v757, %v777
        %v816 = vadd.f32 %v758, %v777
        %v817 = vadd.f32 %v759, %v777
        %v818 = vadd.f32 %v760, %v777
        %v819 = vadd.f32 %v761, %v777
        %v820 = vadd.f32 %v762, %v777
        %v821 = vadd.f32 %v763, %v777
        %v822 = vadd.f32 %v764, %v777
        %v823 = vadd.f32 %v765, %v777
        %v824 = vadd.f32 %v766, %v777
        %v825 = vadd.f32 %v767, %v777
        %v826 = vadd.f32 %v768, %v777
        %v827 = vadd.f32 %v769, %v777
        %v828 = vadd.f32 %v770, %v777
        %v829 = vadd.f32 %v771, %v777
        %v830 = vadd.f32 %v772, %v777
        %v831 = vadd.f32 %v773, %v777
        %v832 = vadd.f32 %v774, %v777
        %v833 = vadd.f32 %v775, %v777
        %834 = vst [vmem:[%s282] sm:$0xff] %v778
        %vm835 = vcmask 785408
        %836 = vst.msk [vmem:[%s282 + $0x8] sm:$0xff] %vm835, %v779
        %837 = vst [vmem:[%s282 + $0x10] sm:$0xff] %v780
        %838 = vst.msk [vmem:[%s282 + $0x18] sm:$0xff] %vm835, %v781
        %839 = vst [vmem:[%s282 + $0x20] sm:$0xff] %v782
        %840 = vst.msk [vmem:[%s282 + $0x28] sm:$0xff] %vm835, %v783
        %841 = vst [vmem:[%s282 + $0x30] sm:$0xff] %v784
        %842 = vst.msk [vmem:[%s282 + $0x38] sm:$0xff] %vm835, %v785
        %843 = vst [vmem:[%s282 + $0x40] sm:$0xff] %v786
        %844 = vst.msk [vmem:[%s282 + $0x48] sm:$0xff] %vm835, %v787
        %845 = vst [vmem:[%s282 + $0x50] sm:$0xff] %v788
        %846 = vst.msk [vmem:[%s282 + $0x58] sm:$0xff] %vm835, %v789
        %847 = vst [vmem:[%s282 + $0x60] sm:$0xff] %v790
        %848 = vst.msk [vmem:[%s282 + $0x68] sm:$0xff] %vm835, %v791
        %849 = vst [vmem:[%s282 + $0x70] sm:$0xff] %v792
        %850 = vst.msk [vmem:[%s282 + $0x78] sm:$0xff] %vm835, %v793
        %851 = vst [vmem:[%s282 + $0x80] sm:$0xff] %v794
        %852 = vst.msk [vmem:[%s282 + $0x88] sm:$0xff] %vm835, %v795
        %853 = vst [vmem:[%s282 + $0x90] sm:$0xff] %v796
        %854 = vst.msk [vmem:[%s282 + $0x98] sm:$0xff] %vm835, %v797
        %855 = vst [vmem:[%s282 + $0xa0] sm:$0xff] %v798
        %856 = vst.msk [vmem:[%s282 + $0xa8] sm:$0xff] %vm835, %v799
        %857 = vst [vmem:[%s282 + $0xb0] sm:$0xff] %v800
        %858 = vst.msk [vmem:[%s282 + $0xb8] sm:$0xff] %vm835, %v801
        %859 = vst [vmem:[%s282 + $0xc0] sm:$0xff] %v802
        %860 = vst.msk [vmem:[%s282 + $0xc8] sm:$0xff] %vm835, %v803
        %861 = vst [vmem:[%s282 + $0xd0] sm:$0xff] %v804
        %862 = vst.msk [vmem:[%s282 + $0xd8] sm:$0xff] %vm835, %v805
        %863 = vst [vmem:[%s282 + $0xe0] sm:$0xff] %v806
        %864 = vst.msk [vmem:[%s282 + $0xe8] sm:$0xff] %vm835, %v807
        %865 = vst [vmem:[%s282 + $0xf0] sm:$0xff] %v808
        %866 = vst.msk [vmem:[%s282 + $0xf8] sm:$0xff] %vm835, %v809
        %867 = vst [vmem:[%s282 + $0x100] sm:$0xff] %v810
        %868 = vst.msk [vmem:[%s282 + $0x108] sm:$0xff] %vm835, %v811
        %869 = vst [vmem:[%s282 + $0x110] sm:$0xff] %v812
        %870 = vst.msk [vmem:[%s282 + $0x118] sm:$0xff] %vm835, %v813
        %871 = vst [vmem:[%s282 + $0x120] sm:$0xff] %v814
        %872 = vst.msk [vmem:[%s282 + $0x128] sm:$0xff] %vm835, %v815
        %873 = vst [vmem:[%s282 + $0x130] sm:$0xff] %v816
        %874 = vst.msk [vmem:[%s282 + $0x138] sm:$0xff] %vm835, %v817
        %875 = vst [vmem:[%s282 + $0x140] sm:$0xff] %v818
        %876 = vst.msk [vmem:[%s282 + $0x148] sm:$0xff] %vm835, %v819
        %877 = vst [vmem:[%s282 + $0x150] sm:$0xff] %v820
        %878 = vst.msk [vmem:[%s282 + $0x158] sm:$0xff] %vm835, %v821
        %879 = vst [vmem:[%s282 + $0x160] sm:$0xff] %v822
        %880 = vst.msk [vmem:[%s282 + $0x168] sm:$0xff] %vm835, %v823
        %881 = vst [vmem:[%s282 + $0x170] sm:$0xff] %v824
        %882 = vst.msk [vmem:[%s282 + $0x178] sm:$0xff] %vm835, %v825
        %883 = vst [vmem:[%s282 + $0x180] sm:$0xff] %v826
        %884 = vst.msk [vmem:[%s282 + $0x188] sm:$0xff] %vm835, %v827
        %885 = vst [vmem:[%s282 + $0x190] sm:$0xff] %v828
        %886 = vst.msk [vmem:[%s282 + $0x198] sm:$0xff] %vm835, %v829
        %887 = vst [vmem:[%s282 + $0x1a0] sm:$0xff] %v830
        %888 = vst.msk [vmem:[%s282 + $0x1a8] sm:$0xff] %vm835, %v831
        %889 = vst [vmem:[%s282 + $0x1b0] sm:$0xff] %v832
        %890 = vst.msk [vmem:[%s282 + $0x1b8] sm:$0xff] %vm835, %v833
        %s891 = scalar_lea.vmem %s246, 16 [#allocation7]
        %v892 = vld [vmem:[%s891] sm:$0xff]
        %v893 = vld [vmem:[%s891 + $0x8] sm:$0xff]
        %v895 = vsel %vm317, %v892, 0
        %v898 = vsel %vm317, %v893, 0
        %900 = vmatprep.subr.mxu0 %v284
        %901 = vmatpush1.msra.mxu0 %v283
        %902 = vmatprep.subr.mxu0 %v286
        %903 = vmatpush1.msra.mxu0 %v285
        %904 = vmatprep.subr.mxu0 0.0
        %905 = vmatpush1.msra.mxu0 0.0
        %906 = vmatprep.subr.mxu0 0.0
        %907 = vmatpush1.msra.mxu0 0.0
        %908 = vmatprep.subr.mxu0 0.0
        %909 = vmatpush1.msra.mxu0 0.0
        %910 = vmatprep.subr.mxu0 0.0
        %911 = vmatpush1.msra.mxu0 0.0
        %912 = vmatprep.subr.mxu0 0.0
        %913 = vmatpush1.msra.mxu0 0.0
        %914 = vmatprep.subr.mxu0 0.0
        %915 = vmatpush1.msra.mxu0 0.0
        %916 = vmatprep.subr.mxu0 0.0
        %917 = vmatpush1.msra.mxu0 0.0
        %918 = vmatprep.subr.mxu0 0.0
        %919 = vmatpush1.msra.mxu0 0.0
        %920 = vmatprep.subr.mxu0 0.0
        %921 = vmatpush1.msra.mxu0 0.0
        %922 = vmatprep.subr.mxu0 0.0
        %923 = vmatpush1.msra.mxu0 0.0
        %924 = vmatprep.subr.mxu0 0.0
        %925 = vmatpush1.msra.mxu0 0.0
        %926 = vmatprep.subr.mxu0 0.0
        %927 = vmatpush1.msra.mxu0 0.0
        %928 = vmatprep.subr.mxu0 0.0
        %929 = vmatpush1.msra.mxu0 0.0
        %930 = vmatprep.subr.mxu0 0.0
        %931 = vmatpush1.msra.mxu0 0.0
        %932 = vmatprep.subr.mxu0 0.0
        %933 = vmatpush1.msra.mxu0 0.0
        %934 = vmatprep.subr.mxu0 0.0
        %935 = vmatpush1.msra.mxu0 0.0
        %936 = vmatprep.subr.mxu0 0.0
        %937 = vmatpush1.msra.mxu0 0.0
        %938 = vmatprep.subr.mxu0 0.0
        %939 = vmatpush1.msra.mxu0 0.0
        %940 = vmatprep.subr.mxu0 0.0
        %941 = vmatpush1.msra.mxu0 0.0
        %942 = vmatprep.subr.mxu0 0.0
        %943 = vmatpush1.msra.mxu0 0.0
        %944 = vmatprep.subr.mxu0 0.0
        %945 = vmatpush1.msra.mxu0 0.0
        %946 = vmatprep.subr.mxu0 0.0
        %947 = vmatpush1.msra.mxu0 0.0
        %948 = vmatprep.subr.mxu0 0.0
        %949 = vmatpush1.msra.mxu0 0.0
        %950 = vmatprep.subr.mxu0 0.0
        %951 = vmatpush1.msra.mxu0 0.0
        %952 = vmatprep.subr.mxu0 0.0
        %953 = vmatpush1.msra.mxu0 0.0
        %954 = vmatprep.subr.mxu0 0.0
        %955 = vmatpush1.msra.mxu0 0.0
        %956 = vmatprep.subr.mxu0 0.0
        %957 = vmatpush1.msra.mxu0 0.0
        %958 = vmatprep.subr.mxu0 0.0
        %959 = vmatpush1.msra.mxu0 0.0
        %960 = vmatprep.subr.mxu0 0.0
        %961 = vmatpush1.msra.mxu0 0.0
        %962 = vmatprep.subr.mxu0 0.0
        %963 = vmatpush1.msra.mxu0 0.0
        %964 = vmatprep.mubr.f32.mxu0 0.0
        %965 = vmatmul.mubr.f32.gmra.mrb[0].mxu0 %v895
        %v966 = vpop.f32.mrb[0].mxu0
        %v967 = vadd.f32 0.0, %v966
        %v968 = vpop.f32.mrb[0].mxu0
        %v969 = vadd.f32 0.0, %v968
        %970 = vmatprep.mubr.f32.mxu0 0.0
        %971 = vmatmul.mubr.f32.gmra.mrb[0].mxu0 %v898
        %v972 = vpop.f32.mrb[0].mxu0
        %v973 = vadd.f32 0.0, %v972
        %v974 = vpop.f32.mrb[0].mxu0
        %v975 = vadd.f32 0.0, %v974
        %976 = vdwg.mxu0
        %977 = vmatprep.subr.mxu0 %v969
        %978 = vmatpush1.msra.mxu0 %v967
        %979 = vmatprep.subr.mxu0 %v975
        %980 = vmatpush1.msra.mxu0 %v973
        %981 = vmatprep.subr.mxu0 0.0
        %982 = vmatpush1.msra.mxu0 0.0
        %983 = vmatprep.subr.mxu0 0.0
        %984 = vmatpush1.msra.mxu0 0.0
        %985 = vmatprep.subr.mxu0 0.0
        %986 = vmatpush1.msra.mxu0 0.0
        %987 = vmatprep.subr.mxu0 0.0
        %988 = vmatpush1.msra.mxu0 0.0
        %989 = vmatprep.subr.mxu0 0.0
        %990 = vmatpush1.msra.mxu0 0.0
        %991 = vmatprep.subr.mxu0 0.0
        %992 = vmatpush1.msra.mxu0 0.0
        %993 = vmatprep.subr.mxu0 0.0
        %994 = vmatpush1.msra.mxu0 0.0
        %995 = vmatprep.subr.mxu0 0.0
        %996 = vmatpush1.msra.mxu0 0.0
        %997 = vmatprep.subr.mxu0 0.0
        %998 = vmatpush1.msra.mxu0 0.0
        %999 = vmatprep.subr.mxu0 0.0
        %1000 = vmatpush1.msra.mxu0 0.0
        %1001 = vmatprep.subr.mxu0 0.0
        %1002 = vmatpush1.msra.mxu0 0.0
        %1003 = vmatprep.subr.mxu0 0.0
        %1004 = vmatpush1.msra.mxu0 0.0
        %1005 = vmatprep.subr.mxu0 0.0
        %1006 = vmatpush1.msra.mxu0 0.0
        %1007 = vmatprep.subr.mxu0 0.0
        %1008 = vmatpush1.msra.mxu0 0.0
        %1009 = vmatprep.subr.mxu0 0.0
        %1010 = vmatpush1.msra.mxu0 0.0
        %1011 = vmatprep.subr.mxu0 0.0
        %1012 = vmatpush1.msra.mxu0 0.0
        %1013 = vmatprep.subr.mxu0 0.0
        %1014 = vmatpush1.msra.mxu0 0.0
        %1015 = vmatprep.subr.mxu0 0.0
        %1016 = vmatpush1.msra.mxu0 0.0
        %1017 = vmatprep.subr.mxu0 0.0
        %1018 = vmatpush1.msra.mxu0 0.0
        %1019 = vmatprep.subr.mxu0 0.0
        %1020 = vmatpush1.msra.mxu0 0.0
        %1021 = vmatprep.subr.mxu0 0.0
        %1022 = vmatpush1.msra.mxu0 0.0
        %1023 = vmatprep.subr.mxu0 0.0
        %1024 = vmatpush1.msra.mxu0 0.0
        %1025 = vmatprep.subr.mxu0 0.0
        %1026 = vmatpush1.msra.mxu0 0.0
        %1027 = vmatprep.subr.mxu0 0.0
        %1028 = vmatpush1.msra.mxu0 0.0
        %1029 = vmatprep.subr.mxu0 0.0
        %1030 = vmatpush1.msra.mxu0 0.0
        %1031 = vmatprep.subr.mxu0 0.0
        %1032 = vmatpush1.msra.mxu0 0.0
        %1033 = vmatprep.subr.mxu0 0.0
        %1034 = vmatpush1.msra.mxu0 0.0
        %1035 = vmatprep.subr.mxu0 0.0
        %1036 = vmatpush1.msra.mxu0 0.0
        %1037 = vmatprep.subr.mxu0 0.0
        %1038 = vmatpush1.msra.mxu0 0.0
        %1039 = vmatprep.subr.mxu0 0.0
        %1040 = vmatpush1.msra.mxu0 0.0
        %1041 = vmatprep.mubr.f32.mxu0 0.0
        %1042 = vmatmul.mubr.f32.gmra.mrb[0].mxu0 %v402
        %v1043 = vpop.f32.mrb[0].mxu0
        %v1044 = vadd.f32 0.0, %v1043
        %v1045 = vpop.f32.mrb[0].mxu0
        %v1046 = vadd.f32 0.0, %v1045
        %1047 = vmatprep.mubr.f32.mxu0 0.0
        %1048 = vmatmul.mubr.f32.gmra.mrb[0].mxu0 %v405
        %v1049 = vpop.f32.mrb[0].mxu0
        %v1050 = vadd.f32 0.0, %v1049
        %v1051 = vpop.f32.mrb[0].mxu0
        %v1052 = vadd.f32 0.0, %v1051
        %1053 = vmatprep.mubr.f32.mxu0 0.0
        %1054 = vmatmul.mubr.f32.gmra.mrb[0].mxu0 %v408
        %v1055 = vpop.f32.mrb[0].mxu0
        %v1056 = vadd.f32 0.0, %v1055
        %v1057 = vpop.f32.mrb[0].mxu0
        %v1058 = vadd.f32 0.0, %v1057
        %1059 = vmatprep.mubr.f32.mxu0 0.0
        %1060 = vmatmul.mubr.f32.gmra.mrb[0].mxu0 %v411
        %v1061 = vpop.f32.mrb[0].mxu0
        %v1062 = vadd.f32 0.0, %v1061
        %v1063 = vpop.f32.mrb[0].mxu0
        %v1064 = vadd.f32 0.0, %v1063
        %1065 = vmatprep.mubr.f32.mxu0 0.0
        %1066 = vmatmul.mubr.f32.gmra.mrb[0].mxu0 %v414
        %v1067 = vpop.f32.mrb[0].mxu0
        %v1068 = vadd.f32 0.0, %v1067
        %v1069 = vpop.f32.mrb[0].mxu0
        %v1070 = vadd.f32 0.0, %v1069
        %1071 = vmatprep.mubr.f32.mxu0 0.0
        %1072 = vmatmul.mubr.f32.gmra.mrb[0].mxu0 %v417
        %v1073 = vpop.f32.mrb[0].mxu0
        %v1074 = vadd.f32 0.0, %v1073
        %v1075 = vpop.f32.mrb[0].mxu0
        %v1076 = vadd.f32 0.0, %v1075
        %1077 = vmatprep.mubr.f32.mxu0 0.0
        %1078 = vmatmul.mubr.f32.gmra.mrb[0].mxu0 %v420
        %v1079 = vpop.f32.mrb[0].mxu0
        %v1080 = vadd.f32 0.0, %v1079
        %v1081 = vpop.f32.mrb[0].mxu0
        %v1082 = vadd.f32 0.0, %v1081
        %1083 = vmatprep.mubr.f32.mxu0 0.0
        %1084 = vmatmul.mubr.f32.gmra.mrb[0].mxu0 %v423
        %v1085 = vpop.f32.mrb[0].mxu0
        %v1086 = vadd.f32 0.0, %v1085
        %v1087 = vpop.f32.mrb[0].mxu0
        %v1088 = vadd.f32 0.0, %v1087
        %1089 = vmatprep.mubr.f32.mxu0 0.0
        %1090 = vmatmul.mubr.f32.gmra.mrb[0].mxu0 %v426
        %v1091 = vpop.f32.mrb[0].mxu0
        %v1092 = vadd.f32 0.0, %v1091
        %v1093 = vpop.f32.mrb[0].mxu0
        %v1094 = vadd.f32 0.0, %v1093
        %1095 = vmatprep.mubr.f32.mxu0 0.0
        %1096 = vmatmul.mubr.f32.gmra.mrb[0].mxu0 %v429
        %v1097 = vpop.f32.mrb[0].mxu0
        %v1098 = vadd.f32 0.0, %v1097
        %v1099 = vpop.f32.mrb[0].mxu0
        %v1100 = vadd.f32 0.0, %v1099
        %1101 = vmatprep.mubr.f32.mxu0 0.0
        %1102 = vmatmul.mubr.f32.gmra.mrb[0].mxu0 %v432
        %v1103 = vpop.f32.mrb[0].mxu0
        %v1104 = vadd.f32 0.0, %v1103
        %v1105 = vpop.f32.mrb[0].mxu0
        %v1106 = vadd.f32 0.0, %v1105
        %1107 = vmatprep.mubr.f32.mxu0 0.0
        %1108 = vmatmul.mubr.f32.gmra.mrb[0].mxu0 %v435
        %v1109 = vpop.f32.mrb[0].mxu0
        %v1110 = vadd.f32 0.0, %v1109
        %v1111 = vpop.f32.mrb[0].mxu0
        %v1112 = vadd.f32 0.0, %v1111
        %1113 = vmatprep.mubr.f32.mxu0 0.0
        %1114 = vmatmul.mubr.f32.gmra.mrb[0].mxu0 %v438
        %v1115 = vpop.f32.mrb[0].mxu0
        %v1116 = vadd.f32 0.0, %v1115
        %v1117 = vpop.f32.mrb[0].mxu0
        %v1118 = vadd.f32 0.0, %v1117
        %1119 = vmatprep.mubr.f32.mxu0 0.0
        %1120 = vmatmul.mubr.f32.gmra.mrb[0].mxu0 %v441
        %v1121 = vpop.f32.mrb[0].mxu0
        %v1122 = vadd.f32 0.0, %v1121
        %v1123 = vpop.f32.mrb[0].mxu0
        %v1124 = vadd.f32 0.0, %v1123
        %1125 = vmatprep.mubr.f32.mxu0 0.0
        %1126 = vmatmul.mubr.f32.gmra.mrb[0].mxu0 %v444
        %v1127 = vpop.f32.mrb[0].mxu0
        %v1128 = vadd.f32 0.0, %v1127
        %v1129 = vpop.f32.mrb[0].mxu0
        %v1130 = vadd.f32 0.0, %v1129
        %1131 = vmatprep.mubr.f32.mxu0 0.0
        %1132 = vmatmul.mubr.f32.gmra.mrb[0].mxu0 %v447
        %v1133 = vpop.f32.mrb[0].mxu0
        %v1134 = vadd.f32 0.0, %v1133
        %v1135 = vpop.f32.mrb[0].mxu0
        %v1136 = vadd.f32 0.0, %v1135
        %1137 = vmatprep.mubr.f32.mxu0 0.0
        %1138 = vmatmul.mubr.f32.gmra.mrb[0].mxu0 %v450
        %v1139 = vpop.f32.mrb[0].mxu0
        %v1140 = vadd.f32 0.0, %v1139
        %v1141 = vpop.f32.mrb[0].mxu0
        %v1142 = vadd.f32 0.0, %v1141
        %1143 = vmatprep.mubr.f32.mxu0 0.0
        %1144 = vmatmul.mubr.f32.gmra.mrb[0].mxu0 %v453
        %v1145 = vpop.f32.mrb[0].mxu0
        %v1146 = vadd.f32 0.0, %v1145
        %v1147 = vpop.f32.mrb[0].mxu0
        %v1148 = vadd.f32 0.0, %v1147
        %1149 = vmatprep.mubr.f32.mxu0 0.0
        %1150 = vmatmul.mubr.f32.gmra.mrb[0].mxu0 %v456
        %v1151 = vpop.f32.mrb[0].mxu0
        %v1152 = vadd.f32 0.0, %v1151
        %v1153 = vpop.f32.mrb[0].mxu0
        %v1154 = vadd.f32 0.0, %v1153
        %1155 = vmatprep.mubr.f32.mxu0 0.0
        %1156 = vmatmul.mubr.f32.gmra.mrb[0].mxu0 %v459
        %v1157 = vpop.f32.mrb[0].mxu0
        %v1158 = vadd.f32 0.0, %v1157
        %v1159 = vpop.f32.mrb[0].mxu0
        %v1160 = vadd.f32 0.0, %v1159
        %1161 = vmatprep.mubr.f32.mxu0 0.0
        %1162 = vmatmul.mubr.f32.gmra.mrb[0].mxu0 %v462
        %v1163 = vpop.f32.mrb[0].mxu0
        %v1164 = vadd.f32 0.0, %v1163
        %v1165 = vpop.f32.mrb[0].mxu0
        %v1166 = vadd.f32 0.0, %v1165
        %1167 = vmatprep.mubr.f32.mxu0 0.0
        %1168 = vmatmul.mubr.f32.gmra.mrb[0].mxu0 %v465
        %v1169 = vpop.f32.mrb[0].mxu0
        %v1170 = vadd.f32 0.0, %v1169
        %v1171 = vpop.f32.mrb[0].mxu0
        %v1172 = vadd.f32 0.0, %v1171
        %1173 = vmatprep.mubr.f32.mxu0 0.0
        %1174 = vmatmul.mubr.f32.gmra.mrb[0].mxu0 %v468
        %v1175 = vpop.f32.mrb[0].mxu0
        %v1176 = vadd.f32 0.0, %v1175
        %v1177 = vpop.f32.mrb[0].mxu0
        %v1178 = vadd.f32 0.0, %v1177
        %1179 = vmatprep.mubr.f32.mxu0 0.0
        %1180 = vmatmul.mubr.f32.gmra.mrb[0].mxu0 %v471
        %v1181 = vpop.f32.mrb[0].mxu0
        %v1182 = vadd.f32 0.0, %v1181
        %v1183 = vpop.f32.mrb[0].mxu0
        %v1184 = vadd.f32 0.0, %v1183
        %1185 = vmatprep.mubr.f32.mxu0 0.0
        %1186 = vmatmul.mubr.f32.gmra.mrb[0].mxu0 %v474
        %v1187 = vpop.f32.mrb[0].mxu0
        %v1188 = vadd.f32 0.0, %v1187
        %v1189 = vpop.f32.mrb[0].mxu0
        %v1190 = vadd.f32 0.0, %v1189
        %1191 = vmatprep.mubr.f32.mxu0 0.0
        %1192 = vmatmul.mubr.f32.gmra.mrb[0].mxu0 %v477
        %v1193 = vpop.f32.mrb[0].mxu0
        %v1194 = vadd.f32 0.0, %v1193
        %v1195 = vpop.f32.mrb[0].mxu0
        %v1196 = vadd.f32 0.0, %v1195
        %1197 = vmatprep.mubr.f32.mxu0 0.0
        %1198 = vmatmul.mubr.f32.gmra.mrb[0].mxu0 %v480
        %v1199 = vpop.f32.mrb[0].mxu0
        %v1200 = vadd.f32 0.0, %v1199
        %v1201 = vpop.f32.mrb[0].mxu0
        %v1202 = vadd.f32 0.0, %v1201
        %1203 = vmatprep.mubr.f32.mxu0 0.0
        %1204 = vmatmul.mubr.f32.gmra.mrb[0].mxu0 %v483
        %v1205 = vpop.f32.mrb[0].mxu0
        %v1206 = vadd.f32 0.0, %v1205
        %v1207 = vpop.f32.mrb[0].mxu0
        %v1208 = vadd.f32 0.0, %v1207
        %1209 = vdwg.mxu0
        %s1210 = sld [smem:[#allocation2 + $0x1]]
        %v1211 = vstv %s1210
        %v1212 = vmul.f32 %v1044, %v1211
        %v1213 = vmul.f32 %v1046, %v1211
        %v1214 = vmul.f32 %v1050, %v1211
        %v1215 = vmul.f32 %v1052, %v1211
        %v1216 = vmul.f32 %v1056, %v1211
        %v1217 = vmul.f32 %v1058, %v1211
        %v1218 = vmul.f32 %v1062, %v1211
        %v1219 = vmul.f32 %v1064, %v1211
        %v1220 = vmul.f32 %v1068, %v1211
        %v1221 = vmul.f32 %v1070, %v1211
        %v1222 = vmul.f32 %v1074, %v1211
        %v1223 = vmul.f32 %v1076, %v1211
        %v1224 = vmul.f32 %v1080, %v1211
        %v1225 = vmul.f32 %v1082, %v1211
        %v1226 = vmul.f32 %v1086, %v1211
        %v1227 = vmul.f32 %v1088, %v1211
        %v1228 = vmul.f32 %v1092, %v1211
        %v1229 = vmul.f32 %v1094, %v1211
        %v1230 = vmul.f32 %v1098, %v1211
        %v1231 = vmul.f32 %v1100, %v1211
        %v1232 = vmul.f32 %v1104, %v1211
        %v1233 = vmul.f32 %v1106, %v1211
        %v1234 = vmul.f32 %v1110, %v1211
        %v1235 = vmul.f32 %v1112, %v1211
        %v1236 = vmul.f32 %v1116, %v1211
        %v1237 = vmul.f32 %v1118, %v1211
        %v1238 = vmul.f32 %v1122, %v1211
        %v1239 = vmul.f32 %v1124, %v1211
        %v1240 = vmul.f32 %v1128, %v1211
        %v1241 = vmul.f32 %v1130, %v1211
        %v1242 = vmul.f32 %v1134, %v1211
        %v1243 = vmul.f32 %v1136, %v1211
        %v1244 = vmul.f32 %v1140, %v1211
        %v1245 = vmul.f32 %v1142, %v1211
        %v1246 = vmul.f32 %v1146, %v1211
        %v1247 = vmul.f32 %v1148, %v1211
        %v1248 = vmul.f32 %v1152, %v1211
        %v1249 = vmul.f32 %v1154, %v1211
        %v1250 = vmul.f32 %v1158, %v1211
        %v1251 = vmul.f32 %v1160, %v1211
        %v1252 = vmul.f32 %v1164, %v1211
        %v1253 = vmul.f32 %v1166, %v1211
        %v1254 = vmul.f32 %v1170, %v1211
        %v1255 = vmul.f32 %v1172, %v1211
        %v1256 = vmul.f32 %v1176, %v1211
        %v1257 = vmul.f32 %v1178, %v1211
        %v1258 = vmul.f32 %v1182, %v1211
        %v1259 = vmul.f32 %v1184, %v1211
        %v1260 = vmul.f32 %v1188, %v1211
        %v1261 = vmul.f32 %v1190, %v1211
        %v1262 = vmul.f32 %v1194, %v1211
        %v1263 = vmul.f32 %v1196, %v1211
        %v1264 = vmul.f32 %v1200, %v1211
        %v1265 = vmul.f32 %v1202, %v1211
        %v1266 = vmul.f32 %v1206, %v1211
        %v1267 = vmul.f32 %v1208, %v1211
        %s1268 = sld [smem:[#allocation5 + $0x1]]
        %v1269 = vstv %s1268
        %v1270 = vadd.f32 %v1212, %v1269
        %v1271 = vadd.f32 %v1213, %v1269
        %v1272 = vadd.f32 %v1214, %v1269
        %v1273 = vadd.f32 %v1215, %v1269
        %v1274 = vadd.f32 %v1216, %v1269
        %v1275 = vadd.f32 %v1217, %v1269
        %v1276 = vadd.f32 %v1218, %v1269
        %v1277 = vadd.f32 %v1219, %v1269
        %v1278 = vadd.f32 %v1220, %v1269
        %v1279 = vadd.f32 %v1221, %v1269
        %v1280 = vadd.f32 %v1222, %v1269
        %v1281 = vadd.f32 %v1223, %v1269
        %v1282 = vadd.f32 %v1224, %v1269
        %v1283 = vadd.f32 %v1225, %v1269
        %v1284 = vadd.f32 %v1226, %v1269
        %v1285 = vadd.f32 %v1227, %v1269
        %v1286 = vadd.f32 %v1228, %v1269
        %v1287 = vadd.f32 %v1229, %v1269
        %v1288 = vadd.f32 %v1230, %v1269
        %v1289 = vadd.f32 %v1231, %v1269
        %v1290 = vadd.f32 %v1232, %v1269
        %v1291 = vadd.f32 %v1233, %v1269
        %v1292 = vadd.f32 %v1234, %v1269
        %v1293 = vadd.f32 %v1235, %v1269
        %v1294 = vadd.f32 %v1236, %v1269
        %v1295 = vadd.f32 %v1237, %v1269
        %v1296 = vadd.f32 %v1238, %v1269
        %v1297 = vadd.f32 %v1239, %v1269
        %v1298 = vadd.f32 %v1240, %v1269
        %v1299 = vadd.f32 %v1241, %v1269
        %v1300 = vadd.f32 %v1242, %v1269
        %v1301 = vadd.f32 %v1243, %v1269
        %v1302 = vadd.f32 %v1244, %v1269
        %v1303 = vadd.f32 %v1245, %v1269
        %v1304 = vadd.f32 %v1246, %v1269
        %v1305 = vadd.f32 %v1247, %v1269
        %v1306 = vadd.f32 %v1248, %v1269
        %v1307 = vadd.f32 %v1249, %v1269
        %v1308 = vadd.f32 %v1250, %v1269
        %v1309 = vadd.f32 %v1251, %v1269
        %v1310 = vadd.f32 %v1252, %v1269
        %v1311 = vadd.f32 %v1253, %v1269
        %v1312 = vadd.f32 %v1254, %v1269
        %v1313 = vadd.f32 %v1255, %v1269
        %v1314 = vadd.f32 %v1256, %v1269
        %v1315 = vadd.f32 %v1257, %v1269
        %v1316 = vadd.f32 %v1258, %v1269
        %v1317 = vadd.f32 %v1259, %v1269
        %v1318 = vadd.f32 %v1260, %v1269
        %v1319 = vadd.f32 %v1261, %v1269
        %v1320 = vadd.f32 %v1262, %v1269
        %v1321 = vadd.f32 %v1263, %v1269
        %v1322 = vadd.f32 %v1264, %v1269
        %v1323 = vadd.f32 %v1265, %v1269
        %v1324 = vadd.f32 %v1266, %v1269
        %v1325 = vadd.f32 %v1267, %v1269
        %s1326 = scalar_lea.vmem %s282, 448
        %1327 = vst [vmem:[%s1326] sm:$0xff] %v1270
        %1328 = vst.msk [vmem:[%s1326 + $0x8] sm:$0xff] %vm835, %v1271
        %1329 = vst [vmem:[%s1326 + $0x10] sm:$0xff] %v1272
        %1330 = vst.msk [vmem:[%s1326 + $0x18] sm:$0xff] %vm835, %v1273
        %1331 = vst [vmem:[%s1326 + $0x20] sm:$0xff] %v1274
        %1332 = vst.msk [vmem:[%s1326 + $0x28] sm:$0xff] %vm835, %v1275
        %1333 = vst [vmem:[%s1326 + $0x30] sm:$0xff] %v1276
        %1334 = vst.msk [vmem:[%s1326 + $0x38] sm:$0xff] %vm835, %v1277
        %1335 = vst [vmem:[%s1326 + $0x40] sm:$0xff] %v1278
        %1336 = vst.msk [vmem:[%s1326 + $0x48] sm:$0xff] %vm835, %v1279
        %1337 = vst [vmem:[%s1326 + $0x50] sm:$0xff] %v1280
        %1338 = vst.msk [vmem:[%s1326 + $0x58] sm:$0xff] %vm835, %v1281
        %1339 = vst [vmem:[%s1326 + $0x60] sm:$0xff] %v1282
        %1340 = vst.msk [vmem:[%s1326 + $0x68] sm:$0xff] %vm835, %v1283
        %1341 = vst [vmem:[%s1326 + $0x70] sm:$0xff] %v1284
        %1342 = vst.msk [vmem:[%s1326 + $0x78] sm:$0xff] %vm835, %v1285
        %1343 = vst [vmem:[%s1326 + $0x80] sm:$0xff] %v1286
        %1344 = vst.msk [vmem:[%s1326 + $0x88] sm:$0xff] %vm835, %v1287
        %1345 = vst [vmem:[%s1326 + $0x90] sm:$0xff] %v1288
        %1346 = vst.msk [vmem:[%s1326 + $0x98] sm:$0xff] %vm835, %v1289
        %1347 = vst [vmem:[%s1326 + $0xa0] sm:$0xff] %v1290
        %1348 = vst.msk [vmem:[%s1326 + $0xa8] sm:$0xff] %vm835, %v1291
        %1349 = vst [vmem:[%s1326 + $0xb0] sm:$0xff] %v1292
        %1350 = vst.msk [vmem:[%s1326 + $0xb8] sm:$0xff] %vm835, %v1293
        %1351 = vst [vmem:[%s1326 + $0xc0] sm:$0xff] %v1294
        %1352 = vst.msk [vmem:[%s1326 + $0xc8] sm:$0xff] %vm835, %v1295
        %1353 = vst [vmem:[%s1326 + $0xd0] sm:$0xff] %v1296
        %1354 = vst.msk [vmem:[%s1326 + $0xd8] sm:$0xff] %vm835, %v1297
        %1355 = vst [vmem:[%s1326 + $0xe0] sm:$0xff] %v1298
        %1356 = vst.msk [vmem:[%s1326 + $0xe8] sm:$0xff] %vm835, %v1299
        %1357 = vst [vmem:[%s1326 + $0xf0] sm:$0xff] %v1300
        %1358 = vst.msk [vmem:[%s1326 + $0xf8] sm:$0xff] %vm835, %v1301
        %1359 = vst [vmem:[%s1326 + $0x100] sm:$0xff] %v1302
        %1360 = vst.msk [vmem:[%s1326 + $0x108] sm:$0xff] %vm835, %v1303
        %1361 = vst [vmem:[%s1326 + $0x110] sm:$0xff] %v1304
        %1362 = vst.msk [vmem:[%s1326 + $0x118] sm:$0xff] %vm835, %v1305
        %1363 = vst [vmem:[%s1326 + $0x120] sm:$0xff] %v1306
        %1364 = vst.msk [vmem:[%s1326 + $0x128] sm:$0xff] %vm835, %v1307
        %1365 = vst [vmem:[%s1326 + $0x130] sm:$0xff] %v1308
        %1366 = vst.msk [vmem:[%s1326 + $0x138] sm:$0xff] %vm835, %v1309
        %1367 = vst [vmem:[%s1326 + $0x140] sm:$0xff] %v1310
        %1368 = vst.msk [vmem:[%s1326 + $0x148] sm:$0xff] %vm835, %v1311
        %1369 = vst [vmem:[%s1326 + $0x150] sm:$0xff] %v1312
        %1370 = vst.msk [vmem:[%s1326 + $0x158] sm:$0xff] %vm835, %v1313
        %1371 = vst [vmem:[%s1326 + $0x160] sm:$0xff] %v1314
        %1372 = vst.msk [vmem:[%s1326 + $0x168] sm:$0xff] %vm835, %v1315
        %1373 = vst [vmem:[%s1326 + $0x170] sm:$0xff] %v1316
        %1374 = vst.msk [vmem:[%s1326 + $0x178] sm:$0xff] %vm835, %v1317
        %1375 = vst [vmem:[%s1326 + $0x180] sm:$0xff] %v1318
        %1376 = vst.msk [vmem:[%s1326 + $0x188] sm:$0xff] %vm835, %v1319
        %1377 = vst [vmem:[%s1326 + $0x190] sm:$0xff] %v1320
        %1378 = vst.msk [vmem:[%s1326 + $0x198] sm:$0xff] %vm835, %v1321
        %1379 = vst [vmem:[%s1326 + $0x1a0] sm:$0xff] %v1322
        %1380 = vst.msk [vmem:[%s1326 + $0x1a8] sm:$0xff] %vm835, %v1323
        %1381 = vst [vmem:[%s1326 + $0x1b0] sm:$0xff] %v1324
        %1382 = vst.msk [vmem:[%s1326 + $0x1b8] sm:$0xff] %vm835, %v1325
        %s1383 = scalar_lea.vmem %s246, 32 [#allocation7]
        %v1384 = vld [vmem:[%s1383] sm:$0xff]
        %v1385 = vld [vmem:[%s1383 + $0x8] sm:$0xff]
        %v1387 = vsel %vm317, %v1384, 0
        %v1390 = vsel %vm317, %v1385, 0
        %1392 = vmatprep.subr.mxu0 %v284
        %1393 = vmatpush1.msra.mxu0 %v283
        %1394 = vmatprep.subr.mxu0 %v286
        %1395 = vmatpush1.msra.mxu0 %v285
        %1396 = vmatprep.subr.mxu0 0.0
        %1397 = vmatpush1.msra.mxu0 0.0
        %1398 = vmatprep.subr.mxu0 0.0
        %1399 = vmatpush1.msra.mxu0 0.0
        %1400 = vmatprep.subr.mxu0 0.0
        %1401 = vmatpush1.msra.mxu0 0.0
        %1402 = vmatprep.subr.mxu0 0.0
        %1403 = vmatpush1.msra.mxu0 0.0
        %1404 = vmatprep.subr.mxu0 0.0
        %1405 = vmatpush1.msra.mxu0 0.0
        %1406 = vmatprep.subr.mxu0 0.0
        %1407 = vmatpush1.msra.mxu0 0.0
        %1408 = vmatprep.subr.mxu0 0.0
        %1409 = vmatpush1.msra.mxu0 0.0
        %1410 = vmatprep.subr.mxu0 0.0
        %1411 = vmatpush1.msra.mxu0 0.0
        %1412 = vmatprep.subr.mxu0 0.0
        %1413 = vmatpush1.msra.mxu0 0.0
        %1414 = vmatprep.subr.mxu0 0.0
        %1415 = vmatpush1.msra.mxu0 0.0
        %1416 = vmatprep.subr.mxu0 0.0
        %1417 = vmatpush1.msra.mxu0 0.0
        %1418 = vmatprep.subr.mxu0 0.0
        %1419 = vmatpush1.msra.mxu0 0.0
        %1420 = vmatprep.subr.mxu0 0.0
        %1421 = vmatpush1.msra.mxu0 0.0
        %1422 = vmatprep.subr.mxu0 0.0
        %1423 = vmatpush1.msra.mxu0 0.0
        %1424 = vmatprep.subr.mxu0 0.0
        %1425 = vmatpush1.msra.mxu0 0.0
        %1426 = vmatprep.subr.mxu0 0.0
        %1427 = vmatpush1.msra.mxu0 0.0
        %1428 = vmatprep.subr.mxu0 0.0
        %1429 = vmatpush1.msra.mxu0 0.0
        %1430 = vmatprep.subr.mxu0 0.0
        %1431 = vmatpush1.msra.mxu0 0.0
        %1432 = vmatprep.subr.mxu0 0.0
        %1433 = vmatpush1.msra.mxu0 0.0
        %1434 = vmatprep.subr.mxu0 0.0
        %1435 = vmatpush1.msra.mxu0 0.0
        %1436 = vmatprep.subr.mxu0 0.0
        %1437 = vmatpush1.msra.mxu0 0.0
        %1438 = vmatprep.subr.mxu0 0.0
        %1439 = vmatpush1.msra.mxu0 0.0
        %1440 = vmatprep.subr.mxu0 0.0
        %1441 = vmatpush1.msra.mxu0 0.0
        %1442 = vmatprep.subr.mxu0 0.0
        %1443 = vmatpush1.msra.mxu0 0.0
        %1444 = vmatprep.subr.mxu0 0.0
        %1445 = vmatpush1.msra.mxu0 0.0
        %1446 = vmatprep.subr.mxu0 0.0
        %1447 = vmatpush1.msra.mxu0 0.0
        %1448 = vmatprep.subr.mxu0 0.0
        %1449 = vmatpush1.msra.mxu0 0.0
        %1450 = vmatprep.subr.mxu0 0.0
        %1451 = vmatpush1.msra.mxu0 0.0
        %1452 = vmatprep.subr.mxu0 0.0
        %1453 = vmatpush1.msra.mxu0 0.0
        %1454 = vmatprep.subr.mxu0 0.0
        %1455 = vmatpush1.msra.mxu0 0.0
        %1456 = vmatprep.mubr.f32.mxu0 0.0
        %1457 = vmatmul.mubr.f32.gmra.mrb[0].mxu0 %v1387
        %v1458 = vpop.f32.mrb[0].mxu0
        %v1459 = vadd.f32 0.0, %v1458
        %v1460 = vpop.f32.mrb[0].mxu0
        %v1461 = vadd.f32 0.0, %v1460
        %1462 = vmatprep.mubr.f32.mxu0 0.0
        %1463 = vmatmul.mubr.f32.gmra.mrb[0].mxu0 %v1390
        %v1464 = vpop.f32.mrb[0].mxu0
        %v1465 = vadd.f32 0.0, %v1464
        %v1466 = vpop.f32.mrb[0].mxu0
        %v1467 = vadd.f32 0.0, %v1466
        %1468 = vdwg.mxu0
        %1469 = vmatprep.subr.mxu0 %v1461
        %1470 = vmatpush1.msra.mxu0 %v1459
        %1471 = vmatprep.subr.mxu0 %v1467
        %1472 = vmatpush1.msra.mxu0 %v1465
        %1473 = vmatprep.subr.mxu0 0.0
        %1474 = vmatpush1.msra.mxu0 0.0
        %1475 = vmatprep.subr.mxu0 0.0
        %1476 = vmatpush1.msra.mxu0 0.0
        %1477 = vmatprep.subr.mxu0 0.0
        %1478 = vmatpush1.msra.mxu0 0.0
        %1479 = vmatprep.subr.mxu0 0.0
        %1480 = vmatpush1.msra.mxu0 0.0
        %1481 = vmatprep.subr.mxu0 0.0
        %1482 = vmatpush1.msra.mxu0 0.0
        %1483 = vmatprep.subr.mxu0 0.0
        %1484 = vmatpush1.msra.mxu0 0.0
        %1485 = vmatprep.subr.mxu0 0.0
        %1486 = vmatpush1.msra.mxu0 0.0
        %1487 = vmatprep.subr.mxu0 0.0
        %1488 = vmatpush1.msra.mxu0 0.0
        %1489 = vmatprep.subr.mxu0 0.0
        %1490 = vmatpush1.msra.mxu0 0.0
        %1491 = vmatprep.subr.mxu0 0.0
        %1492 = vmatpush1.msra.mxu0 0.0
        %1493 = vmatprep.subr.mxu0 0.0
        %1494 = vmatpush1.msra.mxu0 0.0
        %1495 = vmatprep.subr.mxu0 0.0
        %1496 = vmatpush1.msra.mxu0 0.0
        %1497 = vmatprep.subr.mxu0 0.0
        %1498 = vmatpush1.msra.mxu0 0.0
        %1499 = vmatprep.subr.mxu0 0.0
        %1500 = vmatpush1.msra.mxu0 0.0
        %1501 = vmatprep.subr.mxu0 0.0
        %1502 = vmatpush1.msra.mxu0 0.0
        %1503 = vmatprep.subr.mxu0 0.0
        %1504 = vmatpush1.msra.mxu0 0.0
        %1505 = vmatprep.subr.mxu0 0.0
        %1506 = vmatpush1.msra.mxu0 0.0
        %1507 = vmatprep.subr.mxu0 0.0
        %1508 = vmatpush1.msra.mxu0 0.0
        %1509 = vmatprep.subr.mxu0 0.0
        %1510 = vmatpush1.msra.mxu0 0.0
        %1511 = vmatprep.subr.mxu0 0.0
        %1512 = vmatpush1.msra.mxu0 0.0
        %1513 = vmatprep.subr.mxu0 0.0
        %1514 = vmatpush1.msra.mxu0 0.0
        %1515 = vmatprep.subr.mxu0 0.0
        %1516 = vmatpush1.msra.mxu0 0.0
        %1517 = vmatprep.subr.mxu0 0.0
        %1518 = vmatpush1.msra.mxu0 0.0
        %1519 = vmatprep.subr.mxu0 0.0
        %1520 = vmatpush1.msra.mxu0 0.0
        %1521 = vmatprep.subr.mxu0 0.0
        %1522 = vmatpush1.msra.mxu0 0.0
        %1523 = vmatprep.subr.mxu0 0.0
        %1524 = vmatpush1.msra.mxu0 0.0
        %1525 = vmatprep.subr.mxu0 0.0
        %1526 = vmatpush1.msra.mxu0 0.0
        %1527 = vmatprep.subr.mxu0 0.0
        %1528 = vmatpush1.msra.mxu0 0.0
        %1529 = vmatprep.subr.mxu0 0.0
        %1530 = vmatpush1.msra.mxu0 0.0
        %1531 = vmatprep.subr.mxu0 0.0
        %1532 = vmatpush1.msra.mxu0 0.0
        %1533 = vmatprep.mubr.f32.mxu0 0.0
        %1534 = vmatmul.mubr.f32.gmra.mrb[0].mxu0 %v402
        %v1535 = vpop.f32.mrb[0].mxu0
        %v1536 = vadd.f32 0.0, %v1535
        %v1537 = vpop.f32.mrb[0].mxu0
        %v1538 = vadd.f32 0.0, %v1537
        %1539 = vmatprep.mubr.f32.mxu0 0.0
        %1540 = vmatmul.mubr.f32.gmra.mrb[0].mxu0 %v405
        %v1541 = vpop.f32.mrb[0].mxu0
        %v1542 = vadd.f32 0.0, %v1541
        %v1543 = vpop.f32.mrb[0].mxu0
        %v1544 = vadd.f32 0.0, %v1543
        %1545 = vmatprep.mubr.f32.mxu0 0.0
        %1546 = vmatmul.mubr.f32.gmra.mrb[0].mxu0 %v408
        %v1547 = vpop.f32.mrb[0].mxu0
        %v1548 = vadd.f32 0.0, %v1547
        %v1549 = vpop.f32.mrb[0].mxu0
        %v1550 = vadd.f32 0.0, %v1549
        %1551 = vmatprep.mubr.f32.mxu0 0.0
        %1552 = vmatmul.mubr.f32.gmra.mrb[0].mxu0 %v411
        %v1553 = vpop.f32.mrb[0].mxu0
        %v1554 = vadd.f32 0.0, %v1553
        %v1555 = vpop.f32.mrb[0].mxu0
        %v1556 = vadd.f32 0.0, %v1555
        %1557 = vmatprep.mubr.f32.mxu0 0.0
        %1558 = vmatmul.mubr.f32.gmra.mrb[0].mxu0 %v414
        %v1559 = vpop.f32.mrb[0].mxu0
        %v1560 = vadd.f32 0.0, %v1559
        %v1561 = vpop.f32.mrb[0].mxu0
        %v1562 = vadd.f32 0.0, %v1561
        %1563 = vmatprep.mubr.f32.mxu0 0.0
        %1564 = vmatmul.mubr.f32.gmra.mrb[0].mxu0 %v417
        %v1565 = vpop.f32.mrb[0].mxu0
        %v1566 = vadd.f32 0.0, %v1565
        %v1567 = vpop.f32.mrb[0].mxu0
        %v1568 = vadd.f32 0.0, %v1567
        %1569 = vmatprep.mubr.f32.mxu0 0.0
        %1570 = vmatmul.mubr.f32.gmra.mrb[0].mxu0 %v420
        %v1571 = vpop.f32.mrb[0].mxu0
        %v1572 = vadd.f32 0.0, %v1571
        %v1573 = vpop.f32.mrb[0].mxu0
        %v1574 = vadd.f32 0.0, %v1573
        %1575 = vmatprep.mubr.f32.mxu0 0.0
        %1576 = vmatmul.mubr.f32.gmra.mrb[0].mxu0 %v423
        %v1577 = vpop.f32.mrb[0].mxu0
        %v1578 = vadd.f32 0.0, %v1577
        %v1579 = vpop.f32.mrb[0].mxu0
        %v1580 = vadd.f32 0.0, %v1579
        %1581 = vmatprep.mubr.f32.mxu0 0.0
        %1582 = vmatmul.mubr.f32.gmra.mrb[0].mxu0 %v426
        %v1583 = vpop.f32.mrb[0].mxu0
        %v1584 = vadd.f32 0.0, %v1583
        %v1585 = vpop.f32.mrb[0].mxu0
        %v1586 = vadd.f32 0.0, %v1585
        %1587 = vmatprep.mubr.f32.mxu0 0.0
        %1588 = vmatmul.mubr.f32.gmra.mrb[0].mxu0 %v429
        %v1589 = vpop.f32.mrb[0].mxu0
        %v1590 = vadd.f32 0.0, %v1589
        %v1591 = vpop.f32.mrb[0].mxu0
        %v1592 = vadd.f32 0.0, %v1591
        %1593 = vmatprep.mubr.f32.mxu0 0.0
        %1594 = vmatmul.mubr.f32.gmra.mrb[0].mxu0 %v432
        %v1595 = vpop.f32.mrb[0].mxu0
        %v1596 = vadd.f32 0.0, %v1595
        %v1597 = vpop.f32.mrb[0].mxu0
        %v1598 = vadd.f32 0.0, %v1597
        %1599 = vmatprep.mubr.f32.mxu0 0.0
        %1600 = vmatmul.mubr.f32.gmra.mrb[0].mxu0 %v435
        %v1601 = vpop.f32.mrb[0].mxu0
        %v1602 = vadd.f32 0.0, %v1601
        %v1603 = vpop.f32.mrb[0].mxu0
        %v1604 = vadd.f32 0.0, %v1603
        %1605 = vmatprep.mubr.f32.mxu0 0.0
        %1606 = vmatmul.mubr.f32.gmra.mrb[0].mxu0 %v438
        %v1607 = vpop.f32.mrb[0].mxu0
        %v1608 = vadd.f32 0.0, %v1607
        %v1609 = vpop.f32.mrb[0].mxu0
        %v1610 = vadd.f32 0.0, %v1609
        %1611 = vmatprep.mubr.f32.mxu0 0.0
        %1612 = vmatmul.mubr.f32.gmra.mrb[0].mxu0 %v441
        %v1613 = vpop.f32.mrb[0].mxu0
        %v1614 = vadd.f32 0.0, %v1613
        %v1615 = vpop.f32.mrb[0].mxu0
        %v1616 = vadd.f32 0.0, %v1615
        %1617 = vmatprep.mubr.f32.mxu0 0.0
        %1618 = vmatmul.mubr.f32.gmra.mrb[0].mxu0 %v444
        %v1619 = vpop.f32.mrb[0].mxu0
        %v1620 = vadd.f32 0.0, %v1619
        %v1621 = vpop.f32.mrb[0].mxu0
        %v1622 = vadd.f32 0.0, %v1621
        %1623 = vmatprep.mubr.f32.mxu0 0.0
        %1624 = vmatmul.mubr.f32.gmra.mrb[0].mxu0 %v447
        %v1625 = vpop.f32.mrb[0].mxu0
        %v1626 = vadd.f32 0.0, %v1625
        %v1627 = vpop.f32.mrb[0].mxu0
        %v1628 = vadd.f32 0.0, %v1627
        %1629 = vmatprep.mubr.f32.mxu0 0.0
        %1630 = vmatmul.mubr.f32.gmra.mrb[0].mxu0 %v450
        %v1631 = vpop.f32.mrb[0].mxu0
        %v1632 = vadd.f32 0.0, %v1631
        %v1633 = vpop.f32.mrb[0].mxu0
        %v1634 = vadd.f32 0.0, %v1633
        %1635 = vmatprep.mubr.f32.mxu0 0.0
        %1636 = vmatmul.mubr.f32.gmra.mrb[0].mxu0 %v453
        %v1637 = vpop.f32.mrb[0].mxu0
        %v1638 = vadd.f32 0.0, %v1637
        %v1639 = vpop.f32.mrb[0].mxu0
        %v1640 = vadd.f32 0.0, %v1639
        %1641 = vmatprep.mubr.f32.mxu0 0.0
        %1642 = vmatmul.mubr.f32.gmra.mrb[0].mxu0 %v456
        %v1643 = vpop.f32.mrb[0].mxu0
        %v1644 = vadd.f32 0.0, %v1643
        %v1645 = vpop.f32.mrb[0].mxu0
        %v1646 = vadd.f32 0.0, %v1645
        %1647 = vmatprep.mubr.f32.mxu0 0.0
        %1648 = vmatmul.mubr.f32.gmra.mrb[0].mxu0 %v459
        %v1649 = vpop.f32.mrb[0].mxu0
        %v1650 = vadd.f32 0.0, %v1649
        %v1651 = vpop.f32.mrb[0].mxu0
        %v1652 = vadd.f32 0.0, %v1651
        %1653 = vmatprep.mubr.f32.mxu0 0.0
        %1654 = vmatmul.mubr.f32.gmra.mrb[0].mxu0 %v462
        %v1655 = vpop.f32.mrb[0].mxu0
        %v1656 = vadd.f32 0.0, %v1655
        %v1657 = vpop.f32.mrb[0].mxu0
        %v1658 = vadd.f32 0.0, %v1657
        %1659 = vmatprep.mubr.f32.mxu0 0.0
        %1660 = vmatmul.mubr.f32.gmra.mrb[0].mxu0 %v465
        %v1661 = vpop.f32.mrb[0].mxu0
        %v1662 = vadd.f32 0.0, %v1661
        %v1663 = vpop.f32.mrb[0].mxu0
        %v1664 = vadd.f32 0.0, %v1663
        %1665 = vmatprep.mubr.f32.mxu0 0.0
        %1666 = vmatmul.mubr.f32.gmra.mrb[0].mxu0 %v468
        %v1667 = vpop.f32.mrb[0].mxu0
        %v1668 = vadd.f32 0.0, %v1667
        %v1669 = vpop.f32.mrb[0].mxu0
        %v1670 = vadd.f32 0.0, %v1669
        %1671 = vmatprep.mubr.f32.mxu0 0.0
        %1672 = vmatmul.mubr.f32.gmra.mrb[0].mxu0 %v471
        %v1673 = vpop.f32.mrb[0].mxu0
        %v1674 = vadd.f32 0.0, %v1673
        %v1675 = vpop.f32.mrb[0].mxu0
        %v1676 = vadd.f32 0.0, %v1675
        %1677 = vmatprep.mubr.f32.mxu0 0.0
        %1678 = vmatmul.mubr.f32.gmra.mrb[0].mxu0 %v474
        %v1679 = vpop.f32.mrb[0].mxu0
        %v1680 = vadd.f32 0.0, %v1679
        %v1681 = vpop.f32.mrb[0].mxu0
        %v1682 = vadd.f32 0.0, %v1681
        %1683 = vmatprep.mubr.f32.mxu0 0.0
        %1684 = vmatmul.mubr.f32.gmra.mrb[0].mxu0 %v477
        %v1685 = vpop.f32.mrb[0].mxu0
        %v1686 = vadd.f32 0.0, %v1685
        %v1687 = vpop.f32.mrb[0].mxu0
        %v1688 = vadd.f32 0.0, %v1687
        %1689 = vmatprep.mubr.f32.mxu0 0.0
        %1690 = vmatmul.mubr.f32.gmra.mrb[0].mxu0 %v480
        %v1691 = vpop.f32.mrb[0].mxu0
        %v1692 = vadd.f32 0.0, %v1691
        %v1693 = vpop.f32.mrb[0].mxu0
        %v1694 = vadd.f32 0.0, %v1693
        %1695 = vmatprep.mubr.f32.mxu0 0.0
        %1696 = vmatmul.mubr.f32.gmra.mrb[0].mxu0 %v483
        %v1697 = vpop.f32.mrb[0].mxu0
        %v1698 = vadd.f32 0.0, %v1697
        %v1699 = vpop.f32.mrb[0].mxu0
        %v1700 = vadd.f32 0.0, %v1699
        %1701 = vdwg.mxu0
        %s1702 = sld [smem:[#allocation2 + $0x2]]
        %v1703 = vstv %s1702
        %v1704 = vmul.f32 %v1536, %v1703
        %v1705 = vmul.f32 %v1538, %v1703
        %v1706 = vmul.f32 %v1542, %v1703
        %v1707 = vmul.f32 %v1544, %v1703
        %v1708 = vmul.f32 %v1548, %v1703
        %v1709 = vmul.f32 %v1550, %v1703
        %v1710 = vmul.f32 %v1554, %v1703
        %v1711 = vmul.f32 %v1556, %v1703
        %v1712 = vmul.f32 %v1560, %v1703
        %v1713 = vmul.f32 %v1562, %v1703
        %v1714 = vmul.f32 %v1566, %v1703
        %v1715 = vmul.f32 %v1568, %v1703
        %v1716 = vmul.f32 %v1572, %v1703
        %v1717 = vmul.f32 %v1574, %v1703
        %v1718 = vmul.f32 %v1578, %v1703
        %v1719 = vmul.f32 %v1580, %v1703
        %v1720 = vmul.f32 %v1584, %v1703
        %v1721 = vmul.f32 %v1586, %v1703
        %v1722 = vmul.f32 %v1590, %v1703
        %v1723 = vmul.f32 %v1592, %v1703
        %v1724 = vmul.f32 %v1596, %v1703
        %v1725 = vmul.f32 %v1598, %v1703
        %v1726 = vmul.f32 %v1602, %v1703
        %v1727 = vmul.f32 %v1604, %v1703
        %v1728 = vmul.f32 %v1608, %v1703
        %v1729 = vmul.f32 %v1610, %v1703
        %v1730 = vmul.f32 %v1614, %v1703
        %v1731 = vmul.f32 %v1616, %v1703
        %v1732 = vmul.f32 %v1620, %v1703
        %v1733 = vmul.f32 %v1622, %v1703
        %v1734 = vmul.f32 %v1626, %v1703
        %v1735 = vmul.f32 %v1628, %v1703
        %v1736 = vmul.f32 %v1632, %v1703
        %v1737 = vmul.f32 %v1634, %v1703
        %v1738 = vmul.f32 %v1638, %v1703
        %v1739 = vmul.f32 %v1640, %v1703
        %v1740 = vmul.f32 %v1644, %v1703
        %v1741 = vmul.f32 %v1646, %v1703
        %v1742 = vmul.f32 %v1650, %v1703
        %v1743 = vmul.f32 %v1652, %v1703
        %v1744 = vmul.f32 %v1656, %v1703
        %v1745 = vmul.f32 %v1658, %v1703
        %v1746 = vmul.f32 %v1662, %v1703
        %v1747 = vmul.f32 %v1664, %v1703
        %v1748 = vmul.f32 %v1668, %v1703
        %v1749 = vmul.f32 %v1670, %v1703
        %v1750 = vmul.f32 %v1674, %v1703
        %v1751 = vmul.f32 %v1676, %v1703
        %v1752 = vmul.f32 %v1680, %v1703
        %v1753 = vmul.f32 %v1682, %v1703
        %v1754 = vmul.f32 %v1686, %v1703
        %v1755 = vmul.f32 %v1688, %v1703
        %v1756 = vmul.f32 %v1692, %v1703
        %v1757 = vmul.f32 %v1694, %v1703
        %v1758 = vmul.f32 %v1698, %v1703
        %v1759 = vmul.f32 %v1700, %v1703
        %s1760 = sld [smem:[#allocation5 + $0x2]]
        %v1761 = vstv %s1760
        %v1762 = vadd.f32 %v1704, %v1761
        %v1763 = vadd.f32 %v1705, %v1761
        %v1764 = vadd.f32 %v1706, %v1761
        %v1765 = vadd.f32 %v1707, %v1761
        %v1766 = vadd.f32 %v1708, %v1761
        %v1767 = vadd.f32 %v1709, %v1761
        %v1768 = vadd.f32 %v1710, %v1761
        %v1769 = vadd.f32 %v1711, %v1761
        %v1770 = vadd.f32 %v1712, %v1761
        %v1771 = vadd.f32 %v1713, %v1761
        %v1772 = vadd.f32 %v1714, %v1761
        %v1773 = vadd.f32 %v1715, %v1761
        %v1774 = vadd.f32 %v1716, %v1761
        %v1775 = vadd.f32 %v1717, %v1761
        %v1776 = vadd.f32 %v1718, %v1761
        %v1777 = vadd.f32 %v1719, %v1761
        %v1778 = vadd.f32 %v1720, %v1761
        %v1779 = vadd.f32 %v1721, %v1761
        %v1780 = vadd.f32 %v1722, %v1761
        %v1781 = vadd.f32 %v1723, %v1761
        %v1782 = vadd.f32 %v1724, %v1761
        %v1783 = vadd.f32 %v1725, %v1761
        %v1784 = vadd.f32 %v1726, %v1761
        %v1785 = vadd.f32 %v1727, %v1761
        %v1786 = vadd.f32 %v1728, %v1761
        %v1787 = vadd.f32 %v1729, %v1761
        %v1788 = vadd.f32 %v1730, %v1761
        %v1789 = vadd.f32 %v1731, %v1761
        %v1790 = vadd.f32 %v1732, %v1761
        %v1791 = vadd.f32 %v1733, %v1761
        %v1792 = vadd.f32 %v1734, %v1761
        %v1793 = vadd.f32 %v1735, %v1761
        %v1794 = vadd.f32 %v1736, %v1761
        %v1795 = vadd.f32 %v1737, %v1761
        %v1796 = vadd.f32 %v1738, %v1761
        %v1797 = vadd.f32 %v1739, %v1761
        %v1798 = vadd.f32 %v1740, %v1761
        %v1799 = vadd.f32 %v1741, %v1761
        %v1800 = vadd.f32 %v1742, %v1761
        %v1801 = vadd.f32 %v1743, %v1761
        %v1802 = vadd.f32 %v1744, %v1761
        %v1803 = vadd.f32 %v1745, %v1761
        %v1804 = vadd.f32 %v1746, %v1761
        %v1805 = vadd.f32 %v1747, %v1761
        %v1806 = vadd.f32 %v1748, %v1761
        %v1807 = vadd.f32 %v1749, %v1761
        %v1808 = vadd.f32 %v1750, %v1761
        %v1809 = vadd.f32 %v1751, %v1761
        %v1810 = vadd.f32 %v1752, %v1761
        %v1811 = vadd.f32 %v1753, %v1761
        %v1812 = vadd.f32 %v1754, %v1761
        %v1813 = vadd.f32 %v1755, %v1761
        %v1814 = vadd.f32 %v1756, %v1761
        %v1815 = vadd.f32 %v1757, %v1761
        %v1816 = vadd.f32 %v1758, %v1761
        %v1817 = vadd.f32 %v1759, %v1761
        %s1818 = scalar_lea.vmem %s282, 896
        %1819 = vst [vmem:[%s1818] sm:$0xff] %v1762
        %1820 = vst.msk [vmem:[%s1818 + $0x8] sm:$0xff] %vm835, %v1763
        %1821 = vst [vmem:[%s1818 + $0x10] sm:$0xff] %v1764
        %1822 = vst.msk [vmem:[%s1818 + $0x18] sm:$0xff] %vm835, %v1765
        %1823 = vst [vmem:[%s1818 + $0x20] sm:$0xff] %v1766
        %1824 = vst.msk [vmem:[%s1818 + $0x28] sm:$0xff] %vm835, %v1767
        %1825 = vst [vmem:[%s1818 + $0x30] sm:$0xff] %v1768
        %1826 = vst.msk [vmem:[%s1818 + $0x38] sm:$0xff] %vm835, %v1769
        %1827 = vst [vmem:[%s1818 + $0x40] sm:$0xff] %v1770
        %1828 = vst.msk [vmem:[%s1818 + $0x48] sm:$0xff] %vm835, %v1771
        %1829 = vst [vmem:[%s1818 + $0x50] sm:$0xff] %v1772
        %1830 = vst.msk [vmem:[%s1818 + $0x58] sm:$0xff] %vm835, %v1773
        %1831 = vst [vmem:[%s1818 + $0x60] sm:$0xff] %v1774
        %1832 = vst.msk [vmem:[%s1818 + $0x68] sm:$0xff] %vm835, %v1775
        %1833 = vst [vmem:[%s1818 + $0x70] sm:$0xff] %v1776
        %1834 = vst.msk [vmem:[%s1818 + $0x78] sm:$0xff] %vm835, %v1777
        %1835 = vst [vmem:[%s1818 + $0x80] sm:$0xff] %v1778
        %1836 = vst.msk [vmem:[%s1818 + $0x88] sm:$0xff] %vm835, %v1779
        %1837 = vst [vmem:[%s1818 + $0x90] sm:$0xff] %v1780
        %1838 = vst.msk [vmem:[%s1818 + $0x98] sm:$0xff] %vm835, %v1781
        %1839 = vst [vmem:[%s1818 + $0xa0] sm:$0xff] %v1782
        %1840 = vst.msk [vmem:[%s1818 + $0xa8] sm:$0xff] %vm835, %v1783
        %1841 = vst [vmem:[%s1818 + $0xb0] sm:$0xff] %v1784
        %1842 = vst.msk [vmem:[%s1818 + $0xb8] sm:$0xff] %vm835, %v1785
        %1843 = vst [vmem:[%s1818 + $0xc0] sm:$0xff] %v1786
        %1844 = vst.msk [vmem:[%s1818 + $0xc8] sm:$0xff] %vm835, %v1787
        %1845 = vst [vmem:[%s1818 + $0xd0] sm:$0xff] %v1788
        %1846 = vst.msk [vmem:[%s1818 + $0xd8] sm:$0xff] %vm835, %v1789
        %1847 = vst [vmem:[%s1818 + $0xe0] sm:$0xff] %v1790
        %1848 = vst.msk [vmem:[%s1818 + $0xe8] sm:$0xff] %vm835, %v1791
        %1849 = vst [vmem:[%s1818 + $0xf0] sm:$0xff] %v1792
        %1850 = vst.msk [vmem:[%s1818 + $0xf8] sm:$0xff] %vm835, %v1793
        %1851 = vst [vmem:[%s1818 + $0x100] sm:$0xff] %v1794
        %1852 = vst.msk [vmem:[%s1818 + $0x108] sm:$0xff] %vm835, %v1795
        %1853 = vst [vmem:[%s1818 + $0x110] sm:$0xff] %v1796
        %1854 = vst.msk [vmem:[%s1818 + $0x118] sm:$0xff] %vm835, %v1797
        %1855 = vst [vmem:[%s1818 + $0x120] sm:$0xff] %v1798
        %1856 = vst.msk [vmem:[%s1818 + $0x128] sm:$0xff] %vm835, %v1799
        %1857 = vst [vmem:[%s1818 + $0x130] sm:$0xff] %v1800
        %1858 = vst.msk [vmem:[%s1818 + $0x138] sm:$0xff] %vm835, %v1801
        %1859 = vst [vmem:[%s1818 + $0x140] sm:$0xff] %v1802
        %1860 = vst.msk [vmem:[%s1818 + $0x148] sm:$0xff] %vm835, %v1803
        %1861 = vst [vmem:[%s1818 + $0x150] sm:$0xff] %v1804
        %1862 = vst.msk [vmem:[%s1818 + $0x158] sm:$0xff] %vm835, %v1805
        %1863 = vst [vmem:[%s1818 + $0x160] sm:$0xff] %v1806
        %1864 = vst.msk [vmem:[%s1818 + $0x168] sm:$0xff] %vm835, %v1807
        %1865 = vst [vmem:[%s1818 + $0x170] sm:$0xff] %v1808
        %1866 = vst.msk [vmem:[%s1818 + $0x178] sm:$0xff] %vm835, %v1809
        %1867 = vst [vmem:[%s1818 + $0x180] sm:$0xff] %v1810
        %1868 = vst.msk [vmem:[%s1818 + $0x188] sm:$0xff] %vm835, %v1811
        %1869 = vst [vmem:[%s1818 + $0x190] sm:$0xff] %v1812
        %1870 = vst.msk [vmem:[%s1818 + $0x198] sm:$0xff] %vm835, %v1813
        %1871 = vst [vmem:[%s1818 + $0x1a0] sm:$0xff] %v1814
        %1872 = vst.msk [vmem:[%s1818 + $0x1a8] sm:$0xff] %vm835, %v1815
        %1873 = vst [vmem:[%s1818 + $0x1b0] sm:$0xff] %v1816
        %1874 = vst.msk [vmem:[%s1818 + $0x1b8] sm:$0xff] %vm835, %v1817
        %p1875 = scmp.lt.s32.totalorder %s22, 1
        %s1876 = scalar_select %p1875, %s22, 1
        %s1877 = smul.addr %s1876, 168
        %s1878 = smul.addr %s1877, 8
        %s1879 = scalar_lea.vmem %s5, %s1878
        // Predicated region
        $region57: #{clip_forward.2} parent=39 // pred_check
          %p1880 = pneg %p150
        $region58: #{clip_forward.2} parent=39 // pred_check_branch
          %1882 = sbr.rel (%p1880) target = $region60
        $region59: #{clip_forward.2} parent=39 // pred_region
          _
        $region60: #{clip_forward.2} parent=39 // pred_fallthru
          _
      $region40: #{clip_forward.2} parent=5 // pred_fallthru
        _
      %p1883 = scmp.le.s32.totalorder 2, %s17
      // Predicated region
      $region61: #{clip_forward.2} parent=5 // pred_check
        %p1884 = pneg %p1883
      $region62: #{clip_forward.2} parent=5 // pred_check_branch
        %1886 = sbr.rel (%p1884) target = $region64
      $region63: #{clip_forward.2} parent=5 // pred_region
        %s1887 = ssub.s32 %s17, 2
        // Predicated region
        $region65: #{clip_forward.2} parent=63 // pred_check
          %p1888 = pneg %p156
        $region66: #{clip_forward.2} parent=63 // pred_check_branch
          %1890 = sbr.rel (%p1888) target = $region68
        $region67: #{clip_forward.2} parent=63 // pred_region
          %p1891 = scmp.lt.s32.totalorder %s23, 1
          %s1892 = scalar_select %p1891, %s23, 1
          %s1893 = smul.addr %s1892, 168
          %s1894 = smul.addr %s1893, 8
          %s1895 = scalar_lea.vmem %s5, %s1894
        $region68: #{clip_forward.2} parent=63 // pred_fallthru
          _
      $region64: #{clip_forward.2} parent=5 // pred_fallthru
        _
    $region6: #{clip_forward.2} parent=1 // loop_footer
      %s21 = sadd.s32 1, %s17
    $region7: #{clip_forward.2} parent=1 // loop_footer_branch
      %16 = sbr.rel target = $region3
    $region8: #{clip_forward.2} parent=1 // loop_exit
      _
    %1896 = vsyncpa [#allocation3], 1
    %s1897 = scalar_lea.sflag [#allocation3], 1
    %1898 = vsyncpa %s1897, 1
    %1899 = vsyncpa [#allocation9], 1
    %1900 = vsyncpa [#allocation4], 1
    %s1901 = scalar_lea.sflag [#allocation4], 1
    %1902 = vsyncpa %s1901, 1
    %1903 = vsyncpa [#allocation6], 1

// kernel: clip_forward.3
$region0: #{clip_forward.3}
  #allocation0 [shape = 'u32[]', space=smem, size = 0x4, offset = 0x4, fixed_abs, tag = 'smem constant byte address 0x4 - core index']
  #allocation1 [shape = 'u32[144,128]{1,0:T(1,128)}', space=vmem, size = 0x12000, scoped, tag = 'internal scratch']
  #allocation2 [shape = 'f32[1]{0:T(128)S(6)}', space=smem, size = 0x200, scoped, tag = 'scoped memory for clip_forward.3']
  %s0 = inlined_call_operand.<no memory space> [shape: f32[1], index: 0, kind: input, shape index: {}]
  %s1 = inlined_call_operand.vmem [shape: bf16[98,3072], index: 1, kind: input, shape index: {}]
  %s2 = inlined_call_operand.vmem [shape: bf16[3072,128], index: 2, kind: input, shape index: {}]
  %s3 = inlined_call_operand.vmem [shape: f32[2,98], index: 3, kind: input, shape index: {}]
  %s4 = inlined_call_operand.vmem [shape: f32[2,64], index: 4, kind: input, shape index: {}]
  %s5 = inlined_call_operand.vmem [shape: f32[64,128], index: 5, kind: input, shape index: {}]
  %s6 = inlined_call_operand.hbm [shape: f32[2,2], index: 6, kind: output, shape index: {}]
  %s7 = sld [smem:[#allocation0]]
  $region34: #{clip_forward.3} parent=0
    _
  %s9 = ssub.s32 1, %s7
  %s10 = scalar_select 0, %s9, %s7
  %11 = sst [smem:[#allocation2]] %s0
  $region1: #{clip_forward.3} parent=0
    #allocation3 [shape = 'u8[1024]{0}', space=vmem, size = 0x400, scoped, tag = 'output window, operand 0, single buffered']
    #allocation4 [shape = 's32[1]{0}', space=sflag, size = 0x4, scoped, tag = 'scoped memory for clip_forward.3']
    %12 = vsyncpa [#allocation4], 0
    // Predicated region
    $region2: #{clip_forward.3} parent=1 // pred_check
      _
    $region3: #{clip_forward.3} parent=1 // pred_check_branch
      %14 = sbr.rel (0) target = $region5
    $region4: #{clip_forward.3} parent=1 // pred_region
      _
    $region5: #{clip_forward.3} parent=1 // pred_fallthru
      _
    // Predicated region
    $region6: #{clip_forward.3} parent=1 // pred_check
      _
    $region7: #{clip_forward.3} parent=1 // pred_check_branch
      %16 = sbr.rel (0) target = $region9
    $region8: #{clip_forward.3} parent=1 // pred_region
      _
    $region9: #{clip_forward.3} parent=1 // pred_fallthru
      _
    // Predicated region
    $region10: #{clip_forward.3} parent=1 // pred_check
      _
    $region11: #{clip_forward.3} parent=1 // pred_check_branch
      %18 = sbr.rel (0) target = $region13
    $region12: #{clip_forward.3} parent=1 // pred_region
      _
    $region13: #{clip_forward.3} parent=1 // pred_fallthru
      _
    // Predicated region
    $region14: #{clip_forward.3} parent=1 // pred_check
      _
    $region15: #{clip_forward.3} parent=1 // pred_check_branch
      %20 = sbr.rel (0) target = $region17
    $region16: #{clip_forward.3} parent=1 // pred_region
      _
    $region17: #{clip_forward.3} parent=1 // pred_fallthru
      _
    // Predicated region
    $region18: #{clip_forward.3} parent=1 // pred_check
      _
    $region19: #{clip_forward.3} parent=1 // pred_check_branch
      %22 = sbr.rel (0) target = $region21
    $region20: #{clip_forward.3} parent=1 // pred_region
      _
    $region21: #{clip_forward.3} parent=1 // pred_fallthru
      _
    // Predicated region
    $region22: #{clip_forward.3} parent=1 // pred_check
      _
    $region23: #{clip_forward.3} parent=1 // pred_check_branch
      %24 = sbr.rel (0) target = $region25
    $region24: #{clip_forward.3} parent=1 // pred_region
      _
    $region25: #{clip_forward.3} parent=1 // pred_fallthru
      _
    %v26 = vld [vmem:[%s1] sm:$0xff]
    %v27 = vld [vmem:[%s1 + $0x8] sm:$0xff]
    %v28 = vld [vmem:[%s1 + $0x10] sm:$0xff]
    %v29 = vld [vmem:[%s1 + $0x18] sm:$0xff]
    %v30 = vld [vmem:[%s1 + $0x20] sm:$0xff]
    %v31 = vld [vmem:[%s1 + $0x28] sm:$0xff]
    %v32 = vld [vmem:[%s1 + $0x30] sm:$0xff]
    %v33 = vld [vmem:[%s1 + $0x38] sm:$0xff]
    %v34 = vld [vmem:[%s1 + $0x40] sm:$0xff]
    %v35 = vld [vmem:[%s1 + $0x48] sm:$0xff]
    %v36 = vld [vmem:[%s1 + $0x50] sm:$0xff]
    %v37 = vld [vmem:[%s1 + $0x58] sm:$0xff]
    %v38 = vld [vmem:[%s1 + $0x60] sm:$0xff]
    %v39 = vld [vmem:[%s1 + $0x68] sm:$0xff]
    %v40 = vld [vmem:[%s1 + $0x70] sm:$0xff]
    %v41 = vld [vmem:[%s1 + $0x78] sm:$0xff]
    %v42 = vld [vmem:[%s1 + $0x80] sm:$0xff]
    %v43 = vld [vmem:[%s1 + $0x88] sm:$0xff]
    %v44 = vld [vmem:[%s1 + $0x90] sm:$0xff]
    %v45 = vld [vmem:[%s1 + $0x98] sm:$0xff]
    %v46 = vld [vmem:[%s1 + $0xa0] sm:$0xff]
    %v47 = vld [vmem:[%s1 + $0xa8] sm:$0xff]
    %v48 = vld [vmem:[%s1 + $0xb0] sm:$0xff]
    %v49 = vld [vmem:[%s1 + $0xb8] sm:$0xff]
    %v50 = vld [vmem:[%s1 + $0xc0] sm:$0xff]
    %v51 = vld [vmem:[%s1 + $0xc8] sm:$0xff]
    %v52 = vld [vmem:[%s1 + $0xd0] sm:$0xff]
    %v53 = vld [vmem:[%s1 + $0xd8] sm:$0xff]
    %v54 = vld [vmem:[%s1 + $0xe0] sm:$0xff]
    %v55 = vld [vmem:[%s1 + $0xe8] sm:$0xff]
    %v56 = vld [vmem:[%s1 + $0xf0] sm:$0xff]
    %v57 = vld [vmem:[%s1 + $0xf8] sm:$0xff]
    %v58 = vld [vmem:[%s1 + $0x100] sm:$0xff]
    %v59 = vld [vmem:[%s1 + $0x108] sm:$0xff]
    %v60 = vld [vmem:[%s1 + $0x110] sm:$0xff]
    %v61 = vld [vmem:[%s1 + $0x118] sm:$0xff]
    %v62 = vld [vmem:[%s1 + $0x120] sm:$0xff]
    %v63 = vld [vmem:[%s1 + $0x128] sm:$0xff]
    %v64 = vld [vmem:[%s1 + $0x130] sm:$0xff]
    %v65 = vld [vmem:[%s1 + $0x138] sm:$0xff]
    %v66 = vld [vmem:[%s1 + $0x140] sm:$0xff]
    %v67 = vld [vmem:[%s1 + $0x148] sm:$0xff]
    %v68 = vld [vmem:[%s1 + $0x150] sm:$0xff]
    %v69 = vld [vmem:[%s1 + $0x158] sm:$0xff]
    %v70 = vld [vmem:[%s1 + $0x160] sm:$0xff]
    %v71 = vld [vmem:[%s1 + $0x168] sm:$0xff]
    %v72 = vld [vmem:[%s1 + $0x170] sm:$0xff]
    %v73 = vld [vmem:[%s1 + $0x178] sm:$0xff]
    %v74 = vld [vmem:[%s1 + $0x180] sm:$0xff]
    %v75 = vld [vmem:[%s1 + $0x188] sm:$0xff]
    %v76 = vld [vmem:[%s1 + $0x190] sm:$0xff]
    %v77 = vld [vmem:[%s1 + $0x198] sm:$0xff]
    %v78 = vld [vmem:[%s1 + $0x1a0] sm:$0xff]
    %v79 = vld [vmem:[%s1 + $0x1a8] sm:$0xff]
    %v80 = vld [vmem:[%s1 + $0x1b0] sm:$0xff]
    %v81 = vld [vmem:[%s1 + $0x1b8] sm:$0xff]
    %v82 = vld [vmem:[%s1 + $0x1c0] sm:$0xff]
    %v83 = vld [vmem:[%s1 + $0x1c8] sm:$0xff]
    %v84 = vld [vmem:[%s1 + $0x1d0] sm:$0xff]
    %v85 = vld [vmem:[%s1 + $0x1d8] sm:$0xff]
    %v86 = vld [vmem:[%s1 + $0x1e0] sm:$0xff]
    %v87 = vld [vmem:[%s1 + $0x1e8] sm:$0xff]
    %v88 = vld [vmem:[%s1 + $0x1f0] sm:$0xff]
    %v89 = vld [vmem:[%s1 + $0x1f8] sm:$0xff]
    %v90 = vld [vmem:[%s1 + $0x200] sm:$0xff]
    %v91 = vld [vmem:[%s1 + $0x208] sm:$0xff]
    %v92 = vld [vmem:[%s1 + $0x210] sm:$0xff]
    %v93 = vld [vmem:[%s1 + $0x218] sm:$0xff]
    %v94 = vld [vmem:[%s1 + $0x220] sm:$0xff]
    %v95 = vld [vmem:[%s1 + $0x228] sm:$0xff]
    %v96 = vld [vmem:[%s1 + $0x230] sm:$0xff]
    %v97 = vld [vmem:[%s1 + $0x238] sm:$0xff]
    %v98 = vld [vmem:[%s1 + $0x240] sm:$0xff]
    %v99 = vld [vmem:[%s1 + $0x248] sm:$0xff]
    %v100 = vld [vmem:[%s1 + $0x250] sm:$0xff]
    %v101 = vld [vmem:[%s1 + $0x258] sm:$0xff]
    %v102 = vld [vmem:[%s1 + $0x260] sm:$0xff]
    %v103 = vld [vmem:[%s1 + $0x268] sm:$0xff]
    %v104 = vld [vmem:[%s1 + $0x270] sm:$0xff]
    %v105 = vld [vmem:[%s1 + $0x278] sm:$0xff]
    %v106 = vld [vmem:[%s1 + $0x280] sm:$0xff]
    %v107 = vld [vmem:[%s1 + $0x288] sm:$0xff]
    %v108 = vld [vmem:[%s1 + $0x290] sm:$0xff]
    %v109 = vld [vmem:[%s1 + $0x298] sm:$0xff]
    %v110 = vld [vmem:[%s1 + $0x2a0] sm:$0xff]
    %v111 = vld [vmem:[%s1 + $0x2a8] sm:$0xff]
    %v112 = vld [vmem:[%s1 + $0x2b0] sm:$0xff]
    %v113 = vld [vmem:[%s1 + $0x2b8] sm:$0xff]
    %v114 = vld [vmem:[%s1 + $0x2c0] sm:$0xff]
    %v115 = vld [vmem:[%s1 + $0x2c8] sm:$0xff]
    %v116 = vld [vmem:[%s1 + $0x2d0] sm:$0xff]
    %v117 = vld [vmem:[%s1 + $0x2d8] sm:$0xff]
    %v118 = vld [vmem:[%s1 + $0x2e0] sm:$0xff]
    %v119 = vld [vmem:[%s1 + $0x2e8] sm:$0xff]
    %v120 = vld [vmem:[%s1 + $0x2f0] sm:$0xff]
    %v121 = vld [vmem:[%s1 + $0x2f8] sm:$0xff]
    %v122 = vld [vmem:[%s1 + $0x300] sm:$0xff]
    %v123 = vld [vmem:[%s1 + $0x308] sm:$0xff]
    %v124 = vld [vmem:[%s1 + $0x310] sm:$0xff]
    %v125 = vld [vmem:[%s1 + $0x318] sm:$0xff]
    %v126 = vld [vmem:[%s1 + $0x320] sm:$0xff]
    %v127 = vld [vmem:[%s1 + $0x328] sm:$0xff]
    %v128 = vld [vmem:[%s1 + $0x330] sm:$0xff]
    %v129 = vld [vmem:[%s1 + $0x338] sm:$0xff]
    %v130 = vld [vmem:[%s1 + $0x340] sm:$0xff]
    %v131 = vld [vmem:[%s1 + $0x348] sm:$0xff]
    %v132 = vld [vmem:[%s1 + $0x350] sm:$0xff]
    %v133 = vld [vmem:[%s1 + $0x358] sm:$0xff]
    %v134 = vld [vmem:[%s1 + $0x360] sm:$0xff]
    %v135 = vld [vmem:[%s1 + $0x368] sm:$0xff]
    %v136 = vld [vmem:[%s1 + $0x370] sm:$0xff]
    %v137 = vld [vmem:[%s1 + $0x378] sm:$0xff]
    %v138 = vld [vmem:[%s1 + $0x380] sm:$0xff]
    %v139 = vld [vmem:[%s1 + $0x388] sm:$0xff]
    %v140 = vld [vmem:[%s1 + $0x390] sm:$0xff]
    %v141 = vld [vmem:[%s1 + $0x398] sm:$0xff]
    %v142 = vld [vmem:[%s1 + $0x3a0] sm:$0xff]
    %v143 = vld [vmem:[%s1 + $0x3a8] sm:$0xff]
    %v144 = vld [vmem:[%s1 + $0x3b0] sm:$0xff]
    %v145 = vld [vmem:[%s1 + $0x3b8] sm:$0xff]
    %v146 = vld [vmem:[%s1 + $0x3c0] sm:$0xff]
    %v147 = vld [vmem:[%s1 + $0x3c8] sm:$0xff]
    %v148 = vld [vmem:[%s1 + $0x3d0] sm:$0xff]
    %v149 = vld [vmem:[%s1 + $0x3d8] sm:$0xff]
    %v150 = vld [vmem:[%s1 + $0x3e0] sm:$0xff]
    %v151 = vld [vmem:[%s1 + $0x3e8] sm:$0xff]
    %v152 = vld [vmem:[%s1 + $0x3f0] sm:$0xff]
    %v153 = vld [vmem:[%s1 + $0x3f8] sm:$0xff]
    %v154 = vld [vmem:[%s1 + $0x400] sm:$0xff]
    %v155 = vld [vmem:[%s1 + $0x408] sm:$0xff]
    %v156 = vld [vmem:[%s1 + $0x410] sm:$0xff]
    %v157 = vld [vmem:[%s1 + $0x418] sm:$0xff]
    %v158 = vld [vmem:[%s1 + $0x420] sm:$0xff]
    %v159 = vld [vmem:[%s1 + $0x428] sm:$0xff]
    %v160 = vld [vmem:[%s1 + $0x430] sm:$0xff]
    %v161 = vld [vmem:[%s1 + $0x438] sm:$0xff]
    %v162 = vld [vmem:[%s1 + $0x440] sm:$0xff]
    %v163 = vld [vmem:[%s1 + $0x448] sm:$0xff]
    %v164 = vld [vmem:[%s1 + $0x450] sm:$0xff]
    %v165 = vld [vmem:[%s1 + $0x458] sm:$0xff]
    %v166 = vld [vmem:[%s1 + $0x460] sm:$0xff]
    %v167 = vld [vmem:[%s1 + $0x468] sm:$0xff]
    %v168 = vld [vmem:[%s1 + $0x470] sm:$0xff]
    %v169 = vld [vmem:[%s1 + $0x478] sm:$0xff]
    %v170 = vld [vmem:[%s1 + $0x480] sm:$0x11]
    %v171 = vld [vmem:[%s1 + $0x488] sm:$0x11]
    %v172 = vld [vmem:[%s1 + $0x490] sm:$0x11]
    %v173 = vld [vmem:[%s1 + $0x498] sm:$0x11]
    %v174 = vld [vmem:[%s1 + $0x4a0] sm:$0x11]
    %v175 = vld [vmem:[%s1 + $0x4a8] sm:$0x11]
    %v176 = vld [vmem:[%s1 + $0x4b0] sm:$0x11]
    %v177 = vld [vmem:[%s1 + $0x4b8] sm:$0x11]
    %v178 = vld [vmem:[%s1 + $0x4c0] sm:$0x11]
    %v179 = vld [vmem:[%s1 + $0x4c8] sm:$0x11]
    %v180 = vld [vmem:[%s1 + $0x4d0] sm:$0x11]
    %v181 = vld [vmem:[%s1 + $0x4d8] sm:$0x11]
    %v182 = vld [vmem:[%s2] sm:$0xf]
    %v183 = vld [vmem:[%s2 + $0x4] sm:$0xf]
    %v184 = vld [vmem:[%s2 + $0x8] sm:$0xf]
    %v185 = vld [vmem:[%s2 + $0xc] sm:$0xf]
    %v186 = vld [vmem:[%s2 + $0x10] sm:$0xf]
    %v187 = vld [vmem:[%s2 + $0x14] sm:$0xf]
    %v188 = vld [vmem:[%s2 + $0x18] sm:$0xf]
    %v189 = vld [vmem:[%s2 + $0x1c] sm:$0xf]
    %v190 = vld [vmem:[%s2 + $0x20] sm:$0xf]
    %v191 = vld [vmem:[%s2 + $0x24] sm:$0xf]
    %v192 = vld [vmem:[%s2 + $0x28] sm:$0xf]
    %v193 = vld [vmem:[%s2 + $0x2c] sm:$0xf]
    %v194 = vld [vmem:[%s2 + $0x30] sm:$0xf]
    %v195 = vld [vmem:[%s2 + $0x34] sm:$0xf]
    %v196 = vld [vmem:[%s2 + $0x38] sm:$0xf]
    %v197 = vld [vmem:[%s2 + $0x3c] sm:$0xf]
    %v198 = vld [vmem:[%s2 + $0x40] sm:$0xf]
    %v199 = vld [vmem:[%s2 + $0x44] sm:$0xf]
    %v200 = vld [vmem:[%s2 + $0x48] sm:$0xf]
    %v201 = vld [vmem:[%s2 + $0x4c] sm:$0xf]
    %v202 = vld [vmem:[%s2 + $0x50] sm:$0xf]
    %v203 = vld [vmem:[%s2 + $0x54] sm:$0xf]
    %v204 = vld [vmem:[%s2 + $0x58] sm:$0xf]
    %v205 = vld [vmem:[%s2 + $0x5c] sm:$0xf]
    %v206 = vld [vmem:[%s2 + $0x60] sm:$0xf]
    %v207 = vld [vmem:[%s2 + $0x64] sm:$0xf]
    %v208 = vld [vmem:[%s2 + $0x68] sm:$0xf]
    %v209 = vld [vmem:[%s2 + $0x6c] sm:$0xf]
    %v210 = vld [vmem:[%s2 + $0x70] sm:$0xf]
    %v211 = vld [vmem:[%s2 + $0x74] sm:$0xf]
    %v212 = vld [vmem:[%s2 + $0x78] sm:$0xf]
    %v213 = vld [vmem:[%s2 + $0x7c] sm:$0xf]
    %v214 = vld [vmem:[%s2 + $0x80] sm:$0xf]
    %v215 = vld [vmem:[%s2 + $0x84] sm:$0xf]
    %v216 = vld [vmem:[%s2 + $0x88] sm:$0xf]
    %v217 = vld [vmem:[%s2 + $0x8c] sm:$0xf]
    %v218 = vld [vmem:[%s2 + $0x90] sm:$0xf]
    %v219 = vld [vmem:[%s2 + $0x94] sm:$0xf]
    %v220 = vld [vmem:[%s2 + $0x98] sm:$0xf]
    %v221 = vld [vmem:[%s2 + $0x9c] sm:$0xf]
    %v222 = vld [vmem:[%s2 + $0xa0] sm:$0xf]
    %v223 = vld [vmem:[%s2 + $0xa4] sm:$0xf]
    %v224 = vld [vmem:[%s2 + $0xa8] sm:$0xf]
    %v225 = vld [vmem:[%s2 + $0xac] sm:$0xf]
    %v226 = vld [vmem:[%s2 + $0xb0] sm:$0xf]
    %v227 = vld [vmem:[%s2 + $0xb4] sm:$0xf]
    %v228 = vld [vmem:[%s2 + $0xb8] sm:$0xf]
    %v229 = vld [vmem:[%s2 + $0xbc] sm:$0xf]
    %v230 = vld [vmem:[%s2 + $0xc0] sm:$0xf]
    %v231 = vld [vmem:[%s2 + $0xc4] sm:$0xf]
    %v232 = vld [vmem:[%s2 + $0xc8] sm:$0xf]
    %v233 = vld [vmem:[%s2 + $0xcc] sm:$0xf]
    %v234 = vld [vmem:[%s2 + $0xd0] sm:$0xf]
    %v235 = vld [vmem:[%s2 + $0xd4] sm:$0xf]
    %v236 = vld [vmem:[%s2 + $0xd8] sm:$0xf]
    %v237 = vld [vmem:[%s2 + $0xdc] sm:$0xf]
    %v238 = vld [vmem:[%s2 + $0xe0] sm:$0xf]
    %v239 = vld [vmem:[%s2 + $0xe4] sm:$0xf]
    %v240 = vld [vmem:[%s2 + $0xe8] sm:$0xf]
    %v241 = vld [vmem:[%s2 + $0xec] sm:$0xf]
    %v242 = vld [vmem:[%s2 + $0xf0] sm:$0xf]
    %v243 = vld [vmem:[%s2 + $0xf4] sm:$0xf]
    %v244 = vld [vmem:[%s2 + $0xf8] sm:$0xf]
    %v245 = vld [vmem:[%s2 + $0xfc] sm:$0xf]
    %v246 = vld [vmem:[%s2 + $0x100] sm:$0xf]
    %v247 = vld [vmem:[%s2 + $0x104] sm:$0xf]
    %v248 = vld [vmem:[%s2 + $0x108] sm:$0xf]
    %v249 = vld [vmem:[%s2 + $0x10c] sm:$0xf]
    %v250 = vld [vmem:[%s2 + $0x110] sm:$0xf]
    %v251 = vld [vmem:[%s2 + $0x114] sm:$0xf]
    %v252 = vld [vmem:[%s2 + $0x118] sm:$0xf]
    %v253 = vld [vmem:[%s2 + $0x11c] sm:$0xf]
    %v254 = vld [vmem:[%s2 + $0x120] sm:$0xf]
    %v255 = vld [vmem:[%s2 + $0x124] sm:$0xf]
    %v256 = vld [vmem:[%s2 + $0x128] sm:$0xf]
    %v257 = vld [vmem:[%s2 + $0x12c] sm:$0xf]
    %v258 = vld [vmem:[%s2 + $0x130] sm:$0xf]
    %v259 = vld [vmem:[%s2 + $0x134] sm:$0xf]
    %v260 = vld [vmem:[%s2 + $0x138] sm:$0xf]
    %v261 = vld [vmem:[%s2 + $0x13c] sm:$0xf]
    %v262 = vld [vmem:[%s2 + $0x140] sm:$0xf]
    %v263 = vld [vmem:[%s2 + $0x144] sm:$0xf]
    %v264 = vld [vmem:[%s2 + $0x148] sm:$0xf]
    %v265 = vld [vmem:[%s2 + $0x14c] sm:$0xf]
    %v266 = vld [vmem:[%s2 + $0x150] sm:$0xf]
    %v267 = vld [vmem:[%s2 + $0x154] sm:$0xf]
    %v268 = vld [vmem:[%s2 + $0x158] sm:$0xf]
    %v269 = vld [vmem:[%s2 + $0x15c] sm:$0xf]
    %v270 = vld [vmem:[%s2 + $0x160] sm:$0xf]
    %v271 = vld [vmem:[%s2 + $0x164] sm:$0xf]
    %v272 = vld [vmem:[%s2 + $0x168] sm:$0xf]
    %v273 = vld [vmem:[%s2 + $0x16c] sm:$0xf]
    %v274 = vld [vmem:[%s2 + $0x170] sm:$0xf]
    %v275 = vld [vmem:[%s2 + $0x174] sm:$0xf]
    %v276 = vld [vmem:[%s2 + $0x178] sm:$0xf]
    %v277 = vld [vmem:[%s2 + $0x17c] sm:$0xf]
    %v278 = vld [vmem:[%s2 + $0x180] sm:$0xf]
    %v279 = vld [vmem:[%s2 + $0x184] sm:$0xf]
    %v280 = vld [vmem:[%s2 + $0x188] sm:$0xf]
    %v281 = vld [vmem:[%s2 + $0x18c] sm:$0xf]
    %v282 = vld [vmem:[%s2 + $0x190] sm:$0xf]
    %v283 = vld [vmem:[%s2 + $0x194] sm:$0xf]
    %v284 = vld [vmem:[%s2 + $0x198] sm:$0xf]
    %v285 = vld [vmem:[%s2 + $0x19c] sm:$0xf]
    %v286 = vld [vmem:[%s2 + $0x1a0] sm:$0xf]
    %v287 = vld [vmem:[%s2 + $0x1a4] sm:$0xf]
    %v288 = vld [vmem:[%s2 + $0x1a8] sm:$0xf]
    %v289 = vld [vmem:[%s2 + $0x1ac] sm:$0xf]
    %v290 = vld [vmem:[%s2 + $0x1b0] sm:$0xf]
    %v291 = vld [vmem:[%s2 + $0x1b4] sm:$0xf]
    %v292 = vld [vmem:[%s2 + $0x1b8] sm:$0xf]
    %v293 = vld [vmem:[%s2 + $0x1bc] sm:$0xf]
    %v294 = vld [vmem:[%s2 + $0x1c0] sm:$0xf]
    %v295 = vld [vmem:[%s2 + $0x1c4] sm:$0xf]
    %v296 = vld [vmem:[%s2 + $0x1c8] sm:$0xf]
    %v297 = vld [vmem:[%s2 + $0x1cc] sm:$0xf]
    %v298 = vld [vmem:[%s2 + $0x1d0] sm:$0xf]
    %v299 = vld [vmem:[%s2 + $0x1d4] sm:$0xf]
    %v300 = vld [vmem:[%s2 + $0x1d8] sm:$0xf]
    %v301 = vld [vmem:[%s2 + $0x1dc] sm:$0xf]
    %v302 = vld [vmem:[%s2 + $0x1e0] sm:$0xf]
    %v303 = vld [vmem:[%s2 + $0x1e4] sm:$0xf]
    %v304 = vld [vmem:[%s2 + $0x1e8] sm:$0xf]
    %v305 = vld [vmem:[%s2 + $0x1ec] sm:$0xf]
    %v306 = vld [vmem:[%s2 + $0x1f0] sm:$0xf]
    %v307 = vld [vmem:[%s2 + $0x1f4] sm:$0xf]
    %v308 = vld [vmem:[%s2 + $0x1f8] sm:$0xf]
    %v309 = vld [vmem:[%s2 + $0x1fc] sm:$0xf]
    %v310 = vld [vmem:[%s2 + $0x200] sm:$0xf]
    %v311 = vld [vmem:[%s2 + $0x204] sm:$0xf]
    %v312 = vld [vmem:[%s2 + $0x208] sm:$0xf]
    %v313 = vld [vmem:[%s2 + $0x20c] sm:$0xf]
    %v314 = vld [vmem:[%s2 + $0x210] sm:$0xf]
    %v315 = vld [vmem:[%s2 + $0x214] sm:$0xf]
    %v316 = vld [vmem:[%s2 + $0x218] sm:$0xf]
    %v317 = vld [vmem:[%s2 + $0x21c] sm:$0xf]
    %v318 = vld [vmem:[%s2 + $0x220] sm:$0xf]
    %v319 = vld [vmem:[%s2 + $0x224] sm:$0xf]
    %v320 = vld [vmem:[%s2 + $0x228] sm:$0xf]
    %v321 = vld [vmem:[%s2 + $0x22c] sm:$0xf]
    %v322 = vld [vmem:[%s2 + $0x230] sm:$0xf]
    %v323 = vld [vmem:[%s2 + $0x234] sm:$0xf]
    %v324 = vld [vmem:[%s2 + $0x238] sm:$0xf]
    %v325 = vld [vmem:[%s2 + $0x23c] sm:$0xf]
    %v326 = vld [vmem:[%s2 + $0x240] sm:$0xf]
    %v327 = vld [vmem:[%s2 + $0x244] sm:$0xf]
    %v328 = vld [vmem:[%s2 + $0x248] sm:$0xf]
    %v329 = vld [vmem:[%s2 + $0x24c] sm:$0xf]
    %v330 = vld [vmem:[%s2 + $0x250] sm:$0xf]
    %v331 = vld [vmem:[%s2 + $0x254] sm:$0xf]
    %v332 = vld [vmem:[%s2 + $0x258] sm:$0xf]
    %v333 = vld [vmem:[%s2 + $0x25c] sm:$0xf]
    %v334 = vld [vmem:[%s2 + $0x260] sm:$0xf]
    %v335 = vld [vmem:[%s2 + $0x264] sm:$0xf]
    %v336 = vld [vmem:[%s2 + $0x268] sm:$0xf]
    %v337 = vld [vmem:[%s2 + $0x26c] sm:$0xf]
    %v338 = vld [vmem:[%s2 + $0x270] sm:$0xf]
    %v339 = vld [vmem:[%s2 + $0x274] sm:$0xf]
    %v340 = vld [vmem:[%s2 + $0x278] sm:$0xf]
    %v341 = vld [vmem:[%s2 + $0x27c] sm:$0xf]
    %v342 = vld [vmem:[%s2 + $0x280] sm:$0xf]
    %v343 = vld [vmem:[%s2 + $0x284] sm:$0xf]
    %v344 = vld [vmem:[%s2 + $0x288] sm:$0xf]
    %v345 = vld [vmem:[%s2 + $0x28c] sm:$0xf]
    %v346 = vld [vmem:[%s2 + $0x290] sm:$0xf]
    %v347 = vld [vmem:[%s2 + $0x294] sm:$0xf]
    %v348 = vld [vmem:[%s2 + $0x298] sm:$0xf]
    %v349 = vld [vmem:[%s2 + $0x29c] sm:$0xf]
    %v350 = vld [vmem:[%s2 + $0x2a0] sm:$0xf]
    %v351 = vld [vmem:[%s2 + $0x2a4] sm:$0xf]
    %v352 = vld [vmem:[%s2 + $0x2a8] sm:$0xf]
    %v353 = vld [vmem:[%s2 + $0x2ac] sm:$0xf]
    %v354 = vld [vmem:[%s2 + $0x2b0] sm:$0xf]
    %v355 = vld [vmem:[%s2 + $0x2b4] sm:$0xf]
    %v356 = vld [vmem:[%s2 + $0x2b8] sm:$0xf]
    %v357 = vld [vmem:[%s2 + $0x2bc] sm:$0xf]
    %v358 = vld [vmem:[%s2 + $0x2c0] sm:$0xf]
    %v359 = vld [vmem:[%s2 + $0x2c4] sm:$0xf]
    %v360 = vld [vmem:[%s2 + $0x2c8] sm:$0xf]
    %v361 = vld [vmem:[%s2 + $0x2cc] sm:$0xf]
    %v362 = vld [vmem:[%s2 + $0x2d0] sm:$0xf]
    %v363 = vld [vmem:[%s2 + $0x2d4] sm:$0xf]
    %v364 = vld [vmem:[%s2 + $0x2d8] sm:$0xf]
    %v365 = vld [vmem:[%s2 + $0x2dc] sm:$0xf]
    %v366 = vld [vmem:[%s2 + $0x2e0] sm:$0xf]
    %v367 = vld [vmem:[%s2 + $0x2e4] sm:$0xf]
    %v368 = vld [vmem:[%s2 + $0x2e8] sm:$0xf]
    %v369 = vld [vmem:[%s2 + $0x2ec] sm:$0xf]
    %v370 = vld [vmem:[%s2 + $0x2f0] sm:$0xf]
    %v371 = vld [vmem:[%s2 + $0x2f4] sm:$0xf]
    %v372 = vld [vmem:[%s2 + $0x2f8] sm:$0xf]
    %v373 = vld [vmem:[%s2 + $0x2fc] sm:$0xf]
    %v374 = vld [vmem:[%s2 + $0x300] sm:$0xf]
    %v375 = vld [vmem:[%s2 + $0x304] sm:$0xf]
    %v376 = vld [vmem:[%s2 + $0x308] sm:$0xf]
    %v377 = vld [vmem:[%s2 + $0x30c] sm:$0xf]
    %v378 = vld [vmem:[%s2 + $0x310] sm:$0xf]
    %v379 = vld [vmem:[%s2 + $0x314] sm:$0xf]
    %v380 = vld [vmem:[%s2 + $0x318] sm:$0xf]
    %v381 = vld [vmem:[%s2 + $0x31c] sm:$0xf]
    %v382 = vld [vmem:[%s2 + $0x320] sm:$0xf]
    %v383 = vld [vmem:[%s2 + $0x324] sm:$0xf]
    %v384 = vld [vmem:[%s2 + $0x328] sm:$0xf]
    %v385 = vld [vmem:[%s2 + $0x32c] sm:$0xf]
    %v386 = vld [vmem:[%s2 + $0x330] sm:$0xf]
    %v387 = vld [vmem:[%s2 + $0x334] sm:$0xf]
    %v388 = vld [vmem:[%s2 + $0x338] sm:$0xf]
    %v389 = vld [vmem:[%s2 + $0x33c] sm:$0xf]
    %v390 = vld [vmem:[%s2 + $0x340] sm:$0xf]
    %v391 = vld [vmem:[%s2 + $0x344] sm:$0xf]
    %v392 = vld [vmem:[%s2 + $0x348] sm:$0xf]
    %v393 = vld [vmem:[%s2 + $0x34c] sm:$0xf]
    %v394 = vld [vmem:[%s2 + $0x350] sm:$0xf]
    %v395 = vld [vmem:[%s2 + $0x354] sm:$0xf]
    %v396 = vld [vmem:[%s2 + $0x358] sm:$0xf]
    %v397 = vld [vmem:[%s2 + $0x35c] sm:$0xf]
    %v398 = vld [vmem:[%s2 + $0x360] sm:$0xf]
    %v399 = vld [vmem:[%s2 + $0x364] sm:$0xf]
    %v400 = vld [vmem:[%s2 + $0x368] sm:$0xf]
    %v401 = vld [vmem:[%s2 + $0x36c] sm:$0xf]
    %v402 = vld [vmem:[%s2 + $0x370] sm:$0xf]
    %v403 = vld [vmem:[%s2 + $0x374] sm:$0xf]
    %v404 = vld [vmem:[%s2 + $0x378] sm:$0xf]
    %v405 = vld [vmem:[%s2 + $0x37c] sm:$0xf]
    %v406 = vld [vmem:[%s2 + $0x380] sm:$0xf]
    %v407 = vld [vmem:[%s2 + $0x384] sm:$0xf]
    %v408 = vld [vmem:[%s2 + $0x388] sm:$0xf]
    %v409 = vld [vmem:[%s2 + $0x38c] sm:$0xf]
    %v410 = vld [vmem:[%s2 + $0x390] sm:$0xf]
    %v411 = vld [vmem:[%s2 + $0x394] sm:$0xf]
    %v412 = vld [vmem:[%s2 + $0x398] sm:$0xf]
    %v413 = vld [vmem:[%s2 + $0x39c] sm:$0xf]
    %v414 = vld [vmem:[%s2 + $0x3a0] sm:$0xf]
    %v415 = vld [vmem:[%s2 + $0x3a4] sm:$0xf]
    %v416 = vld [vmem:[%s2 + $0x3a8] sm:$0xf]
    %v417 = vld [vmem:[%s2 + $0x3ac] sm:$0xf]
    %v418 = vld [vmem:[%s2 + $0x3b0] sm:$0xf]
    %v419 = vld [vmem:[%s2 + $0x3b4] sm:$0xf]
    %v420 = vld [vmem:[%s2 + $0x3b8] sm:$0xf]
    %v421 = vld [vmem:[%s2 + $0x3bc] sm:$0xf]
    %v422 = vld [vmem:[%s2 + $0x3c0] sm:$0xf]
    %v423 = vld [vmem:[%s2 + $0x3c4] sm:$0xf]
    %v424 = vld [vmem:[%s2 + $0x3c8] sm:$0xf]
    %v425 = vld [vmem:[%s2 + $0x3cc] sm:$0xf]
    %v426 = vld [vmem:[%s2 + $0x3d0] sm:$0xf]
    %v427 = vld [vmem:[%s2 + $0x3d4] sm:$0xf]
    %v428 = vld [vmem:[%s2 + $0x3d8] sm:$0xf]
    %v429 = vld [vmem:[%s2 + $0x3dc] sm:$0xf]
    %v430 = vld [vmem:[%s2 + $0x3e0] sm:$0xf]
    %v431 = vld [vmem:[%s2 + $0x3e4] sm:$0xf]
    %v432 = vld [vmem:[%s2 + $0x3e8] sm:$0xf]
    %v433 = vld [vmem:[%s2 + $0x3ec] sm:$0xf]
    %v434 = vld [vmem:[%s2 + $0x3f0] sm:$0xf]
    %v435 = vld [vmem:[%s2 + $0x3f4] sm:$0xf]
    %v436 = vld [vmem:[%s2 + $0x3f8] sm:$0xf]
    %v437 = vld [vmem:[%s2 + $0x3fc] sm:$0xf]
    %v438 = vld [vmem:[%s2 + $0x400] sm:$0xf]
    %v439 = vld [vmem:[%s2 + $0x404] sm:$0xf]
    %v440 = vld [vmem:[%s2 + $0x408] sm:$0xf]
    %v441 = vld [vmem:[%s2 + $0x40c] sm:$0xf]
    %v442 = vld [vmem:[%s2 + $0x410] sm:$0xf]
    %v443 = vld [vmem:[%s2 + $0x414] sm:$0xf]
    %v444 = vld [vmem:[%s2 + $0x418] sm:$0xf]
    %v445 = vld [vmem:[%s2 + $0x41c] sm:$0xf]
    %v446 = vld [vmem:[%s2 + $0x420] sm:$0xf]
    %v447 = vld [vmem:[%s2 + $0x424] sm:$0xf]
    %v448 = vld [vmem:[%s2 + $0x428] sm:$0xf]
    %v449 = vld [vmem:[%s2 + $0x42c] sm:$0xf]
    %v450 = vld [vmem:[%s2 + $0x430] sm:$0xf]
    %v451 = vld [vmem:[%s2 + $0x434] sm:$0xf]
    %v452 = vld [vmem:[%s2 + $0x438] sm:$0xf]
    %v453 = vld [vmem:[%s2 + $0x43c] sm:$0xf]
    %v454 = vld [vmem:[%s2 + $0x440] sm:$0xf]
    %v455 = vld [vmem:[%s2 + $0x444] sm:$0xf]
    %v456 = vld [vmem:[%s2 + $0x448] sm:$0xf]
    %v457 = vld [vmem:[%s2 + $0x44c] sm:$0xf]
    %v458 = vld [vmem:[%s2 + $0x450] sm:$0xf]
    %v459 = vld [vmem:[%s2 + $0x454] sm:$0xf]
    %v460 = vld [vmem:[%s2 + $0x458] sm:$0xf]
    %v461 = vld [vmem:[%s2 + $0x45c] sm:$0xf]
    %v462 = vld [vmem:[%s2 + $0x460] sm:$0xf]
    %v463 = vld [vmem:[%s2 + $0x464] sm:$0xf]
    %v464 = vld [vmem:[%s2 + $0x468] sm:$0xf]
    %v465 = vld [vmem:[%s2 + $0x46c] sm:$0xf]
    %v466 = vld [vmem:[%s2 + $0x470] sm:$0xf]
    %v467 = vld [vmem:[%s2 + $0x474] sm:$0xf]
    %v468 = vld [vmem:[%s2 + $0x478] sm:$0xf]
    %v469 = vld [vmem:[%s2 + $0x47c] sm:$0xf]
    %v470 = vld [vmem:[%s2 + $0x480] sm:$0xf]
    %v471 = vld [vmem:[%s2 + $0x484] sm:$0xf]
    %v472 = vld [vmem:[%s2 + $0x488] sm:$0xf]
    %v473 = vld [vmem:[%s2 + $0x48c] sm:$0xf]
    %v474 = vld [vmem:[%s2 + $0x490] sm:$0xf]
    %v475 = vld [vmem:[%s2 + $0x494] sm:$0xf]
    %v476 = vld [vmem:[%s2 + $0x498] sm:$0xf]
    %v477 = vld [vmem:[%s2 + $0x49c] sm:$0xf]
    %v478 = vld [vmem:[%s2 + $0x4a0] sm:$0xf]
    %v479 = vld [vmem:[%s2 + $0x4a4] sm:$0xf]
    %v480 = vld [vmem:[%s2 + $0x4a8] sm:$0xf]
    %v481 = vld [vmem:[%s2 + $0x4ac] sm:$0xf]
    %v482 = vld [vmem:[%s2 + $0x4b0] sm:$0xf]
    %v483 = vld [vmem:[%s2 + $0x4b4] sm:$0xf]
    %v484 = vld [vmem:[%s2 + $0x4b8] sm:$0xf]
    %v485 = vld [vmem:[%s2 + $0x4bc] sm:$0xf]
    %v486 = vld [vmem:[%s2 + $0x4c0] sm:$0xf]
    %v487 = vld [vmem:[%s2 + $0x4c4] sm:$0xf]
    %v488 = vld [vmem:[%s2 + $0x4c8] sm:$0xf]
    %v489 = vld [vmem:[%s2 + $0x4cc] sm:$0xf]
    %v490 = vld [vmem:[%s2 + $0x4d0] sm:$0xf]
    %v491 = vld [vmem:[%s2 + $0x4d4] sm:$0xf]
    %v492 = vld [vmem:[%s2 + $0x4d8] sm:$0xf]
    %v493 = vld [vmem:[%s2 + $0x4dc] sm:$0xf]
    %v494 = vld [vmem:[%s2 + $0x4e0] sm:$0xf]
    %v495 = vld [vmem:[%s2 + $0x4e4] sm:$0xf]
    %v496 = vld [vmem:[%s2 + $0x4e8] sm:$0xf]
    %v497 = vld [vmem:[%s2 + $0x4ec] sm:$0xf]
    %v498 = vld [vmem:[%s2 + $0x4f0] sm:$0xf]
    %v499 = vld [vmem:[%s2 + $0x4f4] sm:$0xf]
    %v500 = vld [vmem:[%s2 + $0x4f8] sm:$0xf]
    %v501 = vld [vmem:[%s2 + $0x4fc] sm:$0xf]
    %v502 = vld [vmem:[%s2 + $0x500] sm:$0xf]
    %v503 = vld [vmem:[%s2 + $0x504] sm:$0xf]
    %v504 = vld [vmem:[%s2 + $0x508] sm:$0xf]
    %v505 = vld [vmem:[%s2 + $0x50c] sm:$0xf]
    %v506 = vld [vmem:[%s2 + $0x510] sm:$0xf]
    %v507 = vld [vmem:[%s2 + $0x514] sm:$0xf]
    %v508 = vld [vmem:[%s2 + $0x518] sm:$0xf]
    %v509 = vld [vmem:[%s2 + $0x51c] sm:$0xf]
    %v510 = vld [vmem:[%s2 + $0x520] sm:$0xf]
    %v511 = vld [vmem:[%s2 + $0x524] sm:$0xf]
    %v512 = vld [vmem:[%s2 + $0x528] sm:$0xf]
    %v513 = vld [vmem:[%s2 + $0x52c] sm:$0xf]
    %v514 = vld [vmem:[%s2 + $0x530] sm:$0xf]
    %v515 = vld [vmem:[%s2 + $0x534] sm:$0xf]
    %v516 = vld [vmem:[%s2 + $0x538] sm:$0xf]
    %v517 = vld [vmem:[%s2 + $0x53c] sm:$0xf]
    %v518 = vld [vmem:[%s2 + $0x540] sm:$0xf]
    %v519 = vld [vmem:[%s2 + $0x544] sm:$0xf]
    %v520 = vld [vmem:[%s2 + $0x548] sm:$0xf]
    %v521 = vld [vmem:[%s2 + $0x54c] sm:$0xf]
    %v522 = vld [vmem:[%s2 + $0x550] sm:$0xf]
    %v523 = vld [vmem:[%s2 + $0x554] sm:$0xf]
    %v524 = vld [vmem:[%s2 + $0x558] sm:$0xf]
    %v525 = vld [vmem:[%s2 + $0x55c] sm:$0xf]
    %v526 = vld [vmem:[%s2 + $0x560] sm:$0xf]
    %v527 = vld [vmem:[%s2 + $0x564] sm:$0xf]
    %v528 = vld [vmem:[%s2 + $0x568] sm:$0xf]
    %v529 = vld [vmem:[%s2 + $0x56c] sm:$0xf]
    %v530 = vld [vmem:[%s2 + $0x570] sm:$0xf]
    %v531 = vld [vmem:[%s2 + $0x574] sm:$0xf]
    %v532 = vld [vmem:[%s2 + $0x578] sm:$0xf]
    %v533 = vld [vmem:[%s2 + $0x57c] sm:$0xf]
    %v534 = vld [vmem:[%s2 + $0x580] sm:$0xf]
    %v535 = vld [vmem:[%s2 + $0x584] sm:$0xf]
    %v536 = vld [vmem:[%s2 + $0x588] sm:$0xf]
    %v537 = vld [vmem:[%s2 + $0x58c] sm:$0xf]
    %v538 = vld [vmem:[%s2 + $0x590] sm:$0xf]
    %v539 = vld [vmem:[%s2 + $0x594] sm:$0xf]
    %v540 = vld [vmem:[%s2 + $0x598] sm:$0xf]
    %v541 = vld [vmem:[%s2 + $0x59c] sm:$0xf]
    %v542 = vld [vmem:[%s2 + $0x5a0] sm:$0xf]
    %v543 = vld [vmem:[%s2 + $0x5a4] sm:$0xf]
    %v544 = vld [vmem:[%s2 + $0x5a8] sm:$0xf]
    %v545 = vld [vmem:[%s2 + $0x5ac] sm:$0xf]
    %v546 = vld [vmem:[%s2 + $0x5b0] sm:$0xf]
    %v547 = vld [vmem:[%s2 + $0x5b4] sm:$0xf]
    %v548 = vld [vmem:[%s2 + $0x5b8] sm:$0xf]
    %v549 = vld [vmem:[%s2 + $0x5bc] sm:$0xf]
    %v550 = vld [vmem:[%s2 + $0x5c0] sm:$0xf]
    %v551 = vld [vmem:[%s2 + $0x5c4] sm:$0xf]
    %v552 = vld [vmem:[%s2 + $0x5c8] sm:$0xf]
    %v553 = vld [vmem:[%s2 + $0x5cc] sm:$0xf]
    %v554 = vld [vmem:[%s2 + $0x5d0] sm:$0xf]
    %v555 = vld [vmem:[%s2 + $0x5d4] sm:$0xf]
    %v556 = vld [vmem:[%s2 + $0x5d8] sm:$0xf]
    %v557 = vld [vmem:[%s2 + $0x5dc] sm:$0xf]
    %v558 = vld [vmem:[%s2 + $0x5e0] sm:$0xf]
    %v559 = vld [vmem:[%s2 + $0x5e4] sm:$0xf]
    %v560 = vld [vmem:[%s2 + $0x5e8] sm:$0xf]
    %v561 = vld [vmem:[%s2 + $0x5ec] sm:$0xf]
    %v562 = vld [vmem:[%s2 + $0x5f0] sm:$0xf]
    %v563 = vld [vmem:[%s2 + $0x5f4] sm:$0xf]
    %v564 = vld [vmem:[%s2 + $0x5f8] sm:$0xf]
    %v565 = vld [vmem:[%s2 + $0x5fc] sm:$0xf]
    %v722 = vunpack.c.l.b16 %v26
    %v723 = vunpack.c.h.b16 %v26
    %v724 = vunpack.c.l.b16 %v27
    %v725 = vunpack.c.h.b16 %v27
    %v726 = vunpack.c.l.b16 %v28
    %v727 = vunpack.c.h.b16 %v28
    %v728 = vunpack.c.l.b16 %v29
    %v729 = vunpack.c.h.b16 %v29
    %v730 = vunpack.c.l.b16 %v30
    %v731 = vunpack.c.h.b16 %v30
    %v732 = vunpack.c.l.b16 %v31
    %v733 = vunpack.c.h.b16 %v31
    %v734 = vunpack.c.l.b16 %v32
    %v735 = vunpack.c.h.b16 %v32
    %v736 = vunpack.c.l.b16 %v33
    %v737 = vunpack.c.h.b16 %v33
    %v738 = vunpack.c.l.b16 %v34
    %v739 = vunpack.c.h.b16 %v34
    %v740 = vunpack.c.l.b16 %v35
    %v741 = vunpack.c.h.b16 %v35
    %v742 = vunpack.c.l.b16 %v36
    %v743 = vunpack.c.h.b16 %v36
    %v744 = vunpack.c.l.b16 %v37
    %v745 = vunpack.c.h.b16 %v37
    %v746 = vunpack.c.l.b16 %v38
    %v747 = vunpack.c.h.b16 %v38
    %v748 = vunpack.c.l.b16 %v39
    %v749 = vunpack.c.h.b16 %v39
    %v750 = vunpack.c.l.b16 %v40
    %v751 = vunpack.c.h.b16 %v40
    %v752 = vunpack.c.l.b16 %v41
    %v753 = vunpack.c.h.b16 %v41
    %v754 = vunpack.c.l.b16 %v42
    %v755 = vunpack.c.h.b16 %v42
    %v756 = vunpack.c.l.b16 %v43
    %v757 = vunpack.c.h.b16 %v43
    %v758 = vunpack.c.l.b16 %v44
    %v759 = vunpack.c.h.b16 %v44
    %v760 = vunpack.c.l.b16 %v45
    %v761 = vunpack.c.h.b16 %v45
    %v762 = vunpack.c.l.b16 %v46
    %v763 = vunpack.c.h.b16 %v46
    %v764 = vunpack.c.l.b16 %v47
    %v765 = vunpack.c.h.b16 %v47
    %v766 = vunpack.c.l.b16 %v48
    %v767 = vunpack.c.h.b16 %v48
    %v768 = vunpack.c.l.b16 %v49
    %v769 = vunpack.c.h.b16 %v49
    %v770 = vunpack.c.l.b16 %v50
    %v771 = vunpack.c.h.b16 %v50
    %v772 = vunpack.c.l.b16 %v51
    %v773 = vunpack.c.h.b16 %v51
    %v774 = vunpack.c.l.b16 %v52
    %v775 = vunpack.c.h.b16 %v52
    %v776 = vunpack.c.l.b16 %v53
    %v777 = vunpack.c.h.b16 %v53
    %v778 = vunpack.c.l.b16 %v54
    %v779 = vunpack.c.h.b16 %v54
    %v780 = vunpack.c.l.b16 %v55
    %v781 = vunpack.c.h.b16 %v55
    %v782 = vunpack.c.l.b16 %v56
    %v783 = vunpack.c.h.b16 %v56
    %v784 = vunpack.c.l.b16 %v57
    %v785 = vunpack.c.h.b16 %v57
    %v786 = vunpack.c.l.b16 %v58
    %v787 = vunpack.c.h.b16 %v58
    %v788 = vunpack.c.l.b16 %v59
    %v789 = vunpack.c.h.b16 %v59
    %v790 = vunpack.c.l.b16 %v60
    %v791 = vunpack.c.h.b16 %v60
    %v792 = vunpack.c.l.b16 %v61
    %v793 = vunpack.c.h.b16 %v61
    %v794 = vunpack.c.l.b16 %v62
    %v795 = vunpack.c.h.b16 %v62
    %v796 = vunpack.c.l.b16 %v63
    %v797 = vunpack.c.h.b16 %v63
    %v798 = vunpack.c.l.b16 %v64
    %v799 = vunpack.c.h.b16 %v64
    %v800 = vunpack.c.l.b16 %v65
    %v801 = vunpack.c.h.b16 %v65
    %v802 = vunpack.c.l.b16 %v66
    %v803 = vunpack.c.h.b16 %v66
    %v804 = vunpack.c.l.b16 %v67
    %v805 = vunpack.c.h.b16 %v67
    %v806 = vunpack.c.l.b16 %v68
    %v807 = vunpack.c.h.b16 %v68
    %v808 = vunpack.c.l.b16 %v69
    %v809 = vunpack.c.h.b16 %v69
    %v810 = vunpack.c.l.b16 %v70
    %v811 = vunpack.c.h.b16 %v70
    %v812 = vunpack.c.l.b16 %v71
    %v813 = vunpack.c.h.b16 %v71
    %v814 = vunpack.c.l.b16 %v72
    %v815 = vunpack.c.h.b16 %v72
    %v816 = vunpack.c.l.b16 %v73
    %v817 = vunpack.c.h.b16 %v73
    %v818 = vunpack.c.l.b16 %v74
    %v819 = vunpack.c.h.b16 %v74
    %v820 = vunpack.c.l.b16 %v75
    %v821 = vunpack.c.h.b16 %v75
    %v822 = vunpack.c.l.b16 %v76
    %v823 = vunpack.c.h.b16 %v76
    %v824 = vunpack.c.l.b16 %v77
    %v825 = vunpack.c.h.b16 %v77
    %v826 = vunpack.c.l.b16 %v78
    %v827 = vunpack.c.h.b16 %v78
    %v828 = vunpack.c.l.b16 %v79
    %v829 = vunpack.c.h.b16 %v79
    %v830 = vunpack.c.l.b16 %v80
    %v831 = vunpack.c.h.b16 %v80
    %v832 = vunpack.c.l.b16 %v81
    %v833 = vunpack.c.h.b16 %v81
    %v834 = vunpack.c.l.b16 %v82
    %v835 = vunpack.c.h.b16 %v82
    %v836 = vunpack.c.l.b16 %v83
    %v837 = vunpack.c.h.b16 %v83
    %v838 = vunpack.c.l.b16 %v84
    %v839 = vunpack.c.h.b16 %v84
    %v840 = vunpack.c.l.b16 %v85
    %v841 = vunpack.c.h.b16 %v85
    %v842 = vunpack.c.l.b16 %v86
    %v843 = vunpack.c.h.b16 %v86
    %v844 = vunpack.c.l.b16 %v87
    %v845 = vunpack.c.h.b16 %v87
    %v846 = vunpack.c.l.b16 %v88
    %v847 = vunpack.c.h.b16 %v88
    %v848 = vunpack.c.l.b16 %v89
    %v849 = vunpack.c.h.b16 %v89
    %v850 = vunpack.c.l.b16 %v90
    %v851 = vunpack.c.h.b16 %v90
    %v852 = vunpack.c.l.b16 %v91
    %v853 = vunpack.c.h.b16 %v91
    %v854 = vunpack.c.l.b16 %v92
    %v855 = vunpack.c.h.b16 %v92
    %v856 = vunpack.c.l.b16 %v93
    %v857 = vunpack.c.h.b16 %v93
    %v858 = vunpack.c.l.b16 %v94
    %v859 = vunpack.c.h.b16 %v94
    %v860 = vunpack.c.l.b16 %v95
    %v861 = vunpack.c.h.b16 %v95
    %v862 = vunpack.c.l.b16 %v96
    %v863 = vunpack.c.h.b16 %v96
    %v864 = vunpack.c.l.b16 %v97
    %v865 = vunpack.c.h.b16 %v97
    %v866 = vunpack.c.l.b16 %v98
    %v867 = vunpack.c.h.b16 %v98
    %v868 = vunpack.c.l.b16 %v99
    %v869 = vunpack.c.h.b16 %v99
    %v870 = vunpack.c.l.b16 %v100
    %v871 = vunpack.c.h.b16 %v100
    %v872 = vunpack.c.l.b16 %v101
    %v873 = vunpack.c.h.b16 %v101
    %v874 = vunpack.c.l.b16 %v102
    %v875 = vunpack.c.h.b16 %v102
    %v876 = vunpack.c.l.b16 %v103
    %v877 = vunpack.c.h.b16 %v103
    %v878 = vunpack.c.l.b16 %v104
    %v879 = vunpack.c.h.b16 %v104
    %v880 = vunpack.c.l.b16 %v105
    %v881 = vunpack.c.h.b16 %v105
    %v882 = vunpack.c.l.b16 %v106
    %v883 = vunpack.c.h.b16 %v106
    %v884 = vunpack.c.l.b16 %v107
    %v885 = vunpack.c.h.b16 %v107
    %v886 = vunpack.c.l.b16 %v108
    %v887 = vunpack.c.h.b16 %v108
    %v888 = vunpack.c.l.b16 %v109
    %v889 = vunpack.c.h.b16 %v109
    %v890 = vunpack.c.l.b16 %v110
    %v891 = vunpack.c.h.b16 %v110
    %v892 = vunpack.c.l.b16 %v111
    %v893 = vunpack.c.h.b16 %v111
    %v894 = vunpack.c.l.b16 %v112
    %v895 = vunpack.c.h.b16 %v112
    %v896 = vunpack.c.l.b16 %v113
    %v897 = vunpack.c.h.b16 %v113
    %v898 = vunpack.c.l.b16 %v114
    %v899 = vunpack.c.h.b16 %v114
    %v900 = vunpack.c.l.b16 %v115
    %v901 = vunpack.c.h.b16 %v115
    %v902 = vunpack.c.l.b16 %v116
    %v903 = vunpack.c.h.b16 %v116
    %v904 = vunpack.c.l.b16 %v117
    %v905 = vunpack.c.h.b16 %v117
    %v906 = vunpack.c.l.b16 %v118
    %v907 = vunpack.c.h.b16 %v118
    %v908 = vunpack.c.l.b16 %v119
    %v909 = vunpack.c.h.b16 %v119
    %v910 = vunpack.c.l.b16 %v120
    %v911 = vunpack.c.h.b16 %v120
    %v912 = vunpack.c.l.b16 %v121
    %v913 = vunpack.c.h.b16 %v121
    %v914 = vunpack.c.l.b16 %v122
    %v915 = vunpack.c.h.b16 %v122
    %v916 = vunpack.c.l.b16 %v123
    %v917 = vunpack.c.h.b16 %v123
    %v918 = vunpack.c.l.b16 %v124
    %v919 = vunpack.c.h.b16 %v124
    %v920 = vunpack.c.l.b16 %v125
    %v921 = vunpack.c.h.b16 %v125
    %v922 = vunpack.c.l.b16 %v126
    %v923 = vunpack.c.h.b16 %v126
    %v924 = vunpack.c.l.b16 %v127
    %v925 = vunpack.c.h.b16 %v127
    %v926 = vunpack.c.l.b16 %v128
    %v927 = vunpack.c.h.b16 %v128
    %v928 = vunpack.c.l.b16 %v129
    %v929 = vunpack.c.h.b16 %v129
    %v930 = vunpack.c.l.b16 %v130
    %v931 = vunpack.c.h.b16 %v130
    %v932 = vunpack.c.l.b16 %v131
    %v933 = vunpack.c.h.b16 %v131
    %v934 = vunpack.c.l.b16 %v132
    %v935 = vunpack.c.h.b16 %v132
    %v936 = vunpack.c.l.b16 %v133
    %v937 = vunpack.c.h.b16 %v133
    %v938 = vunpack.c.l.b16 %v134
    %v939 = vunpack.c.h.b16 %v134
    %v940 = vunpack.c.l.b16 %v135
    %v941 = vunpack.c.h.b16 %v135
    %v942 = vunpack.c.l.b16 %v136
    %v943 = vunpack.c.h.b16 %v136
    %v944 = vunpack.c.l.b16 %v137
    %v945 = vunpack.c.h.b16 %v137
    %v946 = vunpack.c.l.b16 %v138
    %v947 = vunpack.c.h.b16 %v138
    %v948 = vunpack.c.l.b16 %v139
    %v949 = vunpack.c.h.b16 %v139
    %v950 = vunpack.c.l.b16 %v140
    %v951 = vunpack.c.h.b16 %v140
    %v952 = vunpack.c.l.b16 %v141
    %v953 = vunpack.c.h.b16 %v141
    %v954 = vunpack.c.l.b16 %v142
    %v955 = vunpack.c.h.b16 %v142
    %v956 = vunpack.c.l.b16 %v143
    %v957 = vunpack.c.h.b16 %v143
    %v958 = vunpack.c.l.b16 %v144
    %v959 = vunpack.c.h.b16 %v144
    %v960 = vunpack.c.l.b16 %v145
    %v961 = vunpack.c.h.b16 %v145
    %v962 = vunpack.c.l.b16 %v146
    %v963 = vunpack.c.h.b16 %v146
    %v964 = vunpack.c.l.b16 %v147
    %v965 = vunpack.c.h.b16 %v147
    %v966 = vunpack.c.l.b16 %v148
    %v967 = vunpack.c.h.b16 %v148
    %v968 = vunpack.c.l.b16 %v149
    %v969 = vunpack.c.h.b16 %v149
    %v970 = vunpack.c.l.b16 %v150
    %v971 = vunpack.c.h.b16 %v150
    %v972 = vunpack.c.l.b16 %v151
    %v973 = vunpack.c.h.b16 %v151
    %v974 = vunpack.c.l.b16 %v152
    %v975 = vunpack.c.h.b16 %v152
    %v976 = vunpack.c.l.b16 %v153
    %v977 = vunpack.c.h.b16 %v153
    %v978 = vunpack.c.l.b16 %v154
    %v979 = vunpack.c.h.b16 %v154
    %v980 = vunpack.c.l.b16 %v155
    %v981 = vunpack.c.h.b16 %v155
    %v982 = vunpack.c.l.b16 %v156
    %v983 = vunpack.c.h.b16 %v156
    %v984 = vunpack.c.l.b16 %v157
    %v985 = vunpack.c.h.b16 %v157
    %v986 = vunpack.c.l.b16 %v158
    %v987 = vunpack.c.h.b16 %v158
    %v988 = vunpack.c.l.b16 %v159
    %v989 = vunpack.c.h.b16 %v159
    %v990 = vunpack.c.l.b16 %v160
    %v991 = vunpack.c.h.b16 %v160
    %v992 = vunpack.c.l.b16 %v161
    %v993 = vunpack.c.h.b16 %v161
    %v994 = vunpack.c.l.b16 %v162
    %v995 = vunpack.c.h.b16 %v162
    %v996 = vunpack.c.l.b16 %v163
    %v997 = vunpack.c.h.b16 %v163
    %v998 = vunpack.c.l.b16 %v164
    %v999 = vunpack.c.h.b16 %v164
    %v1000 = vunpack.c.l.b16 %v165
    %v1001 = vunpack.c.h.b16 %v165
    %v1002 = vunpack.c.l.b16 %v166
    %v1003 = vunpack.c.h.b16 %v166
    %v1004 = vunpack.c.l.b16 %v167
    %v1005 = vunpack.c.h.b16 %v167
    %v1006 = vunpack.c.l.b16 %v168
    %v1007 = vunpack.c.h.b16 %v168
    %v1008 = vunpack.c.l.b16 %v169
    %v1009 = vunpack.c.h.b16 %v169
    %v1010 = vunpack.c.l.b16 %v170
    %v1011 = vunpack.c.h.b16 %v170
    %v1012 = vunpack.c.l.b16 %v171
    %v1013 = vunpack.c.h.b16 %v171
    %v1014 = vunpack.c.l.b16 %v172
    %v1015 = vunpack.c.h.b16 %v172
    %v1016 = vunpack.c.l.b16 %v173
    %v1017 = vunpack.c.h.b16 %v173
    %v1018 = vunpack.c.l.b16 %v174
    %v1019 = vunpack.c.h.b16 %v174
    %v1020 = vunpack.c.l.b16 %v175
    %v1021 = vunpack.c.h.b16 %v175
    %v1022 = vunpack.c.l.b16 %v176
    %v1023 = vunpack.c.h.b16 %v176
    %v1024 = vunpack.c.l.b16 %v177
    %v1025 = vunpack.c.h.b16 %v177
    %v1026 = vunpack.c.l.b16 %v178
    %v1027 = vunpack.c.h.b16 %v178
    %v1028 = vunpack.c.l.b16 %v179
    %v1029 = vunpack.c.h.b16 %v179
    %v1030 = vunpack.c.l.b16 %v180
    %v1031 = vunpack.c.h.b16 %v180
    %v1032 = vunpack.c.l.b16 %v181
    %v1033 = vunpack.c.h.b16 %v181
    %v1034 = vpack.c.b16 %v746, %v722
    %v1035 = vpack.c.b16 %v747, %v723
    %v1036 = vpack.c.b16 %v748, %v724
    %v1037 = vpack.c.b16 %v749, %v725
    %v1038 = vpack.c.b16 %v750, %v726
    %v1039 = vpack.c.b16 %v751, %v727
    %v1040 = vpack.c.b16 %v752, %v728
    %v1041 = vpack.c.b16 %v753, %v729
    %v1042 = vpack.c.b16 %v754, %v730
    %v1043 = vpack.c.b16 %v755, %v731
    %v1044 = vpack.c.b16 %v756, %v732
    %v1045 = vpack.c.b16 %v757, %v733
    %v1046 = vpack.c.b16 %v758, %v734
    %v1047 = vpack.c.b16 %v759, %v735
    %v1048 = vpack.c.b16 %v760, %v736
    %v1049 = vpack.c.b16 %v761, %v737
    %v1050 = vpack.c.b16 %v762, %v738
    %v1051 = vpack.c.b16 %v763, %v739
    %v1052 = vpack.c.b16 %v764, %v740
    %v1053 = vpack.c.b16 %v765, %v741
    %v1054 = vpack.c.b16 %v766, %v742
    %v1055 = vpack.c.b16 %v767, %v743
    %v1056 = vpack.c.b16 %v768, %v744
    %v1057 = vpack.c.b16 %v769, %v745
    %v1058 = vpack.c.b16 %v794, %v770
    %v1059 = vpack.c.b16 %v795, %v771
    %v1060 = vpack.c.b16 %v796, %v772
    %v1061 = vpack.c.b16 %v797, %v773
    %v1062 = vpack.c.b16 %v798, %v774
    %v1063 = vpack.c.b16 %v799, %v775
    %v1064 = vpack.c.b16 %v800, %v776
    %v1065 = vpack.c.b16 %v801, %v777
    %v1066 = vpack.c.b16 %v802, %v778
    %v1067 = vpack.c.b16 %v803, %v779
    %v1068 = vpack.c.b16 %v804, %v780
    %v1069 = vpack.c.b16 %v805, %v781
    %v1070 = vpack.c.b16 %v806, %v782
    %v1071 = vpack.c.b16 %v807, %v783
    %v1072 = vpack.c.b16 %v808, %v784
    %v1073 = vpack.c.b16 %v809, %v785
    %v1074 = vpack.c.b16 %v810, %v786
    %v1075 = vpack.c.b16 %v811, %v787
    %v1076 = vpack.c.b16 %v812, %v788
    %v1077 = vpack.c.b16 %v813, %v789
    %v1078 = vpack.c.b16 %v814, %v790
    %v1079 = vpack.c.b16 %v815, %v791
    %v1080 = vpack.c.b16 %v816, %v792
    %v1081 = vpack.c.b16 %v817, %v793
    %v1082 = vpack.c.b16 %v842, %v818
    %v1083 = vpack.c.b16 %v843, %v819
    %v1084 = vpack.c.b16 %v844, %v820
    %v1085 = vpack.c.b16 %v845, %v821
    %v1086 = vpack.c.b16 %v846, %v822
    %v1087 = vpack.c.b16 %v847, %v823
    %v1088 = vpack.c.b16 %v848, %v824
    %v1089 = vpack.c.b16 %v849, %v825
    %v1090 = vpack.c.b16 %v850, %v826
    %v1091 = vpack.c.b16 %v851, %v827
    %v1092 = vpack.c.b16 %v852, %v828
    %v1093 = vpack.c.b16 %v853, %v829
    %v1094 = vpack.c.b16 %v854, %v830
    %v1095 = vpack.c.b16 %v855, %v831
    %v1096 = vpack.c.b16 %v856, %v832
    %v1097 = vpack.c.b16 %v857, %v833
    %v1098 = vpack.c.b16 %v858, %v834
    %v1099 = vpack.c.b16 %v859, %v835
    %v1100 = vpack.c.b16 %v860, %v836
    %v1101 = vpack.c.b16 %v861, %v837
    %v1102 = vpack.c.b16 %v862, %v838
    %v1103 = vpack.c.b16 %v863, %v839
    %v1104 = vpack.c.b16 %v864, %v840
    %v1105 = vpack.c.b16 %v865, %v841
    %v1106 = vpack.c.b16 %v890, %v866
    %v1107 = vpack.c.b16 %v891, %v867
    %v1108 = vpack.c.b16 %v892, %v868
    %v1109 = vpack.c.b16 %v893, %v869
    %v1110 = vpack.c.b16 %v894, %v870
    %v1111 = vpack.c.b16 %v895, %v871
    %v1112 = vpack.c.b16 %v896, %v872
    %v1113 = vpack.c.b16 %v897, %v873
    %v1114 = vpack.c.b16 %v898, %v874
    %v1115 = vpack.c.b16 %v899, %v875
    %v1116 = vpack.c.b16 %v900, %v876
    %v1117 = vpack.c.b16 %v901, %v877
    %v1118 = vpack.c.b16 %v902, %v878
    %v1119 = vpack.c.b16 %v903, %v879
    %v1120 = vpack.c.b16 %v904, %v880
    %v1121 = vpack.c.b16 %v905, %v881
    %v1122 = vpack.c.b16 %v906, %v882
    %v1123 = vpack.c.b16 %v907, %v883
    %v1124 = vpack.c.b16 %v908, %v884
    %v1125 = vpack.c.b16 %v909, %v885
    %v1126 = vpack.c.b16 %v910, %v886
    %v1127 = vpack.c.b16 %v911, %v887
    %v1128 = vpack.c.b16 %v912, %v888
    %v1129 = vpack.c.b16 %v913, %v889
    %v1130 = vpack.c.b16 %v938, %v914
    %v1131 = vpack.c.b16 %v939, %v915
    %v1132 = vpack.c.b16 %v940, %v916
    %v1133 = vpack.c.b16 %v941, %v917
    %v1134 = vpack.c.b16 %v942, %v918
    %v1135 = vpack.c.b16 %v943, %v919
    %v1136 = vpack.c.b16 %v944, %v920
    %v1137 = vpack.c.b16 %v945, %v921
    %v1138 = vpack.c.b16 %v946, %v922
    %v1139 = vpack.c.b16 %v947, %v923
    %v1140 = vpack.c.b16 %v948, %v924
    %v1141 = vpack.c.b16 %v949, %v925
    %v1142 = vpack.c.b16 %v950, %v926
    %v1143 = vpack.c.b16 %v951, %v927
    %v1144 = vpack.c.b16 %v952, %v928
    %v1145 = vpack.c.b16 %v953, %v929
    %v1146 = vpack.c.b16 %v954, %v930
    %v1147 = vpack.c.b16 %v955, %v931
    %v1148 = vpack.c.b16 %v956, %v932
    %v1149 = vpack.c.b16 %v957, %v933
    %v1150 = vpack.c.b16 %v958, %v934
    %v1151 = vpack.c.b16 %v959, %v935
    %v1152 = vpack.c.b16 %v960, %v936
    %v1153 = vpack.c.b16 %v961, %v937
    %v1154 = vpack.c.b16 %v986, %v962
    %v1155 = vpack.c.b16 %v987, %v963
    %v1156 = vpack.c.b16 %v988, %v964
    %v1157 = vpack.c.b16 %v989, %v965
    %v1158 = vpack.c.b16 %v990, %v966
    %v1159 = vpack.c.b16 %v991, %v967
    %v1160 = vpack.c.b16 %v992, %v968
    %v1161 = vpack.c.b16 %v993, %v969
    %v1162 = vpack.c.b16 %v994, %v970
    %v1163 = vpack.c.b16 %v995, %v971
    %v1164 = vpack.c.b16 %v996, %v972
    %v1165 = vpack.c.b16 %v997, %v973
    %v1166 = vpack.c.b16 %v998, %v974
    %v1167 = vpack.c.b16 %v999, %v975
    %v1168 = vpack.c.b16 %v1000, %v976
    %v1169 = vpack.c.b16 %v1001, %v977
    %v1170 = vpack.c.b16 %v1002, %v978
    %v1171 = vpack.c.b16 %v1003, %v979
    %v1172 = vpack.c.b16 %v1004, %v980
    %v1173 = vpack.c.b16 %v1005, %v981
    %v1174 = vpack.c.b16 %v1006, %v982
    %v1175 = vpack.c.b16 %v1007, %v983
    %v1176 = vpack.c.b16 %v1008, %v984
    %v1177 = vpack.c.b16 %v1009, %v985
    %v1178 = vpack.c.b16 %v1010, %v1010
    %v1179 = vpack.c.b16 %v1011, %v1011
    %v1180 = vpack.c.b16 %v1012, %v1012
    %v1181 = vpack.c.b16 %v1013, %v1013
    %v1182 = vpack.c.b16 %v1014, %v1014
    %v1183 = vpack.c.b16 %v1015, %v1015
    %v1184 = vpack.c.b16 %v1016, %v1016
    %v1185 = vpack.c.b16 %v1017, %v1017
    %v1186 = vpack.c.b16 %v1018, %v1018
    %v1187 = vpack.c.b16 %v1019, %v1019
    %v1188 = vpack.c.b16 %v1020, %v1020
    %v1189 = vpack.c.b16 %v1021, %v1021
    %v1190 = vpack.c.b16 %v1022, %v1022
    %v1191 = vpack.c.b16 %v1023, %v1023
    %v1192 = vpack.c.b16 %v1024, %v1024
    %v1193 = vpack.c.b16 %v1025, %v1025
    %v1194 = vpack.c.b16 %v1026, %v1026
    %v1195 = vpack.c.b16 %v1027, %v1027
    %v1196 = vpack.c.b16 %v1028, %v1028
    %v1197 = vpack.c.b16 %v1029, %v1029
    %v1198 = vpack.c.b16 %v1030, %v1030
    %v1199 = vpack.c.b16 %v1031, %v1031
    %v1200 = vpack.c.b16 %v1032, %v1032
    %v1201 = vpack.c.b16 %v1033, %v1033
    %v1754 = vunpack.c.l.b16 %v182
    %v1755 = vunpack.c.l.b16 %v183
    %v1756 = vunpack.c.l.b16 %v184
    %v1757 = vunpack.c.l.b16 %v185
    %v1758 = vunpack.c.l.b16 %v186
    %v1759 = vunpack.c.l.b16 %v187
    %v1760 = vunpack.c.l.b16 %v188
    %v1761 = vunpack.c.l.b16 %v189
    %v1762 = vunpack.c.l.b16 %v190
    %v1763 = vunpack.c.l.b16 %v191
    %v1764 = vunpack.c.l.b16 %v192
    %v1765 = vunpack.c.l.b16 %v193
    %v1766 = vunpack.c.l.b16 %v194
    %v1767 = vunpack.c.l.b16 %v195
    %v1768 = vunpack.c.l.b16 %v196
    %v1769 = vunpack.c.l.b16 %v197
    %v1770 = vunpack.c.l.b16 %v198
    %v1771 = vunpack.c.l.b16 %v199
    %v1772 = vunpack.c.l.b16 %v200
    %v1773 = vunpack.c.l.b16 %v201
    %v1774 = vunpack.c.l.b16 %v202
    %v1775 = vunpack.c.l.b16 %v203
    %v1776 = vunpack.c.l.b16 %v204
    %v1777 = vunpack.c.l.b16 %v205
    %v1778 = vunpack.c.l.b16 %v206
    %v1779 = vunpack.c.l.b16 %v207
    %v1780 = vunpack.c.l.b16 %v208
    %v1781 = vunpack.c.l.b16 %v209
    %v1782 = vunpack.c.l.b16 %v210
    %v1783 = vunpack.c.l.b16 %v211
    %v1784 = vunpack.c.l.b16 %v212
    %v1785 = vunpack.c.l.b16 %v213
    %v1786 = vunpack.c.l.b16 %v214
    %v1787 = vunpack.c.l.b16 %v215
    %v1788 = vunpack.c.l.b16 %v216
    %v1789 = vunpack.c.l.b16 %v217
    %v1790 = vunpack.c.l.b16 %v218
    %v1791 = vunpack.c.l.b16 %v219
    %v1792 = vunpack.c.l.b16 %v220
    %v1793 = vunpack.c.l.b16 %v221
    %v1794 = vunpack.c.l.b16 %v222
    %v1795 = vunpack.c.l.b16 %v223
    %v1796 = vunpack.c.l.b16 %v224
    %v1797 = vunpack.c.l.b16 %v225
    %v1798 = vunpack.c.l.b16 %v226
    %v1799 = vunpack.c.l.b16 %v227
    %v1800 = vunpack.c.l.b16 %v228
    %v1801 = vunpack.c.l.b16 %v229
    %v1802 = vunpack.c.l.b16 %v230
    %v1803 = vunpack.c.l.b16 %v231
    %v1804 = vunpack.c.l.b16 %v232
    %v1805 = vunpack.c.l.b16 %v233
    %v1806 = vunpack.c.l.b16 %v234
    %v1807 = vunpack.c.l.b16 %v235
    %v1808 = vunpack.c.l.b16 %v236
    %v1809 = vunpack.c.l.b16 %v237
    %v1810 = vunpack.c.l.b16 %v238
    %v1811 = vunpack.c.l.b16 %v239
    %v1812 = vunpack.c.l.b16 %v240
    %v1813 = vunpack.c.l.b16 %v241
    %v1814 = vunpack.c.l.b16 %v242
    %v1815 = vunpack.c.l.b16 %v243
    %v1816 = vunpack.c.l.b16 %v244
    %v1817 = vunpack.c.l.b16 %v245
    %v1818 = vunpack.c.l.b16 %v246
    %v1819 = vunpack.c.l.b16 %v247
    %v1820 = vunpack.c.l.b16 %v248
    %v1821 = vunpack.c.l.b16 %v249
    %v1822 = vunpack.c.l.b16 %v250
    %v1823 = vunpack.c.l.b16 %v251
    %v1824 = vunpack.c.l.b16 %v252
    %v1825 = vunpack.c.l.b16 %v253
    %v1826 = vunpack.c.l.b16 %v254
    %v1827 = vunpack.c.l.b16 %v255
    %v1828 = vunpack.c.l.b16 %v256
    %v1829 = vunpack.c.l.b16 %v257
    %v1830 = vunpack.c.l.b16 %v258
    %v1831 = vunpack.c.l.b16 %v259
    %v1832 = vunpack.c.l.b16 %v260
    %v1833 = vunpack.c.l.b16 %v261
    %v1834 = vunpack.c.l.b16 %v262
    %v1835 = vunpack.c.l.b16 %v263
    %v1836 = vunpack.c.l.b16 %v264
    %v1837 = vunpack.c.l.b16 %v265
    %v1838 = vunpack.c.l.b16 %v266
    %v1839 = vunpack.c.l.b16 %v267
    %v1840 = vunpack.c.l.b16 %v268
    %v1841 = vunpack.c.l.b16 %v269
    %v1842 = vunpack.c.l.b16 %v270
    %v1843 = vunpack.c.l.b16 %v271
    %v1844 = vunpack.c.l.b16 %v272
    %v1845 = vunpack.c.l.b16 %v273
    %v1846 = vunpack.c.l.b16 %v274
    %v1847 = vunpack.c.l.b16 %v275
    %v1848 = vunpack.c.l.b16 %v276
    %v1849 = vunpack.c.l.b16 %v277
    %v1850 = vunpack.c.l.b16 %v278
    %v1851 = vunpack.c.l.b16 %v279
    %v1852 = vunpack.c.l.b16 %v280
    %v1853 = vunpack.c.l.b16 %v281
    %v1854 = vunpack.c.l.b16 %v282
    %v1855 = vunpack.c.l.b16 %v283
    %v1856 = vunpack.c.l.b16 %v284
    %v1857 = vunpack.c.l.b16 %v285
    %v1858 = vunpack.c.l.b16 %v286
    %v1859 = vunpack.c.l.b16 %v287
    %v1860 = vunpack.c.l.b16 %v288
    %v1861 = vunpack.c.l.b16 %v289
    %v1862 = vunpack.c.l.b16 %v290
    %v1863 = vunpack.c.l.b16 %v291
    %v1864 = vunpack.c.l.b16 %v292
    %v1865 = vunpack.c.l.b16 %v293
    %v1866 = vunpack.c.l.b16 %v294
    %v1867 = vunpack.c.l.b16 %v295
    %v1868 = vunpack.c.l.b16 %v296
    %v1869 = vunpack.c.l.b16 %v297
    %v1870 = vunpack.c.l.b16 %v298
    %v1871 = vunpack.c.l.b16 %v299
    %v1872 = vunpack.c.l.b16 %v300
    %v1873 = vunpack.c.l.b16 %v301
    %v1874 = vunpack.c.l.b16 %v302
    %v1875 = vunpack.c.l.b16 %v303
    %v1876 = vunpack.c.l.b16 %v304
    %v1877 = vunpack.c.l.b16 %v305
    %v1878 = vunpack.c.l.b16 %v306
    %v1879 = vunpack.c.l.b16 %v307
    %v1880 = vunpack.c.l.b16 %v308
    %v1881 = vunpack.c.l.b16 %v309
    %v1882 = vunpack.c.l.b16 %v310
    %v1883 = vunpack.c.l.b16 %v311
    %v1884 = vunpack.c.l.b16 %v312
    %v1885 = vunpack.c.l.b16 %v313
    %v1886 = vunpack.c.l.b16 %v314
    %v1887 = vunpack.c.l.b16 %v315
    %v1888 = vunpack.c.l.b16 %v316
    %v1889 = vunpack.c.l.b16 %v317
    %v1890 = vunpack.c.l.b16 %v318
    %v1891 = vunpack.c.l.b16 %v319
    %v1892 = vunpack.c.l.b16 %v320
    %v1893 = vunpack.c.l.b16 %v321
    %v1894 = vunpack.c.l.b16 %v322
    %v1895 = vunpack.c.l.b16 %v323
    %v1896 = vunpack.c.l.b16 %v324
    %v1897 = vunpack.c.l.b16 %v325
    %v1898 = vunpack.c.l.b16 %v326
    %v1899 = vunpack.c.l.b16 %v327
    %v1900 = vunpack.c.l.b16 %v328
    %v1901 = vunpack.c.l.b16 %v329
    %v1902 = vunpack.c.l.b16 %v330
    %v1903 = vunpack.c.l.b16 %v331
    %v1904 = vunpack.c.l.b16 %v332
    %v1905 = vunpack.c.l.b16 %v333
    %v1906 = vunpack.c.l.b16 %v334
    %v1907 = vunpack.c.l.b16 %v335
    %v1908 = vunpack.c.l.b16 %v336
    %v1909 = vunpack.c.l.b16 %v337
    %v1910 = vunpack.c.l.b16 %v338
    %v1911 = vunpack.c.l.b16 %v339
    %v1912 = vunpack.c.l.b16 %v340
    %v1913 = vunpack.c.l.b16 %v341
    %v1914 = vunpack.c.l.b16 %v342
    %v1915 = vunpack.c.l.b16 %v343
    %v1916 = vunpack.c.l.b16 %v344
    %v1917 = vunpack.c.l.b16 %v345
    %v1918 = vunpack.c.l.b16 %v346
    %v1919 = vunpack.c.l.b16 %v347
    %v1920 = vunpack.c.l.b16 %v348
    %v1921 = vunpack.c.l.b16 %v349
    %v1922 = vunpack.c.l.b16 %v350
    %v1923 = vunpack.c.l.b16 %v351
    %v1924 = vunpack.c.l.b16 %v352
    %v1925 = vunpack.c.l.b16 %v353
    %v1926 = vunpack.c.l.b16 %v354
    %v1927 = vunpack.c.l.b16 %v355
    %v1928 = vunpack.c.l.b16 %v356
    %v1929 = vunpack.c.l.b16 %v357
    %v1930 = vunpack.c.l.b16 %v358
    %v1931 = vunpack.c.l.b16 %v359
    %v1932 = vunpack.c.l.b16 %v360
    %v1933 = vunpack.c.l.b16 %v361
    %v1934 = vunpack.c.l.b16 %v362
    %v1935 = vunpack.c.l.b16 %v363
    %v1936 = vunpack.c.l.b16 %v364
    %v1937 = vunpack.c.l.b16 %v365
    %v1938 = vunpack.c.l.b16 %v366
    %v1939 = vunpack.c.l.b16 %v367
    %v1940 = vunpack.c.l.b16 %v368
    %v1941 = vunpack.c.l.b16 %v369
    %v1942 = vunpack.c.l.b16 %v370
    %v1943 = vunpack.c.l.b16 %v371
    %v1944 = vunpack.c.l.b16 %v372
    %v1945 = vunpack.c.l.b16 %v373
    %v1946 = vunpack.c.l.b16 %v374
    %v1947 = vunpack.c.l.b16 %v375
    %v1948 = vunpack.c.l.b16 %v376
    %v1949 = vunpack.c.l.b16 %v377
    %v1950 = vunpack.c.l.b16 %v378
    %v1951 = vunpack.c.l.b16 %v379
    %v1952 = vunpack.c.l.b16 %v380
    %v1953 = vunpack.c.l.b16 %v381
    %v1954 = vunpack.c.l.b16 %v382
    %v1955 = vunpack.c.l.b16 %v383
    %v1956 = vunpack.c.l.b16 %v384
    %v1957 = vunpack.c.l.b16 %v385
    %v1958 = vunpack.c.l.b16 %v386
    %v1959 = vunpack.c.l.b16 %v387
    %v1960 = vunpack.c.l.b16 %v388
    %v1961 = vunpack.c.l.b16 %v389
    %v1962 = vunpack.c.l.b16 %v390
    %v1963 = vunpack.c.l.b16 %v391
    %v1964 = vunpack.c.l.b16 %v392
    %v1965 = vunpack.c.l.b16 %v393
    %v1966 = vunpack.c.l.b16 %v394
    %v1967 = vunpack.c.l.b16 %v395
    %v1968 = vunpack.c.l.b16 %v396
    %v1969 = vunpack.c.l.b16 %v397
    %v1970 = vunpack.c.l.b16 %v398
    %v1971 = vunpack.c.l.b16 %v399
    %v1972 = vunpack.c.l.b16 %v400
    %v1973 = vunpack.c.l.b16 %v401
    %v1974 = vunpack.c.l.b16 %v402
    %v1975 = vunpack.c.l.b16 %v403
    %v1976 = vunpack.c.l.b16 %v404
    %v1977 = vunpack.c.l.b16 %v405
    %v1978 = vunpack.c.l.b16 %v406
    %v1979 = vunpack.c.l.b16 %v407
    %v1980 = vunpack.c.l.b16 %v408
    %v1981 = vunpack.c.l.b16 %v409
    %v1982 = vunpack.c.l.b16 %v410
    %v1983 = vunpack.c.l.b16 %v411
    %v1984 = vunpack.c.l.b16 %v412
    %v1985 = vunpack.c.l.b16 %v413
    %v1986 = vunpack.c.l.b16 %v414
    %v1987 = vunpack.c.l.b16 %v415
    %v1988 = vunpack.c.l.b16 %v416
    %v1989 = vunpack.c.l.b16 %v417
    %v1990 = vunpack.c.l.b16 %v418
    %v1991 = vunpack.c.l.b16 %v419
    %v1992 = vunpack.c.l.b16 %v420
    %v1993 = vunpack.c.l.b16 %v421
    %v1994 = vunpack.c.l.b16 %v422
    %v1995 = vunpack.c.l.b16 %v423
    %v1996 = vunpack.c.l.b16 %v424
    %v1997 = vunpack.c.l.b16 %v425
    %v1998 = vunpack.c.l.b16 %v426
    %v1999 = vunpack.c.l.b16 %v427
    %v2000 = vunpack.c.l.b16 %v428
    %v2001 = vunpack.c.l.b16 %v429
    %v2002 = vunpack.c.l.b16 %v430
    %v2003 = vunpack.c.l.b16 %v431
    %v2004 = vunpack.c.l.b16 %v432
    %v2005 = vunpack.c.l.b16 %v433
    %v2006 = vunpack.c.l.b16 %v434
    %v2007 = vunpack.c.l.b16 %v435
    %v2008 = vunpack.c.l.b16 %v436
    %v2009 = vunpack.c.l.b16 %v437
    %v2010 = vunpack.c.l.b16 %v438
    %v2011 = vunpack.c.l.b16 %v439
    %v2012 = vunpack.c.l.b16 %v440
    %v2013 = vunpack.c.l.b16 %v441
    %v2014 = vunpack.c.l.b16 %v442
    %v2015 = vunpack.c.l.b16 %v443
    %v2016 = vunpack.c.l.b16 %v444
    %v2017 = vunpack.c.l.b16 %v445
    %v2018 = vunpack.c.l.b16 %v446
    %v2019 = vunpack.c.l.b16 %v447
    %v2020 = vunpack.c.l.b16 %v448
    %v2021 = vunpack.c.l.b16 %v449
    %v2022 = vunpack.c.l.b16 %v450
    %v2023 = vunpack.c.l.b16 %v451
    %v2024 = vunpack.c.l.b16 %v452
    %v2025 = vunpack.c.l.b16 %v453
    %v2026 = vunpack.c.l.b16 %v454
    %v2027 = vunpack.c.l.b16 %v455
    %v2028 = vunpack.c.l.b16 %v456
    %v2029 = vunpack.c.l.b16 %v457
    %v2030 = vunpack.c.l.b16 %v458
    %v2031 = vunpack.c.l.b16 %v459
    %v2032 = vunpack.c.l.b16 %v460
    %v2033 = vunpack.c.l.b16 %v461
    %v2034 = vunpack.c.l.b16 %v462
    %v2035 = vunpack.c.l.b16 %v463
    %v2036 = vunpack.c.l.b16 %v464
    %v2037 = vunpack.c.l.b16 %v465
    %v2038 = vunpack.c.l.b16 %v466
    %v2039 = vunpack.c.l.b16 %v467
    %v2040 = vunpack.c.l.b16 %v468
    %v2041 = vunpack.c.l.b16 %v469
    %v2042 = vunpack.c.l.b16 %v470
    %v2043 = vunpack.c.l.b16 %v471
    %v2044 = vunpack.c.l.b16 %v472
    %v2045 = vunpack.c.l.b16 %v473
    %v2046 = vunpack.c.l.b16 %v474
    %v2047 = vunpack.c.l.b16 %v475
    %v2048 = vunpack.c.l.b16 %v476
    %v2049 = vunpack.c.l.b16 %v477
    %v2050 = vunpack.c.l.b16 %v478
    %v2051 = vunpack.c.l.b16 %v479
    %v2052 = vunpack.c.l.b16 %v480
    %v2053 = vunpack.c.l.b16 %v481
    %v2054 = vunpack.c.l.b16 %v482
    %v2055 = vunpack.c.l.b16 %v483
    %v2056 = vunpack.c.l.b16 %v484
    %v2057 = vunpack.c.l.b16 %v485
    %v2058 = vunpack.c.l.b16 %v486
    %v2059 = vunpack.c.l.b16 %v487
    %v2060 = vunpack.c.l.b16 %v488
    %v2061 = vunpack.c.l.b16 %v489
    %v2062 = vunpack.c.l.b16 %v490
    %v2063 = vunpack.c.l.b16 %v491
    %v2064 = vunpack.c.l.b16 %v492
    %v2065 = vunpack.c.l.b16 %v493
    %v2066 = vunpack.c.l.b16 %v494
    %v2067 = vunpack.c.l.b16 %v495
    %v2068 = vunpack.c.l.b16 %v496
    %v2069 = vunpack.c.l.b16 %v497
    %v2070 = vunpack.c.l.b16 %v498
    %v2071 = vunpack.c.l.b16 %v499
    %v2072 = vunpack.c.l.b16 %v500
    %v2073 = vunpack.c.l.b16 %v501
    %v2074 = vunpack.c.l.b16 %v502
    %v2075 = vunpack.c.l.b16 %v503
    %v2076 = vunpack.c.l.b16 %v504
    %v2077 = vunpack.c.l.b16 %v505
    %v2078 = vunpack.c.l.b16 %v506
    %v2079 = vunpack.c.l.b16 %v507
    %v2080 = vunpack.c.l.b16 %v508
    %v2081 = vunpack.c.l.b16 %v509
    %v2082 = vunpack.c.l.b16 %v510
    %v2083 = vunpack.c.l.b16 %v511
    %v2084 = vunpack.c.l.b16 %v512
    %v2085 = vunpack.c.l.b16 %v513
    %v2086 = vunpack.c.l.b16 %v514
    %v2087 = vunpack.c.l.b16 %v515
    %v2088 = vunpack.c.l.b16 %v516
    %v2089 = vunpack.c.l.b16 %v517
    %v2090 = vunpack.c.l.b16 %v518
    %v2091 = vunpack.c.l.b16 %v519
    %v2092 = vunpack.c.l.b16 %v520
    %v2093 = vunpack.c.l.b16 %v521
    %v2094 = vunpack.c.l.b16 %v522
    %v2095 = vunpack.c.l.b16 %v523
    %v2096 = vunpack.c.l.b16 %v524
    %v2097 = vunpack.c.l.b16 %v525
    %v2098 = vunpack.c.l.b16 %v526
    %v2099 = vunpack.c.l.b16 %v527
    %v2100 = vunpack.c.l.b16 %v528
    %v2101 = vunpack.c.l.b16 %v529
    %v2102 = vunpack.c.l.b16 %v530
    %v2103 = vunpack.c.l.b16 %v531
    %v2104 = vunpack.c.l.b16 %v532
    %v2105 = vunpack.c.l.b16 %v533
    %v2106 = vunpack.c.l.b16 %v534
    %v2107 = vunpack.c.l.b16 %v535
    %v2108 = vunpack.c.l.b16 %v536
    %v2109 = vunpack.c.l.b16 %v537
    %v2110 = vunpack.c.l.b16 %v538
    %v2111 = vunpack.c.l.b16 %v539
    %v2112 = vunpack.c.l.b16 %v540
    %v2113 = vunpack.c.l.b16 %v541
    %v2114 = vunpack.c.l.b16 %v542
    %v2115 = vunpack.c.l.b16 %v543
    %v2116 = vunpack.c.l.b16 %v544
    %v2117 = vunpack.c.l.b16 %v545
    %v2118 = vunpack.c.l.b16 %v546
    %v2119 = vunpack.c.l.b16 %v547
    %v2120 = vunpack.c.l.b16 %v548
    %v2121 = vunpack.c.l.b16 %v549
    %v2122 = vunpack.c.l.b16 %v550
    %v2123 = vunpack.c.l.b16 %v551
    %v2124 = vunpack.c.l.b16 %v552
    %v2125 = vunpack.c.l.b16 %v553
    %v2126 = vunpack.c.l.b16 %v554
    %v2127 = vunpack.c.l.b16 %v555
    %v2128 = vunpack.c.l.b16 %v556
    %v2129 = vunpack.c.l.b16 %v557
    %v2130 = vunpack.c.l.b16 %v558
    %v2131 = vunpack.c.l.b16 %v559
    %v2132 = vunpack.c.l.b16 %v560
    %v2133 = vunpack.c.l.b16 %v561
    %v2134 = vunpack.c.l.b16 %v562
    %v2135 = vunpack.c.l.b16 %v563
    %v2136 = vunpack.c.l.b16 %v564
    %v2137 = vunpack.c.l.b16 %v565
    %v2138 = vpack.c.b16 %v1755, %v1754
    %v2139 = vpack.c.b16 %v1757, %v1756
    %v2140 = vpack.c.b16 %v1759, %v1758
    %v2141 = vpack.c.b16 %v1761, %v1760
    %v2142 = vpack.c.b16 %v1763, %v1762
    %v2143 = vpack.c.b16 %v1765, %v1764
    %v2144 = vpack.c.b16 %v1767, %v1766
    %v2145 = vpack.c.b16 %v1769, %v1768
    %v2146 = vpack.c.b16 %v1771, %v1770
    %v2147 = vpack.c.b16 %v1773, %v1772
    %v2148 = vpack.c.b16 %v1775, %v1774
    %v2149 = vpack.c.b16 %v1777, %v1776
    %v2150 = vpack.c.b16 %v1779, %v1778
    %v2151 = vpack.c.b16 %v1781, %v1780
    %v2152 = vpack.c.b16 %v1783, %v1782
    %v2153 = vpack.c.b16 %v1785, %v1784
    %v2154 = vpack.c.b16 %v1787, %v1786
    %v2155 = vpack.c.b16 %v1789, %v1788
    %v2156 = vpack.c.b16 %v1791, %v1790
    %v2157 = vpack.c.b16 %v1793, %v1792
    %v2158 = vpack.c.b16 %v1795, %v1794
    %v2159 = vpack.c.b16 %v1797, %v1796
    %v2160 = vpack.c.b16 %v1799, %v1798
    %v2161 = vpack.c.b16 %v1801, %v1800
    %v2162 = vpack.c.b16 %v1803, %v1802
    %v2163 = vpack.c.b16 %v1805, %v1804
    %v2164 = vpack.c.b16 %v1807, %v1806
    %v2165 = vpack.c.b16 %v1809, %v1808
    %v2166 = vpack.c.b16 %v1811, %v1810
    %v2167 = vpack.c.b16 %v1813, %v1812
    %v2168 = vpack.c.b16 %v1815, %v1814
    %v2169 = vpack.c.b16 %v1817, %v1816
    %v2170 = vpack.c.b16 %v1819, %v1818
    %v2171 = vpack.c.b16 %v1821, %v1820
    %v2172 = vpack.c.b16 %v1823, %v1822
    %v2173 = vpack.c.b16 %v1825, %v1824
    %v2174 = vpack.c.b16 %v1827, %v1826
    %v2175 = vpack.c.b16 %v1829, %v1828
    %v2176 = vpack.c.b16 %v1831, %v1830
    %v2177 = vpack.c.b16 %v1833, %v1832
    %v2178 = vpack.c.b16 %v1835, %v1834
    %v2179 = vpack.c.b16 %v1837, %v1836
    %v2180 = vpack.c.b16 %v1839, %v1838
    %v2181 = vpack.c.b16 %v1841, %v1840
    %v2182 = vpack.c.b16 %v1843, %v1842
    %v2183 = vpack.c.b16 %v1845, %v1844
    %v2184 = vpack.c.b16 %v1847, %v1846
    %v2185 = vpack.c.b16 %v1849, %v1848
    %v2186 = vpack.c.b16 %v1851, %v1850
    %v2187 = vpack.c.b16 %v1853, %v1852
    %v2188 = vpack.c.b16 %v1855, %v1854
    %v2189 = vpack.c.b16 %v1857, %v1856
    %v2190 = vpack.c.b16 %v1859, %v1858
    %v2191 = vpack.c.b16 %v1861, %v1860
    %v2192 = vpack.c.b16 %v1863, %v1862
    %v2193 = vpack.c.b16 %v1865, %v1864
    %v2194 = vpack.c.b16 %v1867, %v1866
    %v2195 = vpack.c.b16 %v1869, %v1868
    %v2196 = vpack.c.b16 %v1871, %v1870
    %v2197 = vpack.c.b16 %v1873, %v1872
    %v2198 = vpack.c.b16 %v1875, %v1874
    %v2199 = vpack.c.b16 %v1877, %v1876
    %v2200 = vpack.c.b16 %v1879, %v1878
    %v2201 = vpack.c.b16 %v1881, %v1880
    %v2202 = vpack.c.b16 %v1883, %v1882
    %v2203 = vpack.c.b16 %v1885, %v1884
    %v2204 = vpack.c.b16 %v1887, %v1886
    %v2205 = vpack.c.b16 %v1889, %v1888
    %v2206 = vpack.c.b16 %v1891, %v1890
    %v2207 = vpack.c.b16 %v1893, %v1892
    %v2208 = vpack.c.b16 %v1895, %v1894
    %v2209 = vpack.c.b16 %v1897, %v1896
    %v2210 = vpack.c.b16 %v1899, %v1898
    %v2211 = vpack.c.b16 %v1901, %v1900
    %v2212 = vpack.c.b16 %v1903, %v1902
    %v2213 = vpack.c.b16 %v1905, %v1904
    %v2214 = vpack.c.b16 %v1907, %v1906
    %v2215 = vpack.c.b16 %v1909, %v1908
    %v2216 = vpack.c.b16 %v1911, %v1910
    %v2217 = vpack.c.b16 %v1913, %v1912
    %v2218 = vpack.c.b16 %v1915, %v1914
    %v2219 = vpack.c.b16 %v1917, %v1916
    %v2220 = vpack.c.b16 %v1919, %v1918
    %v2221 = vpack.c.b16 %v1921, %v1920
    %v2222 = vpack.c.b16 %v1923, %v1922
    %v2223 = vpack.c.b16 %v1925, %v1924
    %v2224 = vpack.c.b16 %v1927, %v1926
    %v2225 = vpack.c.b16 %v1929, %v1928
    %v2226 = vpack.c.b16 %v1931, %v1930
    %v2227 = vpack.c.b16 %v1933, %v1932
    %v2228 = vpack.c.b16 %v1935, %v1934
    %v2229 = vpack.c.b16 %v1937, %v1936
    %v2230 = vpack.c.b16 %v1939, %v1938
    %v2231 = vpack.c.b16 %v1941, %v1940
    %v2232 = vpack.c.b16 %v1943, %v1942
    %v2233 = vpack.c.b16 %v1945, %v1944
    %v2234 = vpack.c.b16 %v1947, %v1946
    %v2235 = vpack.c.b16 %v1949, %v1948
    %v2236 = vpack.c.b16 %v1951, %v1950
    %v2237 = vpack.c.b16 %v1953, %v1952
    %v2238 = vpack.c.b16 %v1955, %v1954
    %v2239 = vpack.c.b16 %v1957, %v1956
    %v2240 = vpack.c.b16 %v1959, %v1958
    %v2241 = vpack.c.b16 %v1961, %v1960
    %v2242 = vpack.c.b16 %v1963, %v1962
    %v2243 = vpack.c.b16 %v1965, %v1964
    %v2244 = vpack.c.b16 %v1967, %v1966
    %v2245 = vpack.c.b16 %v1969, %v1968
    %v2246 = vpack.c.b16 %v1971, %v1970
    %v2247 = vpack.c.b16 %v1973, %v1972
    %v2248 = vpack.c.b16 %v1975, %v1974
    %v2249 = vpack.c.b16 %v1977, %v1976
    %v2250 = vpack.c.b16 %v1979, %v1978
    %v2251 = vpack.c.b16 %v1981, %v1980
    %v2252 = vpack.c.b16 %v1983, %v1982
    %v2253 = vpack.c.b16 %v1985, %v1984
    %v2254 = vpack.c.b16 %v1987, %v1986
    %v2255 = vpack.c.b16 %v1989, %v1988
    %v2256 = vpack.c.b16 %v1991, %v1990
    %v2257 = vpack.c.b16 %v1993, %v1992
    %v2258 = vpack.c.b16 %v1995, %v1994
    %v2259 = vpack.c.b16 %v1997, %v1996
    %v2260 = vpack.c.b16 %v1999, %v1998
    %v2261 = vpack.c.b16 %v2001, %v2000
    %v2262 = vpack.c.b16 %v2003, %v2002
    %v2263 = vpack.c.b16 %v2005, %v2004
    %v2264 = vpack.c.b16 %v2007, %v2006
    %v2265 = vpack.c.b16 %v2009, %v2008
    %v2266 = vpack.c.b16 %v2011, %v2010
    %v2267 = vpack.c.b16 %v2013, %v2012
    %v2268 = vpack.c.b16 %v2015, %v2014
    %v2269 = vpack.c.b16 %v2017, %v2016
    %v2270 = vpack.c.b16 %v2019, %v2018
    %v2271 = vpack.c.b16 %v2021, %v2020
    %v2272 = vpack.c.b16 %v2023, %v2022
    %v2273 = vpack.c.b16 %v2025, %v2024
    %v2274 = vpack.c.b16 %v2027, %v2026
    %v2275 = vpack.c.b16 %v2029, %v2028
    %v2276 = vpack.c.b16 %v2031, %v2030
    %v2277 = vpack.c.b16 %v2033, %v2032
    %v2278 = vpack.c.b16 %v2035, %v2034
    %v2279 = vpack.c.b16 %v2037, %v2036
    %v2280 = vpack.c.b16 %v2039, %v2038
    %v2281 = vpack.c.b16 %v2041, %v2040
    %v2282 = vpack.c.b16 %v2043, %v2042
    %v2283 = vpack.c.b16 %v2045, %v2044
    %v2284 = vpack.c.b16 %v2047, %v2046
    %v2285 = vpack.c.b16 %v2049, %v2048
    %v2286 = vpack.c.b16 %v2051, %v2050
    %v2287 = vpack.c.b16 %v2053, %v2052
    %v2288 = vpack.c.b16 %v2055, %v2054
    %v2289 = vpack.c.b16 %v2057, %v2056
    %v2290 = vpack.c.b16 %v2059, %v2058
    %v2291 = vpack.c.b16 %v2061, %v2060
    %v2292 = vpack.c.b16 %v2063, %v2062
    %v2293 = vpack.c.b16 %v2065, %v2064
    %v2294 = vpack.c.b16 %v2067, %v2066
    %v2295 = vpack.c.b16 %v2069, %v2068
    %v2296 = vpack.c.b16 %v2071, %v2070
    %v2297 = vpack.c.b16 %v2073, %v2072
    %v2298 = vpack.c.b16 %v2075, %v2074
    %v2299 = vpack.c.b16 %v2077, %v2076
    %v2300 = vpack.c.b16 %v2079, %v2078
    %v2301 = vpack.c.b16 %v2081, %v2080
    %v2302 = vpack.c.b16 %v2083, %v2082
    %v2303 = vpack.c.b16 %v2085, %v2084
    %v2304 = vpack.c.b16 %v2087, %v2086
    %v2305 = vpack.c.b16 %v2089, %v2088
    %v2306 = vpack.c.b16 %v2091, %v2090
    %v2307 = vpack.c.b16 %v2093, %v2092
    %v2308 = vpack.c.b16 %v2095, %v2094
    %v2309 = vpack.c.b16 %v2097, %v2096
    %v2310 = vpack.c.b16 %v2099, %v2098
    %v2311 = vpack.c.b16 %v2101, %v2100
    %v2312 = vpack.c.b16 %v2103, %v2102
    %v2313 = vpack.c.b16 %v2105, %v2104
    %v2314 = vpack.c.b16 %v2107, %v2106
    %v2315 = vpack.c.b16 %v2109, %v2108
    %v2316 = vpack.c.b16 %v2111, %v2110
    %v2317 = vpack.c.b16 %v2113, %v2112
    %v2318 = vpack.c.b16 %v2115, %v2114
    %v2319 = vpack.c.b16 %v2117, %v2116
    %v2320 = vpack.c.b16 %v2119, %v2118
    %v2321 = vpack.c.b16 %v2121, %v2120
    %v2322 = vpack.c.b16 %v2123, %v2122
    %v2323 = vpack.c.b16 %v2125, %v2124
    %v2324 = vpack.c.b16 %v2127, %v2126
    %v2325 = vpack.c.b16 %v2129, %v2128
    %v2326 = vpack.c.b16 %v2131, %v2130
    %v2327 = vpack.c.b16 %v2133, %v2132
    %v2328 = vpack.c.b16 %v2135, %v2134
    %v2329 = vpack.c.b16 %v2137, %v2136
    %2522 = vmatprep.subr.bf16.mxu0 0
    %2523 = vmatpush1.bf16.msra.mxu0 %v2138
    %2524 = vmatprep.subr.bf16.mxu0 0
    %2525 = vmatpush1.bf16.msra.mxu0 %v2139
    %2526 = vmatprep.subr.bf16.mxu0 0
    %2527 = vmatpush1.bf16.msra.mxu0 %v2140
    %2528 = vmatprep.subr.bf16.mxu0 0
    %2529 = vmatpush1.bf16.msra.mxu0 %v2141
    %2530 = vmatprep.subr.bf16.mxu0 0
    %2531 = vmatpush1.bf16.msra.mxu0 %v2142
    %2532 = vmatprep.subr.bf16.mxu0 0
    %2533 = vmatpush1.bf16.msra.mxu0 %v2143
    %2534 = vmatprep.subr.bf16.mxu0 0
    %2535 = vmatpush1.bf16.msra.mxu0 %v2144
    %2536 = vmatprep.subr.bf16.mxu0 0
    %2537 = vmatpush1.bf16.msra.mxu0 %v2145
    %2538 = vmatprep.subr.bf16.mxu0 0
    %2539 = vmatpush1.bf16.msra.mxu0 %v2146
    %2540 = vmatprep.subr.bf16.mxu0 0
    %2541 = vmatpush1.bf16.msra.mxu0 %v2147
    %2542 = vmatprep.subr.bf16.mxu0 0
    %2543 = vmatpush1.bf16.msra.mxu0 %v2148
    %2544 = vmatprep.subr.bf16.mxu0 0
    %2545 = vmatpush1.bf16.msra.mxu0 %v2149
    %2546 = vmatprep.subr.bf16.mxu0 0
    %2547 = vmatpush1.bf16.msra.mxu0 %v2150
    %2548 = vmatprep.subr.bf16.mxu0 0
    %2549 = vmatpush1.bf16.msra.mxu0 %v2151
    %2550 = vmatprep.subr.bf16.mxu0 0
    %2551 = vmatpush1.bf16.msra.mxu0 %v2152
    %2552 = vmatprep.subr.bf16.mxu0 0
    %2553 = vmatpush1.bf16.msra.mxu0 %v2153
    %2554 = vmatprep.mubr.bf16.mxu0 %v1035
    %2555 = vmatmul.mubr.bf16.gmra.mrb[0].mxu0 %v1034
    %v2556 = vpop.f32.mrb[0].mxu0
    %v2557 = vadd.f32 0.0, %v2556
    %v2558 = vpop.f32.mrb[0].mxu0
    %v2559 = vpop.f32.mrb[0].mxu0
    %v2560 = vadd.f32 0.0, %v2559
    %v2561 = vpop.f32.mrb[0].mxu0
    %2562 = vmatprep.mubr.bf16.mxu0 %v1059
    %2563 = vmatmul.mubr.bf16.gmra.mrb[0].mxu0 %v1058
    %v2564 = vpop.f32.mrb[0].mxu0
    %v2565 = vadd.f32 0.0, %v2564
    %v2566 = vpop.f32.mrb[0].mxu0
    %v2567 = vpop.f32.mrb[0].mxu0
    %v2568 = vadd.f32 0.0, %v2567
    %v2569 = vpop.f32.mrb[0].mxu0
    %2570 = vmatprep.mubr.bf16.mxu0 %v1083
    %2571 = vmatmul.mubr.bf16.gmra.mrb[0].mxu0 %v1082
    %v2572 = vpop.f32.mrb[0].mxu0
    %v2573 = vadd.f32 0.0, %v2572
    %v2574 = vpop.f32.mrb[0].mxu0
    %v2575 = vpop.f32.mrb[0].mxu0
    %v2576 = vadd.f32 0.0, %v2575
    %v2577 = vpop.f32.mrb[0].mxu0
    %2578 = vmatprep.mubr.bf16.mxu0 %v1107
    %2579 = vmatmul.mubr.bf16.gmra.mrb[0].mxu0 %v1106
    %v2580 = vpop.f32.mrb[0].mxu0
    %v2581 = vadd.f32 0.0, %v2580
    %v2582 = vpop.f32.mrb[0].mxu0
    %v2583 = vpop.f32.mrb[0].mxu0
    %v2584 = vadd.f32 0.0, %v2583
    %v2585 = vpop.f32.mrb[0].mxu0
    %2586 = vmatprep.mubr.bf16.mxu0 %v1131
    %2587 = vmatmul.mubr.bf16.gmra.mrb[0].mxu0 %v1130
    %v2588 = vpop.f32.mrb[0].mxu0
    %v2589 = vadd.f32 0.0, %v2588
    %v2590 = vpop.f32.mrb[0].mxu0
    %v2591 = vpop.f32.mrb[0].mxu0
    %v2592 = vadd.f32 0.0, %v2591
    %v2593 = vpop.f32.mrb[0].mxu0
    %2594 = vmatprep.mubr.bf16.mxu0 %v1155
    %2595 = vmatmul.mubr.bf16.gmra.mrb[0].mxu0 %v1154
    %v2596 = vpop.f32.mrb[0].mxu0
    %v2597 = vadd.f32 0.0, %v2596
    %v2598 = vpop.f32.mrb[0].mxu0
    %v2599 = vpop.f32.mrb[0].mxu0
    %v2600 = vadd.f32 0.0, %v2599
    %v2601 = vpop.f32.mrb[0].mxu0
    %2602 = vmatprep.mubr.bf16.mxu0 %v1179
    %2603 = vmatmul.mubr.bf16.gmra.mrb[0].mxu0 %v1178
    %v2604 = vpop.f32.mrb[0].mxu0
    %v2605 = vadd.f32 0.0, %v2604
    %v2606 = vpop.f32.mrb[0].mxu0
    %v2607 = vpop.f32.mrb[0].mxu0
    %v2608 = vpop.f32.mrb[0].mxu0
    %2609 = vdwg.mxu0
    %2610 = vmatprep.subr.bf16.mxu0 0
    %2611 = vmatpush1.bf16.msra.mxu0 %v2154
    %2612 = vmatprep.subr.bf16.mxu0 0
    %2613 = vmatpush1.bf16.msra.mxu0 %v2155
    %2614 = vmatprep.subr.bf16.mxu0 0
    %2615 = vmatpush1.bf16.msra.mxu0 %v2156
    %2616 = vmatprep.subr.bf16.mxu0 0
    %2617 = vmatpush1.bf16.msra.mxu0 %v2157
    %2618 = vmatprep.subr.bf16.mxu0 0
    %2619 = vmatpush1.bf16.msra.mxu0 %v2158
    %2620 = vmatprep.subr.bf16.mxu0 0
    %2621 = vmatpush1.bf16.msra.mxu0 %v2159
    %2622 = vmatprep.subr.bf16.mxu0 0
    %2623 = vmatpush1.bf16.msra.mxu0 %v2160
    %2624 = vmatprep.subr.bf16.mxu0 0
    %2625 = vmatpush1.bf16.msra.mxu0 %v2161
    %2626 = vmatprep.subr.bf16.mxu0 0
    %2627 = vmatpush1.bf16.msra.mxu0 %v2162
    %2628 = vmatprep.subr.bf16.mxu0 0
    %2629 = vmatpush1.bf16.msra.mxu0 %v2163
    %2630 = vmatprep.subr.bf16.mxu0 0
    %2631 = vmatpush1.bf16.msra.mxu0 %v2164
    %2632 = vmatprep.subr.bf16.mxu0 0
    %2633 = vmatpush1.bf16.msra.mxu0 %v2165
    %2634 = vmatprep.subr.bf16.mxu0 0
    %2635 = vmatpush1.bf16.msra.mxu0 %v2166
    %2636 = vmatprep.subr.bf16.mxu0 0
    %2637 = vmatpush1.bf16.msra.mxu0 %v2167
    %2638 = vmatprep.subr.bf16.mxu0 0
    %2639 = vmatpush1.bf16.msra.mxu0 %v2168
    %2640 = vmatprep.subr.bf16.mxu0 0
    %2641 = vmatpush1.bf16.msra.mxu0 %v2169
    %2642 = vmatprep.mubr.bf16.mxu0 %v1037
    %2643 = vmatmul.mubr.bf16.gmra.mrb[0].mxu0 %v1036
    %v2644 = vpop.f32.mrb[0].mxu0
    %v2645 = vadd.f32 %v2557, %v2644
    %v2646 = vpop.f32.mrb[0].mxu0
    %v2647 = vpop.f32.mrb[0].mxu0
    %v2648 = vadd.f32 %v2560, %v2647
    %v2649 = vpop.f32.mrb[0].mxu0
    %2650 = vmatprep.mubr.bf16.mxu0 %v1061
    %2651 = vmatmul.mubr.bf16.gmra.mrb[0].mxu0 %v1060
    %v2652 = vpop.f32.mrb[0].mxu0
    %v2653 = vadd.f32 %v2565, %v2652
    %v2654 = vpop.f32.mrb[0].mxu0
    %v2655 = vpop.f32.mrb[0].mxu0
    %v2656 = vadd.f32 %v2568, %v2655
    %v2657 = vpop.f32.mrb[0].mxu0
    %2658 = vmatprep.mubr.bf16.mxu0 %v1085
    %2659 = vmatmul.mubr.bf16.gmra.mrb[0].mxu0 %v1084
    %v2660 = vpop.f32.mrb[0].mxu0
    %v2661 = vadd.f32 %v2573, %v2660
    %v2662 = vpop.f32.mrb[0].mxu0
    %v2663 = vpop.f32.mrb[0].mxu0
    %v2664 = vadd.f32 %v2576, %v2663
    %v2665 = vpop.f32.mrb[0].mxu0
    %2666 = vmatprep.mubr.bf16.mxu0 %v1109
    %2667 = vmatmul.mubr.bf16.gmra.mrb[0].mxu0 %v1108
    %v2668 = vpop.f32.mrb[0].mxu0
    %v2669 = vadd.f32 %v2581, %v2668
    %v2670 = vpop.f32.mrb[0].mxu0
    %v2671 = vpop.f32.mrb[0].mxu0
    %v2672 = vadd.f32 %v2584, %v2671
    %v2673 = vpop.f32.mrb[0].mxu0
    %2674 = vmatprep.mubr.bf16.mxu0 %v1133
    %2675 = vmatmul.mubr.bf16.gmra.mrb[0].mxu0 %v1132
    %v2676 = vpop.f32.mrb[0].mxu0
    %v2677 = vadd.f32 %v2589, %v2676
    %v2678 = vpop.f32.mrb[0].mxu0
    %v2679 = vpop.f32.mrb[0].mxu0
    %v2680 = vadd.f32 %v2592, %v2679
    %v2681 = vpop.f32.mrb[0].mxu0
    %2682 = vmatprep.mubr.bf16.mxu0 %v1157
    %2683 = vmatmul.mubr.bf16.gmra.mrb[0].mxu0 %v1156
    %v2684 = vpop.f32.mrb[0].mxu0
    %v2685 = vadd.f32 %v2597, %v2684
    %v2686 = vpop.f32.mrb[0].mxu0
    %v2687 = vpop.f32.mrb[0].mxu0
    %v2688 = vadd.f32 %v2600, %v2687
    %v2689 = vpop.f32.mrb[0].mxu0
    %2690 = vmatprep.mubr.bf16.mxu0 %v1181
    %2691 = vmatmul.mubr.bf16.gmra.mrb[0].mxu0 %v1180
    %v2692 = vpop.f32.mrb[0].mxu0
    %v2693 = vadd.f32 %v2605, %v2692
    %v2694 = vpop.f32.mrb[0].mxu0
    %v2695 = vpop.f32.mrb[0].mxu0
    %v2696 = vpop.f32.mrb[0].mxu0
    %2697 = vdwg.mxu0
    %2698 = vmatprep.subr.bf16.mxu0 0
    %2699 = vmatpush1.bf16.msra.mxu0 %v2170
    %2700 = vmatprep.subr.bf16.mxu0 0
    %2701 = vmatpush1.bf16.msra.mxu0 %v2171
    %2702 = vmatprep.subr.bf16.mxu0 0
    %2703 = vmatpush1.bf16.msra.mxu0 %v2172
    %2704 = vmatprep.subr.bf16.mxu0 0
    %2705 = vmatpush1.bf16.msra.mxu0 %v2173
    %2706 = vmatprep.subr.bf16.mxu0 0
    %2707 = vmatpush1.bf16.msra.mxu0 %v2174
    %2708 = vmatprep.subr.bf16.mxu0 0
    %2709 = vmatpush1.bf16.msra.mxu0 %v2175
    %2710 = vmatprep.subr.bf16.mxu0 0
    %2711 = vmatpush1.bf16.msra.mxu0 %v2176
    %2712 = vmatprep.subr.bf16.mxu0 0
    %2713 = vmatpush1.bf16.msra.mxu0 %v2177
    %2714 = vmatprep.subr.bf16.mxu0 0
    %2715 = vmatpush1.bf16.msra.mxu0 %v2178
    %2716 = vmatprep.subr.bf16.mxu0 0
    %2717 = vmatpush1.bf16.msra.mxu0 %v2179
    %2718 = vmatprep.subr.bf16.mxu0 0
    %2719 = vmatpush1.bf16.msra.mxu0 %v2180
    %2720 = vmatprep.subr.bf16.mxu0 0
    %2721 = vmatpush1.bf16.msra.mxu0 %v2181
    %2722 = vmatprep.subr.bf16.mxu0 0
    %2723 = vmatpush1.bf16.msra.mxu0 %v2182
    %2724 = vmatprep.subr.bf16.mxu0 0
    %2725 = vmatpush1.bf16.msra.mxu0 %v2183
    %2726 = vmatprep.subr.bf16.mxu0 0
    %2727 = vmatpush1.bf16.msra.mxu0 %v2184
    %2728 = vmatprep.subr.bf16.mxu0 0
    %2729 = vmatpush1.bf16.msra.mxu0 %v2185
    %2730 = vmatprep.mubr.bf16.mxu0 %v1039
    %2731 = vmatmul.mubr.bf16.gmra.mrb[0].mxu0 %v1038
    %v2732 = vpop.f32.mrb[0].mxu0
    %v2733 = vadd.f32 %v2645, %v2732
    %v2734 = vpop.f32.mrb[0].mxu0
    %v2735 = vpop.f32.mrb[0].mxu0
    %v2736 = vadd.f32 %v2648, %v2735
    %v2737 = vpop.f32.mrb[0].mxu0
    %2738 = vmatprep.mubr.bf16.mxu0 %v1063
    %2739 = vmatmul.mubr.bf16.gmra.mrb[0].mxu0 %v1062
    %v2740 = vpop.f32.mrb[0].mxu0
    %v2741 = vadd.f32 %v2653, %v2740
    %v2742 = vpop.f32.mrb[0].mxu0
    %v2743 = vpop.f32.mrb[0].mxu0
    %v2744 = vadd.f32 %v2656, %v2743
    %v2745 = vpop.f32.mrb[0].mxu0
    %2746 = vmatprep.mubr.bf16.mxu0 %v1087
    %2747 = vmatmul.mubr.bf16.gmra.mrb[0].mxu0 %v1086
    %v2748 = vpop.f32.mrb[0].mxu0
    %v2749 = vadd.f32 %v2661, %v2748
    %v2750 = vpop.f32.mrb[0].mxu0
    %v2751 = vpop.f32.mrb[0].mxu0
    %v2752 = vadd.f32 %v2664, %v2751
    %v2753 = vpop.f32.mrb[0].mxu0
    %2754 = vmatprep.mubr.bf16.mxu0 %v1111
    %2755 = vmatmul.mubr.bf16.gmra.mrb[0].mxu0 %v1110
    %v2756 = vpop.f32.mrb[0].mxu0
    %v2757 = vadd.f32 %v2669, %v2756
    %v2758 = vpop.f32.mrb[0].mxu0
    %v2759 = vpop.f32.mrb[0].mxu0
    %v2760 = vadd.f32 %v2672, %v2759
    %v2761 = vpop.f32.mrb[0].mxu0
    %2762 = vmatprep.mubr.bf16.mxu0 %v1135
    %2763 = vmatmul.mubr.bf16.gmra.mrb[0].mxu0 %v1134
    %v2764 = vpop.f32.mrb[0].mxu0
    %v2765 = vadd.f32 %v2677, %v2764
    %v2766 = vpop.f32.mrb[0].mxu0
    %v2767 = vpop.f32.mrb[0].mxu0
    %v2768 = vadd.f32 %v2680, %v2767
    %v2769 = vpop.f32.mrb[0].mxu0
    %2770 = vmatprep.mubr.bf16.mxu0 %v1159
    %2771 = vmatmul.mubr.bf16.gmra.mrb[0].mxu0 %v1158
    %v2772 = vpop.f32.mrb[0].mxu0
    %v2773 = vadd.f32 %v2685, %v2772
    %v2774 = vpop.f32.mrb[0].mxu0
    %v2775 = vpop.f32.mrb[0].mxu0
    %v2776 = vadd.f32 %v2688, %v2775
    %v2777 = vpop.f32.mrb[0].mxu0
    %2778 = vmatprep.mubr.bf16.mxu0 %v1183
    %2779 = vmatmul.mubr.bf16.gmra.mrb[0].mxu0 %v1182
    %v2780 = vpop.f32.mrb[0].mxu0
    %v2781 = vadd.f32 %v2693, %v2780
    %v2782 = vpop.f32.mrb[0].mxu0
    %v2783 = vpop.f32.mrb[0].mxu0
    %v2784 = vpop.f32.mrb[0].mxu0
    %2785 = vdwg.mxu0
    %2786 = vmatprep.subr.bf16.mxu0 0
    %2787 = vmatpush1.bf16.msra.mxu0 %v2186
    %2788 = vmatprep.subr.bf16.mxu0 0
    %2789 = vmatpush1.bf16.msra.mxu0 %v2187
    %2790 = vmatprep.subr.bf16.mxu0 0
    %2791 = vmatpush1.bf16.msra.mxu0 %v2188
    %2792 = vmatprep.subr.bf16.mxu0 0
    %2793 = vmatpush1.bf16.msra.mxu0 %v2189
    %2794 = vmatprep.subr.bf16.mxu0 0
    %2795 = vmatpush1.bf16.msra.mxu0 %v2190
    %2796 = vmatprep.subr.bf16.mxu0 0
    %2797 = vmatpush1.bf16.msra.mxu0 %v2191
    %2798 = vmatprep.subr.bf16.mxu0 0
    %2799 = vmatpush1.bf16.msra.mxu0 %v2192
    %2800 = vmatprep.subr.bf16.mxu0 0
    %2801 = vmatpush1.bf16.msra.mxu0 %v2193
    %2802 = vmatprep.subr.bf16.mxu0 0
    %2803 = vmatpush1.bf16.msra.mxu0 %v2194
    %2804 = vmatprep.subr.bf16.mxu0 0
    %2805 = vmatpush1.bf16.msra.mxu0 %v2195
    %2806 = vmatprep.subr.bf16.mxu0 0
    %2807 = vmatpush1.bf16.msra.mxu0 %v2196
    %2808 = vmatprep.subr.bf16.mxu0 0
    %2809 = vmatpush1.bf16.msra.mxu0 %v2197
    %2810 = vmatprep.subr.bf16.mxu0 0
    %2811 = vmatpush1.bf16.msra.mxu0 %v2198
    %2812 = vmatprep.subr.bf16.mxu0 0
    %2813 = vmatpush1.bf16.msra.mxu0 %v2199
    %2814 = vmatprep.subr.bf16.mxu0 0
    %2815 = vmatpush1.bf16.msra.mxu0 %v2200
    %2816 = vmatprep.subr.bf16.mxu0 0
    %2817 = vmatpush1.bf16.msra.mxu0 %v2201
    %2818 = vmatprep.mubr.bf16.mxu0 %v1041
    %2819 = vmatmul.mubr.bf16.gmra.mrb[0].mxu0 %v1040
    %v2820 = vpop.f32.mrb[0].mxu0
    %v2821 = vadd.f32 %v2733, %v2820
    %v2822 = vpop.f32.mrb[0].mxu0
    %v2823 = vpop.f32.mrb[0].mxu0
    %v2824 = vadd.f32 %v2736, %v2823
    %v2825 = vpop.f32.mrb[0].mxu0
    %2826 = vmatprep.mubr.bf16.mxu0 %v1065
    %2827 = vmatmul.mubr.bf16.gmra.mrb[0].mxu0 %v1064
    %v2828 = vpop.f32.mrb[0].mxu0
    %v2829 = vadd.f32 %v2741, %v2828
    %v2830 = vpop.f32.mrb[0].mxu0
    %v2831 = vpop.f32.mrb[0].mxu0
    %v2832 = vadd.f32 %v2744, %v2831
    %v2833 = vpop.f32.mrb[0].mxu0
    %2834 = vmatprep.mubr.bf16.mxu0 %v1089
    %2835 = vmatmul.mubr.bf16.gmra.mrb[0].mxu0 %v1088
    %v2836 = vpop.f32.mrb[0].mxu0
    %v2837 = vadd.f32 %v2749, %v2836
    %v2838 = vpop.f32.mrb[0].mxu0
    %v2839 = vpop.f32.mrb[0].mxu0
    %v2840 = vadd.f32 %v2752, %v2839
    %v2841 = vpop.f32.mrb[0].mxu0
    %2842 = vmatprep.mubr.bf16.mxu0 %v1113
    %2843 = vmatmul.mubr.bf16.gmra.mrb[0].mxu0 %v1112
    %v2844 = vpop.f32.mrb[0].mxu0
    %v2845 = vadd.f32 %v2757, %v2844
    %v2846 = vpop.f32.mrb[0].mxu0
    %v2847 = vpop.f32.mrb[0].mxu0
    %v2848 = vadd.f32 %v2760, %v2847
    %v2849 = vpop.f32.mrb[0].mxu0
    %2850 = vmatprep.mubr.bf16.mxu0 %v1137
    %2851 = vmatmul.mubr.bf16.gmra.mrb[0].mxu0 %v1136
    %v2852 = vpop.f32.mrb[0].mxu0
    %v2853 = vadd.f32 %v2765, %v2852
    %v2854 = vpop.f32.mrb[0].mxu0
    %v2855 = vpop.f32.mrb[0].mxu0
    %v2856 = vadd.f32 %v2768, %v2855
    %v2857 = vpop.f32.mrb[0].mxu0
    %2858 = vmatprep.mubr.bf16.mxu0 %v1161
    %2859 = vmatmul.mubr.bf16.gmra.mrb[0].mxu0 %v1160
    %v2860 = vpop.f32.mrb[0].mxu0
    %v2861 = vadd.f32 %v2773, %v2860
    %v2862 = vpop.f32.mrb[0].mxu0
    %v2863 = vpop.f32.mrb[0].mxu0
    %v2864 = vadd.f32 %v2776, %v2863
    %v2865 = vpop.f32.mrb[0].mxu0
    %2866 = vmatprep.mubr.bf16.mxu0 %v1185
    %2867 = vmatmul.mubr.bf16.gmra.mrb[0].mxu0 %v1184
    %v2868 = vpop.f32.mrb[0].mxu0
    %v2869 = vadd.f32 %v2781, %v2868
    %v2870 = vpop.f32.mrb[0].mxu0
    %v2871 = vpop.f32.mrb[0].mxu0
    %v2872 = vpop.f32.mrb[0].mxu0
    %2873 = vdwg.mxu0
    %2874 = vmatprep.subr.bf16.mxu0 0
    %2875 = vmatpush1.bf16.msra.mxu0 %v2202
    %2876 = vmatprep.subr.bf16.mxu0 0
    %2877 = vmatpush1.bf16.msra.mxu0 %v2203
    %2878 = vmatprep.subr.bf16.mxu0 0
    %2879 = vmatpush1.bf16.msra.mxu0 %v2204
    %2880 = vmatprep.subr.bf16.mxu0 0
    %2881 = vmatpush1.bf16.msra.mxu0 %v2205
    %2882 = vmatprep.subr.bf16.mxu0 0
    %2883 = vmatpush1.bf16.msra.mxu0 %v2206
    %2884 = vmatprep.subr.bf16.mxu0 0
    %2885 = vmatpush1.bf16.msra.mxu0 %v2207
    %2886 = vmatprep.subr.bf16.mxu0 0
    %2887 = vmatpush1.bf16.msra.mxu0 %v2208
    %2888 = vmatprep.subr.bf16.mxu0 0
    %2889 = vmatpush1.bf16.msra.mxu0 %v2209
    %2890 = vmatprep.subr.bf16.mxu0 0
    %2891 = vmatpush1.bf16.msra.mxu0 %v2210
    %2892 = vmatprep.subr.bf16.mxu0 0
    %2893 = vmatpush1.bf16.msra.mxu0 %v2211
    %2894 = vmatprep.subr.bf16.mxu0 0
    %2895 = vmatpush1.bf16.msra.mxu0 %v2212
    %2896 = vmatprep.subr.bf16.mxu0 0
    %2897 = vmatpush1.bf16.msra.mxu0 %v2213
    %2898 = vmatprep.subr.bf16.mxu0 0
    %2899 = vmatpush1.bf16.msra.mxu0 %v2214
    %2900 = vmatprep.subr.bf16.mxu0 0
    %2901 = vmatpush1.bf16.msra.mxu0 %v2215
    %2902 = vmatprep.subr.bf16.mxu0 0
    %2903 = vmatpush1.bf16.msra.mxu0 %v2216
    %2904 = vmatprep.subr.bf16.mxu0 0
    %2905 = vmatpush1.bf16.msra.mxu0 %v2217
    %2906 = vmatprep.mubr.bf16.mxu0 %v1043
    %2907 = vmatmul.mubr.bf16.gmra.mrb[0].mxu0 %v1042
    %v2908 = vpop.f32.mrb[0].mxu0
    %v2909 = vadd.f32 %v2821, %v2908
    %v2910 = vpop.f32.mrb[0].mxu0
    %v2911 = vpop.f32.mrb[0].mxu0
    %v2912 = vadd.f32 %v2824, %v2911
    %v2913 = vpop.f32.mrb[0].mxu0
    %2914 = vmatprep.mubr.bf16.mxu0 %v1067
    %2915 = vmatmul.mubr.bf16.gmra.mrb[0].mxu0 %v1066
    %v2916 = vpop.f32.mrb[0].mxu0
    %v2917 = vadd.f32 %v2829, %v2916
    %v2918 = vpop.f32.mrb[0].mxu0
    %v2919 = vpop.f32.mrb[0].mxu0
    %v2920 = vadd.f32 %v2832, %v2919
    %v2921 = vpop.f32.mrb[0].mxu0
    %2922 = vmatprep.mubr.bf16.mxu0 %v1091
    %2923 = vmatmul.mubr.bf16.gmra.mrb[0].mxu0 %v1090
    %v2924 = vpop.f32.mrb[0].mxu0
    %v2925 = vadd.f32 %v2837, %v2924
    %v2926 = vpop.f32.mrb[0].mxu0
    %v2927 = vpop.f32.mrb[0].mxu0
    %v2928 = vadd.f32 %v2840, %v2927
    %v2929 = vpop.f32.mrb[0].mxu0
    %2930 = vmatprep.mubr.bf16.mxu0 %v1115
    %2931 = vmatmul.mubr.bf16.gmra.mrb[0].mxu0 %v1114
    %v2932 = vpop.f32.mrb[0].mxu0
    %v2933 = vadd.f32 %v2845, %v2932
    %v2934 = vpop.f32.mrb[0].mxu0
    %v2935 = vpop.f32.mrb[0].mxu0
    %v2936 = vadd.f32 %v2848, %v2935
    %v2937 = vpop.f32.mrb[0].mxu0
    %2938 = vmatprep.mubr.bf16.mxu0 %v1139
    %2939 = vmatmul.mubr.bf16.gmra.mrb[0].mxu0 %v1138
    %v2940 = vpop.f32.mrb[0].mxu0
    %v2941 = vadd.f32 %v2853, %v2940
    %v2942 = vpop.f32.mrb[0].mxu0
    %v2943 = vpop.f32.mrb[0].mxu0
    %v2944 = vadd.f32 %v2856, %v2943
    %v2945 = vpop.f32.mrb[0].mxu0
    %2946 = vmatprep.mubr.bf16.mxu0 %v1163
    %2947 = vmatmul.mubr.bf16.gmra.mrb[0].mxu0 %v1162
    %v2948 = vpop.f32.mrb[0].mxu0
    %v2949 = vadd.f32 %v2861, %v2948
    %v2950 = vpop.f32.mrb[0].mxu0
    %v2951 = vpop.f32.mrb[0].mxu0
    %v2952 = vadd.f32 %v2864, %v2951
    %v2953 = vpop.f32.mrb[0].mxu0
    %2954 = vmatprep.mubr.bf16.mxu0 %v1187
    %2955 = vmatmul.mubr.bf16.gmra.mrb[0].mxu0 %v1186
    %v2956 = vpop.f32.mrb[0].mxu0
    %v2957 = vadd.f32 %v2869, %v2956
    %v2958 = vpop.f32.mrb[0].mxu0
    %v2959 = vpop.f32.mrb[0].mxu0
    %v2960 = vpop.f32.mrb[0].mxu0
    %2961 = vdwg.mxu0
    %2962 = vmatprep.subr.bf16.mxu0 0
    %2963 = vmatpush1.bf16.msra.mxu0 %v2218
    %2964 = vmatprep.subr.bf16.mxu0 0
    %2965 = vmatpush1.bf16.msra.mxu0 %v2219
    %2966 = vmatprep.subr.bf16.mxu0 0
    %2967 = vmatpush1.bf16.msra.mxu0 %v2220
    %2968 = vmatprep.subr.bf16.mxu0 0
    %2969 = vmatpush1.bf16.msra.mxu0 %v2221
    %2970 = vmatprep.subr.bf16.mxu0 0
    %2971 = vmatpush1.bf16.msra.mxu0 %v2222
    %2972 = vmatprep.subr.bf16.mxu0 0
    %2973 = vmatpush1.bf16.msra.mxu0 %v2223
    %2974 = vmatprep.subr.bf16.mxu0 0
    %2975 = vmatpush1.bf16.msra.mxu0 %v2224
    %2976 = vmatprep.subr.bf16.mxu0 0
    %2977 = vmatpush1.bf16.msra.mxu0 %v2225
    %2978 = vmatprep.subr.bf16.mxu0 0
    %2979 = vmatpush1.bf16.msra.mxu0 %v2226
    %2980 = vmatprep.subr.bf16.mxu0 0
    %2981 = vmatpush1.bf16.msra.mxu0 %v2227
    %2982 = vmatprep.subr.bf16.mxu0 0
    %2983 = vmatpush1.bf16.msra.mxu0 %v2228
    %2984 = vmatprep.subr.bf16.mxu0 0
    %2985 = vmatpush1.bf16.msra.mxu0 %v2229
    %2986 = vmatprep.subr.bf16.mxu0 0
    %2987 = vmatpush1.bf16.msra.mxu0 %v2230
    %2988 = vmatprep.subr.bf16.mxu0 0
    %2989 = vmatpush1.bf16.msra.mxu0 %v2231
    %2990 = vmatprep.subr.bf16.mxu0 0
    %2991 = vmatpush1.bf16.msra.mxu0 %v2232
    %2992 = vmatprep.subr.bf16.mxu0 0
    %2993 = vmatpush1.bf16.msra.mxu0 %v2233
    %2994 = vmatprep.mubr.bf16.mxu0 %v1045
    %2995 = vmatmul.mubr.bf16.gmra.mrb[0].mxu0 %v1044
    %v2996 = vpop.f32.mrb[0].mxu0
    %v2997 = vadd.f32 %v2909, %v2996
    %v2998 = vpop.f32.mrb[0].mxu0
    %v2999 = vpop.f32.mrb[0].mxu0
    %v3000 = vadd.f32 %v2912, %v2999
    %v3001 = vpop.f32.mrb[0].mxu0
    %3002 = vmatprep.mubr.bf16.mxu0 %v1069
    %3003 = vmatmul.mubr.bf16.gmra.mrb[0].mxu0 %v1068
    %v3004 = vpop.f32.mrb[0].mxu0
    %v3005 = vadd.f32 %v2917, %v3004
    %v3006 = vpop.f32.mrb[0].mxu0
    %v3007 = vpop.f32.mrb[0].mxu0
    %v3008 = vadd.f32 %v2920, %v3007
    %v3009 = vpop.f32.mrb[0].mxu0
    %3010 = vmatprep.mubr.bf16.mxu0 %v1093
    %3011 = vmatmul.mubr.bf16.gmra.mrb[0].mxu0 %v1092
    %v3012 = vpop.f32.mrb[0].mxu0
    %v3013 = vadd.f32 %v2925, %v3012
    %v3014 = vpop.f32.mrb[0].mxu0
    %v3015 = vpop.f32.mrb[0].mxu0
    %v3016 = vadd.f32 %v2928, %v3015
    %v3017 = vpop.f32.mrb[0].mxu0
    %3018 = vmatprep.mubr.bf16.mxu0 %v1117
    %3019 = vmatmul.mubr.bf16.gmra.mrb[0].mxu0 %v1116
    %v3020 = vpop.f32.mrb[0].mxu0
    %v3021 = vadd.f32 %v2933, %v3020
    %v3022 = vpop.f32.mrb[0].mxu0
    %v3023 = vpop.f32.mrb[0].mxu0
    %v3024 = vadd.f32 %v2936, %v3023
    %v3025 = vpop.f32.mrb[0].mxu0
    %3026 = vmatprep.mubr.bf16.mxu0 %v1141
    %3027 = vmatmul.mubr.bf16.gmra.mrb[0].mxu0 %v1140
    %v3028 = vpop.f32.mrb[0].mxu0
    %v3029 = vadd.f32 %v2941, %v3028
    %v3030 = vpop.f32.mrb[0].mxu0
    %v3031 = vpop.f32.mrb[0].mxu0
    %v3032 = vadd.f32 %v2944, %v3031
    %v3033 = vpop.f32.mrb[0].mxu0
    %3034 = vmatprep.mubr.bf16.mxu0 %v1165
    %3035 = vmatmul.mubr.bf16.gmra.mrb[0].mxu0 %v1164
    %v3036 = vpop.f32.mrb[0].mxu0
    %v3037 = vadd.f32 %v2949, %v3036
    %v3038 = vpop.f32.mrb[0].mxu0
    %v3039 = vpop.f32.mrb[0].mxu0
    %v3040 = vadd.f32 %v2952, %v3039
    %v3041 = vpop.f32.mrb[0].mxu0
    %3042 = vmatprep.mubr.bf16.mxu0 %v1189
    %3043 = vmatmul.mubr.bf16.gmra.mrb[0].mxu0 %v1188
    %v3044 = vpop.f32.mrb[0].mxu0
    %v3045 = vadd.f32 %v2957, %v3044
    %v3046 = vpop.f32.mrb[0].mxu0
    %v3047 = vpop.f32.mrb[0].mxu0
    %v3048 = vpop.f32.mrb[0].mxu0
    %3049 = vdwg.mxu0
    %3050 = vmatprep.subr.bf16.mxu0 0
    %3051 = vmatpush1.bf16.msra.mxu0 %v2234
    %3052 = vmatprep.subr.bf16.mxu0 0
    %3053 = vmatpush1.bf16.msra.mxu0 %v2235
    %3054 = vmatprep.subr.bf16.mxu0 0
    %3055 = vmatpush1.bf16.msra.mxu0 %v2236
    %3056 = vmatprep.subr.bf16.mxu0 0
    %3057 = vmatpush1.bf16.msra.mxu0 %v2237
    %3058 = vmatprep.subr.bf16.mxu0 0
    %3059 = vmatpush1.bf16.msra.mxu0 %v2238
    %3060 = vmatprep.subr.bf16.mxu0 0
    %3061 = vmatpush1.bf16.msra.mxu0 %v2239
    %3062 = vmatprep.subr.bf16.mxu0 0
    %3063 = vmatpush1.bf16.msra.mxu0 %v2240
    %3064 = vmatprep.subr.bf16.mxu0 0
    %3065 = vmatpush1.bf16.msra.mxu0 %v2241
    %3066 = vmatprep.subr.bf16.mxu0 0
    %3067 = vmatpush1.bf16.msra.mxu0 %v2242
    %3068 = vmatprep.subr.bf16.mxu0 0
    %3069 = vmatpush1.bf16.msra.mxu0 %v2243
    %3070 = vmatprep.subr.bf16.mxu0 0
    %3071 = vmatpush1.bf16.msra.mxu0 %v2244
    %3072 = vmatprep.subr.bf16.mxu0 0
    %3073 = vmatpush1.bf16.msra.mxu0 %v2245
    %3074 = vmatprep.subr.bf16.mxu0 0
    %3075 = vmatpush1.bf16.msra.mxu0 %v2246
    %3076 = vmatprep.subr.bf16.mxu0 0
    %3077 = vmatpush1.bf16.msra.mxu0 %v2247
    %3078 = vmatprep.subr.bf16.mxu0 0
    %3079 = vmatpush1.bf16.msra.mxu0 %v2248
    %3080 = vmatprep.subr.bf16.mxu0 0
    %3081 = vmatpush1.bf16.msra.mxu0 %v2249
    %3082 = vmatprep.mubr.bf16.mxu0 %v1047
    %3083 = vmatmul.mubr.bf16.gmra.mrb[0].mxu0 %v1046
    %v3084 = vpop.f32.mrb[0].mxu0
    %v3085 = vadd.f32 %v2997, %v3084
    %v3086 = vpop.f32.mrb[0].mxu0
    %v3087 = vpop.f32.mrb[0].mxu0
    %v3088 = vadd.f32 %v3000, %v3087
    %v3089 = vpop.f32.mrb[0].mxu0
    %3090 = vmatprep.mubr.bf16.mxu0 %v1071
    %3091 = vmatmul.mubr.bf16.gmra.mrb[0].mxu0 %v1070
    %v3092 = vpop.f32.mrb[0].mxu0
    %v3093 = vadd.f32 %v3005, %v3092
    %v3094 = vpop.f32.mrb[0].mxu0
    %v3095 = vpop.f32.mrb[0].mxu0
    %v3096 = vadd.f32 %v3008, %v3095
    %v3097 = vpop.f32.mrb[0].mxu0
    %3098 = vmatprep.mubr.bf16.mxu0 %v1095
    %3099 = vmatmul.mubr.bf16.gmra.mrb[0].mxu0 %v1094
    %v3100 = vpop.f32.mrb[0].mxu0
    %v3101 = vadd.f32 %v3013, %v3100
    %v3102 = vpop.f32.mrb[0].mxu0
    %v3103 = vpop.f32.mrb[0].mxu0
    %v3104 = vadd.f32 %v3016, %v3103
    %v3105 = vpop.f32.mrb[0].mxu0
    %3106 = vmatprep.mubr.bf16.mxu0 %v1119
    %3107 = vmatmul.mubr.bf16.gmra.mrb[0].mxu0 %v1118
    %v3108 = vpop.f32.mrb[0].mxu0
    %v3109 = vadd.f32 %v3021, %v3108
    %v3110 = vpop.f32.mrb[0].mxu0
    %v3111 = vpop.f32.mrb[0].mxu0
    %v3112 = vadd.f32 %v3024, %v3111
    %v3113 = vpop.f32.mrb[0].mxu0
    %3114 = vmatprep.mubr.bf16.mxu0 %v1143
    %3115 = vmatmul.mubr.bf16.gmra.mrb[0].mxu0 %v1142
    %v3116 = vpop.f32.mrb[0].mxu0
    %v3117 = vadd.f32 %v3029, %v3116
    %v3118 = vpop.f32.mrb[0].mxu0
    %v3119 = vpop.f32.mrb[0].mxu0
    %v3120 = vadd.f32 %v3032, %v3119
    %v3121 = vpop.f32.mrb[0].mxu0
    %3122 = vmatprep.mubr.bf16.mxu0 %v1167
    %3123 = vmatmul.mubr.bf16.gmra.mrb[0].mxu0 %v1166
    %v3124 = vpop.f32.mrb[0].mxu0
    %v3125 = vadd.f32 %v3037, %v3124
    %v3126 = vpop.f32.mrb[0].mxu0
    %v3127 = vpop.f32.mrb[0].mxu0
    %v3128 = vadd.f32 %v3040, %v3127
    %v3129 = vpop.f32.mrb[0].mxu0
    %3130 = vmatprep.mubr.bf16.mxu0 %v1191
    %3131 = vmatmul.mubr.bf16.gmra.mrb[0].mxu0 %v1190
    %v3132 = vpop.f32.mrb[0].mxu0
    %v3133 = vadd.f32 %v3045, %v3132
    %v3134 = vpop.f32.mrb[0].mxu0
    %v3135 = vpop.f32.mrb[0].mxu0
    %v3136 = vpop.f32.mrb[0].mxu0
    %3137 = vdwg.mxu0
    %3138 = vmatprep.subr.bf16.mxu0 0
    %3139 = vmatpush1.bf16.msra.mxu0 %v2250
    %3140 = vmatprep.subr.bf16.mxu0 0
    %3141 = vmatpush1.bf16.msra.mxu0 %v2251
    %3142 = vmatprep.subr.bf16.mxu0 0
    %3143 = vmatpush1.bf16.msra.mxu0 %v2252
    %3144 = vmatprep.subr.bf16.mxu0 0
    %3145 = vmatpush1.bf16.msra.mxu0 %v2253
    %3146 = vmatprep.subr.bf16.mxu0 0
    %3147 = vmatpush1.bf16.msra.mxu0 %v2254
    %3148 = vmatprep.subr.bf16.mxu0 0
    %3149 = vmatpush1.bf16.msra.mxu0 %v2255
    %3150 = vmatprep.subr.bf16.mxu0 0
    %3151 = vmatpush1.bf16.msra.mxu0 %v2256
    %3152 = vmatprep.subr.bf16.mxu0 0
    %3153 = vmatpush1.bf16.msra.mxu0 %v2257
    %3154 = vmatprep.subr.bf16.mxu0 0
    %3155 = vmatpush1.bf16.msra.mxu0 %v2258
    %3156 = vmatprep.subr.bf16.mxu0 0
    %3157 = vmatpush1.bf16.msra.mxu0 %v2259
    %3158 = vmatprep.subr.bf16.mxu0 0
    %3159 = vmatpush1.bf16.msra.mxu0 %v2260
    %3160 = vmatprep.subr.bf16.mxu0 0
    %3161 = vmatpush1.bf16.msra.mxu0 %v2261
    %3162 = vmatprep.subr.bf16.mxu0 0
    %3163 = vmatpush1.bf16.msra.mxu0 %v2262
    %3164 = vmatprep.subr.bf16.mxu0 0
    %3165 = vmatpush1.bf16.msra.mxu0 %v2263
    %3166 = vmatprep.subr.bf16.mxu0 0
    %3167 = vmatpush1.bf16.msra.mxu0 %v2264
    %3168 = vmatprep.subr.bf16.mxu0 0
    %3169 = vmatpush1.bf16.msra.mxu0 %v2265
    %3170 = vmatprep.mubr.bf16.mxu0 %v1049
    %3171 = vmatmul.mubr.bf16.gmra.mrb[0].mxu0 %v1048
    %v3172 = vpop.f32.mrb[0].mxu0
    %v3173 = vadd.f32 %v3085, %v3172
    %v3174 = vpop.f32.mrb[0].mxu0
    %v3175 = vpop.f32.mrb[0].mxu0
    %v3176 = vadd.f32 %v3088, %v3175
    %v3177 = vpop.f32.mrb[0].mxu0
    %3178 = vmatprep.mubr.bf16.mxu0 %v1073
    %3179 = vmatmul.mubr.bf16.gmra.mrb[0].mxu0 %v1072
    %v3180 = vpop.f32.mrb[0].mxu0
    %v3181 = vadd.f32 %v3093, %v3180
    %v3182 = vpop.f32.mrb[0].mxu0
    %v3183 = vpop.f32.mrb[0].mxu0
    %v3184 = vadd.f32 %v3096, %v3183
    %v3185 = vpop.f32.mrb[0].mxu0
    %3186 = vmatprep.mubr.bf16.mxu0 %v1097
    %3187 = vmatmul.mubr.bf16.gmra.mrb[0].mxu0 %v1096
    %v3188 = vpop.f32.mrb[0].mxu0
    %v3189 = vadd.f32 %v3101, %v3188
    %v3190 = vpop.f32.mrb[0].mxu0
    %v3191 = vpop.f32.mrb[0].mxu0
    %v3192 = vadd.f32 %v3104, %v3191
    %v3193 = vpop.f32.mrb[0].mxu0
    %3194 = vmatprep.mubr.bf16.mxu0 %v1121
    %3195 = vmatmul.mubr.bf16.gmra.mrb[0].mxu0 %v1120
    %v3196 = vpop.f32.mrb[0].mxu0
    %v3197 = vadd.f32 %v3109, %v3196
    %v3198 = vpop.f32.mrb[0].mxu0
    %v3199 = vpop.f32.mrb[0].mxu0
    %v3200 = vadd.f32 %v3112, %v3199
    %v3201 = vpop.f32.mrb[0].mxu0
    %3202 = vmatprep.mubr.bf16.mxu0 %v1145
    %3203 = vmatmul.mubr.bf16.gmra.mrb[0].mxu0 %v1144
    %v3204 = vpop.f32.mrb[0].mxu0
    %v3205 = vadd.f32 %v3117, %v3204
    %v3206 = vpop.f32.mrb[0].mxu0
    %v3207 = vpop.f32.mrb[0].mxu0
    %v3208 = vadd.f32 %v3120, %v3207
    %v3209 = vpop.f32.mrb[0].mxu0
    %3210 = vmatprep.mubr.bf16.mxu0 %v1169
    %3211 = vmatmul.mubr.bf16.gmra.mrb[0].mxu0 %v1168
    %v3212 = vpop.f32.mrb[0].mxu0
    %v3213 = vadd.f32 %v3125, %v3212
    %v3214 = vpop.f32.mrb[0].mxu0
    %v3215 = vpop.f32.mrb[0].mxu0
    %v3216 = vadd.f32 %v3128, %v3215
    %v3217 = vpop.f32.mrb[0].mxu0
    %3218 = vmatprep.mubr.bf16.mxu0 %v1193
    %3219 = vmatmul.mubr.bf16.gmra.mrb[0].mxu0 %v1192
    %v3220 = vpop.f32.mrb[0].mxu0
    %v3221 = vadd.f32 %v3133, %v3220
    %v3222 = vpop.f32.mrb[0].mxu0
    %v3223 = vpop.f32.mrb[0].mxu0
    %v3224 = vpop.f32.mrb[0].mxu0
    %3225 = vdwg.mxu0
    %3226 = vmatprep.subr.bf16.mxu0 0
    %3227 = vmatpush1.bf16.msra.mxu0 %v2266
    %3228 = vmatprep.subr.bf16.mxu0 0
    %3229 = vmatpush1.bf16.msra.mxu0 %v2267
    %3230 = vmatprep.subr.bf16.mxu0 0
    %3231 = vmatpush1.bf16.msra.mxu0 %v2268
    %3232 = vmatprep.subr.bf16.mxu0 0
    %3233 = vmatpush1.bf16.msra.mxu0 %v2269
    %3234 = vmatprep.subr.bf16.mxu0 0
    %3235 = vmatpush1.bf16.msra.mxu0 %v2270
    %3236 = vmatprep.subr.bf16.mxu0 0
    %3237 = vmatpush1.bf16.msra.mxu0 %v2271
    %3238 = vmatprep.subr.bf16.mxu0 0
    %3239 = vmatpush1.bf16.msra.mxu0 %v2272
    %3240 = vmatprep.subr.bf16.mxu0 0
    %3241 = vmatpush1.bf16.msra.mxu0 %v2273
    %3242 = vmatprep.subr.bf16.mxu0 0
    %3243 = vmatpush1.bf16.msra.mxu0 %v2274
    %3244 = vmatprep.subr.bf16.mxu0 0
    %3245 = vmatpush1.bf16.msra.mxu0 %v2275
    %3246 = vmatprep.subr.bf16.mxu0 0
    %3247 = vmatpush1.bf16.msra.mxu0 %v2276
    %3248 = vmatprep.subr.bf16.mxu0 0
    %3249 = vmatpush1.bf16.msra.mxu0 %v2277
    %3250 = vmatprep.subr.bf16.mxu0 0
    %3251 = vmatpush1.bf16.msra.mxu0 %v2278
    %3252 = vmatprep.subr.bf16.mxu0 0
    %3253 = vmatpush1.bf16.msra.mxu0 %v2279
    %3254 = vmatprep.subr.bf16.mxu0 0
    %3255 = vmatpush1.bf16.msra.mxu0 %v2280
    %3256 = vmatprep.subr.bf16.mxu0 0
    %3257 = vmatpush1.bf16.msra.mxu0 %v2281
    %3258 = vmatprep.mubr.bf16.mxu0 %v1051
    %3259 = vmatmul.mubr.bf16.gmra.mrb[0].mxu0 %v1050
    %v3260 = vpop.f32.mrb[0].mxu0
    %v3261 = vadd.f32 %v3173, %v3260
    %v3262 = vpop.f32.mrb[0].mxu0
    %v3263 = vpop.f32.mrb[0].mxu0
    %v3264 = vadd.f32 %v3176, %v3263
    %v3265 = vpop.f32.mrb[0].mxu0
    %3266 = vmatprep.mubr.bf16.mxu0 %v1075
    %3267 = vmatmul.mubr.bf16.gmra.mrb[0].mxu0 %v1074
    %v3268 = vpop.f32.mrb[0].mxu0
    %v3269 = vadd.f32 %v3181, %v3268
    %v3270 = vpop.f32.mrb[0].mxu0
    %v3271 = vpop.f32.mrb[0].mxu0
    %v3272 = vadd.f32 %v3184, %v3271
    %v3273 = vpop.f32.mrb[0].mxu0
    %3274 = vmatprep.mubr.bf16.mxu0 %v1099
    %3275 = vmatmul.mubr.bf16.gmra.mrb[0].mxu0 %v1098
    %v3276 = vpop.f32.mrb[0].mxu0
    %v3277 = vadd.f32 %v3189, %v3276
    %v3278 = vpop.f32.mrb[0].mxu0
    %v3279 = vpop.f32.mrb[0].mxu0
    %v3280 = vadd.f32 %v3192, %v3279
    %v3281 = vpop.f32.mrb[0].mxu0
    %3282 = vmatprep.mubr.bf16.mxu0 %v1123
    %3283 = vmatmul.mubr.bf16.gmra.mrb[0].mxu0 %v1122
    %v3284 = vpop.f32.mrb[0].mxu0
    %v3285 = vadd.f32 %v3197, %v3284
    %v3286 = vpop.f32.mrb[0].mxu0
    %v3287 = vpop.f32.mrb[0].mxu0
    %v3288 = vadd.f32 %v3200, %v3287
    %v3289 = vpop.f32.mrb[0].mxu0
    %3290 = vmatprep.mubr.bf16.mxu0 %v1147
    %3291 = vmatmul.mubr.bf16.gmra.mrb[0].mxu0 %v1146
    %v3292 = vpop.f32.mrb[0].mxu0
    %v3293 = vadd.f32 %v3205, %v3292
    %v3294 = vpop.f32.mrb[0].mxu0
    %v3295 = vpop.f32.mrb[0].mxu0
    %v3296 = vadd.f32 %v3208, %v3295
    %v3297 = vpop.f32.mrb[0].mxu0
    %3298 = vmatprep.mubr.bf16.mxu0 %v1171
    %3299 = vmatmul.mubr.bf16.gmra.mrb[0].mxu0 %v1170
    %v3300 = vpop.f32.mrb[0].mxu0
    %v3301 = vadd.f32 %v3213, %v3300
    %v3302 = vpop.f32.mrb[0].mxu0
    %v3303 = vpop.f32.mrb[0].mxu0
    %v3304 = vadd.f32 %v3216, %v3303
    %v3305 = vpop.f32.mrb[0].mxu0
    %3306 = vmatprep.mubr.bf16.mxu0 %v1195
    %3307 = vmatmul.mubr.bf16.gmra.mrb[0].mxu0 %v1194
    %v3308 = vpop.f32.mrb[0].mxu0
    %v3309 = vadd.f32 %v3221, %v3308
    %v3310 = vpop.f32.mrb[0].mxu0
    %v3311 = vpop.f32.mrb[0].mxu0
    %v3312 = vpop.f32.mrb[0].mxu0
    %3313 = vdwg.mxu0
    %3314 = vmatprep.subr.bf16.mxu0 0
    %3315 = vmatpush1.bf16.msra.mxu0 %v2282
    %3316 = vmatprep.subr.bf16.mxu0 0
    %3317 = vmatpush1.bf16.msra.mxu0 %v2283
    %3318 = vmatprep.subr.bf16.mxu0 0
    %3319 = vmatpush1.bf16.msra.mxu0 %v2284
    %3320 = vmatprep.subr.bf16.mxu0 0
    %3321 = vmatpush1.bf16.msra.mxu0 %v2285
    %3322 = vmatprep.subr.bf16.mxu0 0
    %3323 = vmatpush1.bf16.msra.mxu0 %v2286
    %3324 = vmatprep.subr.bf16.mxu0 0
    %3325 = vmatpush1.bf16.msra.mxu0 %v2287
    %3326 = vmatprep.subr.bf16.mxu0 0
    %3327 = vmatpush1.bf16.msra.mxu0 %v2288
    %3328 = vmatprep.subr.bf16.mxu0 0
    %3329 = vmatpush1.bf16.msra.mxu0 %v2289
    %3330 = vmatprep.subr.bf16.mxu0 0
    %3331 = vmatpush1.bf16.msra.mxu0 %v2290
    %3332 = vmatprep.subr.bf16.mxu0 0
    %3333 = vmatpush1.bf16.msra.mxu0 %v2291
    %3334 = vmatprep.subr.bf16.mxu0 0
    %3335 = vmatpush1.bf16.msra.mxu0 %v2292
    %3336 = vmatprep.subr.bf16.mxu0 0
    %3337 = vmatpush1.bf16.msra.mxu0 %v2293
    %3338 = vmatprep.subr.bf16.mxu0 0
    %3339 = vmatpush1.bf16.msra.mxu0 %v2294
    %3340 = vmatprep.subr.bf16.mxu0 0
    %3341 = vmatpush1.bf16.msra.mxu0 %v2295
    %3342 = vmatprep.subr.bf16.mxu0 0
    %3343 = vmatpush1.bf16.msra.mxu0 %v2296
    %3344 = vmatprep.subr.bf16.mxu0 0
    %3345 = vmatpush1.bf16.msra.mxu0 %v2297
    %3346 = vmatprep.mubr.bf16.mxu0 %v1053
    %3347 = vmatmul.mubr.bf16.gmra.mrb[0].mxu0 %v1052
    %v3348 = vpop.f32.mrb[0].mxu0
    %v3349 = vadd.f32 %v3261, %v3348
    %v3350 = vpop.f32.mrb[0].mxu0
    %v3351 = vpop.f32.mrb[0].mxu0
    %v3352 = vadd.f32 %v3264, %v3351
    %v3353 = vpop.f32.mrb[0].mxu0
    %3354 = vmatprep.mubr.bf16.mxu0 %v1077
    %3355 = vmatmul.mubr.bf16.gmra.mrb[0].mxu0 %v1076
    %v3356 = vpop.f32.mrb[0].mxu0
    %v3357 = vadd.f32 %v3269, %v3356
    %v3358 = vpop.f32.mrb[0].mxu0
    %v3359 = vpop.f32.mrb[0].mxu0
    %v3360 = vadd.f32 %v3272, %v3359
    %v3361 = vpop.f32.mrb[0].mxu0
    %3362 = vmatprep.mubr.bf16.mxu0 %v1101
    %3363 = vmatmul.mubr.bf16.gmra.mrb[0].mxu0 %v1100
    %v3364 = vpop.f32.mrb[0].mxu0
    %v3365 = vadd.f32 %v3277, %v3364
    %v3366 = vpop.f32.mrb[0].mxu0
    %v3367 = vpop.f32.mrb[0].mxu0
    %v3368 = vadd.f32 %v3280, %v3367
    %v3369 = vpop.f32.mrb[0].mxu0
    %3370 = vmatprep.mubr.bf16.mxu0 %v1125
    %3371 = vmatmul.mubr.bf16.gmra.mrb[0].mxu0 %v1124
    %v3372 = vpop.f32.mrb[0].mxu0
    %v3373 = vadd.f32 %v3285, %v3372
    %v3374 = vpop.f32.mrb[0].mxu0
    %v3375 = vpop.f32.mrb[0].mxu0
    %v3376 = vadd.f32 %v3288, %v3375
    %v3377 = vpop.f32.mrb[0].mxu0
    %3378 = vmatprep.mubr.bf16.mxu0 %v1149
    %3379 = vmatmul.mubr.bf16.gmra.mrb[0].mxu0 %v1148
    %v3380 = vpop.f32.mrb[0].mxu0
    %v3381 = vadd.f32 %v3293, %v3380
    %v3382 = vpop.f32.mrb[0].mxu0
    %v3383 = vpop.f32.mrb[0].mxu0
    %v3384 = vadd.f32 %v3296, %v3383
    %v3385 = vpop.f32.mrb[0].mxu0
    %3386 = vmatprep.mubr.bf16.mxu0 %v1173
    %3387 = vmatmul.mubr.bf16.gmra.mrb[0].mxu0 %v1172
    %v3388 = vpop.f32.mrb[0].mxu0
    %v3389 = vadd.f32 %v3301, %v3388
    %v3390 = vpop.f32.mrb[0].mxu0
    %v3391 = vpop.f32.mrb[0].mxu0
    %v3392 = vadd.f32 %v3304, %v3391
    %v3393 = vpop.f32.mrb[0].mxu0
    %3394 = vmatprep.mubr.bf16.mxu0 %v1197
    %3395 = vmatmul.mubr.bf16.gmra.mrb[0].mxu0 %v1196
    %v3396 = vpop.f32.mrb[0].mxu0
    %v3397 = vadd.f32 %v3309, %v3396
    %v3398 = vpop.f32.mrb[0].mxu0
    %v3399 = vpop.f32.mrb[0].mxu0
    %v3400 = vpop.f32.mrb[0].mxu0
    %3401 = vdwg.mxu0
    %3402 = vmatprep.subr.bf16.mxu0 0
    %3403 = vmatpush1.bf16.msra.mxu0 %v2298
    %3404 = vmatprep.subr.bf16.mxu0 0
    %3405 = vmatpush1.bf16.msra.mxu0 %v2299
    %3406 = vmatprep.subr.bf16.mxu0 0
    %3407 = vmatpush1.bf16.msra.mxu0 %v2300
    %3408 = vmatprep.subr.bf16.mxu0 0
    %3409 = vmatpush1.bf16.msra.mxu0 %v2301
    %3410 = vmatprep.subr.bf16.mxu0 0
    %3411 = vmatpush1.bf16.msra.mxu0 %v2302
    %3412 = vmatprep.subr.bf16.mxu0 0
    %3413 = vmatpush1.bf16.msra.mxu0 %v2303
    %3414 = vmatprep.subr.bf16.mxu0 0
    %3415 = vmatpush1.bf16.msra.mxu0 %v2304
    %3416 = vmatprep.subr.bf16.mxu0 0
    %3417 = vmatpush1.bf16.msra.mxu0 %v2305
    %3418 = vmatprep.subr.bf16.mxu0 0
    %3419 = vmatpush1.bf16.msra.mxu0 %v2306
    %3420 = vmatprep.subr.bf16.mxu0 0
    %3421 = vmatpush1.bf16.msra.mxu0 %v2307
    %3422 = vmatprep.subr.bf16.mxu0 0
    %3423 = vmatpush1.bf16.msra.mxu0 %v2308
    %3424 = vmatprep.subr.bf16.mxu0 0
    %3425 = vmatpush1.bf16.msra.mxu0 %v2309
    %3426 = vmatprep.subr.bf16.mxu0 0
    %3427 = vmatpush1.bf16.msra.mxu0 %v2310
    %3428 = vmatprep.subr.bf16.mxu0 0
    %3429 = vmatpush1.bf16.msra.mxu0 %v2311
    %3430 = vmatprep.subr.bf16.mxu0 0
    %3431 = vmatpush1.bf16.msra.mxu0 %v2312
    %3432 = vmatprep.subr.bf16.mxu0 0
    %3433 = vmatpush1.bf16.msra.mxu0 %v2313
    %3434 = vmatprep.mubr.bf16.mxu0 %v1055
    %3435 = vmatmul.mubr.bf16.gmra.mrb[0].mxu0 %v1054
    %v3436 = vpop.f32.mrb[0].mxu0
    %v3437 = vadd.f32 %v3349, %v3436
    %v3438 = vpop.f32.mrb[0].mxu0
    %v3439 = vpop.f32.mrb[0].mxu0
    %v3440 = vadd.f32 %v3352, %v3439
    %v3441 = vpop.f32.mrb[0].mxu0
    %3442 = vmatprep.mubr.bf16.mxu0 %v1079
    %3443 = vmatmul.mubr.bf16.gmra.mrb[0].mxu0 %v1078
    %v3444 = vpop.f32.mrb[0].mxu0
    %v3445 = vadd.f32 %v3357, %v3444
    %v3446 = vpop.f32.mrb[0].mxu0
    %v3447 = vpop.f32.mrb[0].mxu0
    %v3448 = vadd.f32 %v3360, %v3447
    %v3449 = vpop.f32.mrb[0].mxu0
    %3450 = vmatprep.mubr.bf16.mxu0 %v1103
    %3451 = vmatmul.mubr.bf16.gmra.mrb[0].mxu0 %v1102
    %v3452 = vpop.f32.mrb[0].mxu0
    %v3453 = vadd.f32 %v3365, %v3452
    %v3454 = vpop.f32.mrb[0].mxu0
    %v3455 = vpop.f32.mrb[0].mxu0
    %v3456 = vadd.f32 %v3368, %v3455
    %v3457 = vpop.f32.mrb[0].mxu0
    %3458 = vmatprep.mubr.bf16.mxu0 %v1127
    %3459 = vmatmul.mubr.bf16.gmra.mrb[0].mxu0 %v1126
    %v3460 = vpop.f32.mrb[0].mxu0
    %v3461 = vadd.f32 %v3373, %v3460
    %v3462 = vpop.f32.mrb[0].mxu0
    %v3463 = vpop.f32.mrb[0].mxu0
    %v3464 = vadd.f32 %v3376, %v3463
    %v3465 = vpop.f32.mrb[0].mxu0
    %3466 = vmatprep.mubr.bf16.mxu0 %v1151
    %3467 = vmatmul.mubr.bf16.gmra.mrb[0].mxu0 %v1150
    %v3468 = vpop.f32.mrb[0].mxu0
    %v3469 = vadd.f32 %v3381, %v3468
    %v3470 = vpop.f32.mrb[0].mxu0
    %v3471 = vpop.f32.mrb[0].mxu0
    %v3472 = vadd.f32 %v3384, %v3471
    %v3473 = vpop.f32.mrb[0].mxu0
    %3474 = vmatprep.mubr.bf16.mxu0 %v1175
    %3475 = vmatmul.mubr.bf16.gmra.mrb[0].mxu0 %v1174
    %v3476 = vpop.f32.mrb[0].mxu0
    %v3477 = vadd.f32 %v3389, %v3476
    %v3478 = vpop.f32.mrb[0].mxu0
    %v3479 = vpop.f32.mrb[0].mxu0
    %v3480 = vadd.f32 %v3392, %v3479
    %v3481 = vpop.f32.mrb[0].mxu0
    %3482 = vmatprep.mubr.bf16.mxu0 %v1199
    %3483 = vmatmul.mubr.bf16.gmra.mrb[0].mxu0 %v1198
    %v3484 = vpop.f32.mrb[0].mxu0
    %v3485 = vadd.f32 %v3397, %v3484
    %v3486 = vpop.f32.mrb[0].mxu0
    %v3487 = vpop.f32.mrb[0].mxu0
    %v3488 = vpop.f32.mrb[0].mxu0
    %3489 = vdwg.mxu0
    %3490 = vmatprep.subr.bf16.mxu0 0
    %3491 = vmatpush1.bf16.msra.mxu0 %v2314
    %3492 = vmatprep.subr.bf16.mxu0 0
    %3493 = vmatpush1.bf16.msra.mxu0 %v2315
    %3494 = vmatprep.subr.bf16.mxu0 0
    %3495 = vmatpush1.bf16.msra.mxu0 %v2316
    %3496 = vmatprep.subr.bf16.mxu0 0
    %3497 = vmatpush1.bf16.msra.mxu0 %v2317
    %3498 = vmatprep.subr.bf16.mxu0 0
    %3499 = vmatpush1.bf16.msra.mxu0 %v2318
    %3500 = vmatprep.subr.bf16.mxu0 0
    %3501 = vmatpush1.bf16.msra.mxu0 %v2319
    %3502 = vmatprep.subr.bf16.mxu0 0
    %3503 = vmatpush1.bf16.msra.mxu0 %v2320
    %3504 = vmatprep.subr.bf16.mxu0 0
    %3505 = vmatpush1.bf16.msra.mxu0 %v2321
    %3506 = vmatprep.subr.bf16.mxu0 0
    %3507 = vmatpush1.bf16.msra.mxu0 %v2322
    %3508 = vmatprep.subr.bf16.mxu0 0
    %3509 = vmatpush1.bf16.msra.mxu0 %v2323
    %3510 = vmatprep.subr.bf16.mxu0 0
    %3511 = vmatpush1.bf16.msra.mxu0 %v2324
    %3512 = vmatprep.subr.bf16.mxu0 0
    %3513 = vmatpush1.bf16.msra.mxu0 %v2325
    %3514 = vmatprep.subr.bf16.mxu0 0
    %3515 = vmatpush1.bf16.msra.mxu0 %v2326
    %3516 = vmatprep.subr.bf16.mxu0 0
    %3517 = vmatpush1.bf16.msra.mxu0 %v2327
    %3518 = vmatprep.subr.bf16.mxu0 0
    %3519 = vmatpush1.bf16.msra.mxu0 %v2328
    %3520 = vmatprep.subr.bf16.mxu0 0
    %3521 = vmatpush1.bf16.msra.mxu0 %v2329
    %3522 = vmatprep.mubr.bf16.mxu0 %v1057
    %3523 = vmatmul.mubr.bf16.gmra.mrb[0].mxu0 %v1056
    %v3524 = vpop.f32.mrb[0].mxu0
    %v3525 = vadd.f32 %v3437, %v3524
    %v3526 = vpop.f32.mrb[0].mxu0
    %v3527 = vpop.f32.mrb[0].mxu0
    %v3528 = vadd.f32 %v3440, %v3527
    %v3529 = vpop.f32.mrb[0].mxu0
    %3530 = vmatprep.mubr.bf16.mxu0 %v1081
    %3531 = vmatmul.mubr.bf16.gmra.mrb[0].mxu0 %v1080
    %v3532 = vpop.f32.mrb[0].mxu0
    %v3533 = vadd.f32 %v3445, %v3532
    %v3534 = vpop.f32.mrb[0].mxu0
    %v3535 = vpop.f32.mrb[0].mxu0
    %v3536 = vadd.f32 %v3448, %v3535
    %v3537 = vpop.f32.mrb[0].mxu0
    %3538 = vmatprep.mubr.bf16.mxu0 %v1105
    %3539 = vmatmul.mubr.bf16.gmra.mrb[0].mxu0 %v1104
    %v3540 = vpop.f32.mrb[0].mxu0
    %v3541 = vadd.f32 %v3453, %v3540
    %v3542 = vpop.f32.mrb[0].mxu0
    %v3543 = vpop.f32.mrb[0].mxu0
    %v3544 = vadd.f32 %v3456, %v3543
    %v3545 = vpop.f32.mrb[0].mxu0
    %3546 = vmatprep.mubr.bf16.mxu0 %v1129
    %3547 = vmatmul.mubr.bf16.gmra.mrb[0].mxu0 %v1128
    %v3548 = vpop.f32.mrb[0].mxu0
    %v3549 = vadd.f32 %v3461, %v3548
    %v3550 = vpop.f32.mrb[0].mxu0
    %v3551 = vpop.f32.mrb[0].mxu0
    %v3552 = vadd.f32 %v3464, %v3551
    %v3553 = vpop.f32.mrb[0].mxu0
    %3554 = vmatprep.mubr.bf16.mxu0 %v1153
    %3555 = vmatmul.mubr.bf16.gmra.mrb[0].mxu0 %v1152
    %v3556 = vpop.f32.mrb[0].mxu0
    %v3557 = vadd.f32 %v3469, %v3556
    %v3558 = vpop.f32.mrb[0].mxu0
    %v3559 = vpop.f32.mrb[0].mxu0
    %v3560 = vadd.f32 %v3472, %v3559
    %v3561 = vpop.f32.mrb[0].mxu0
    %3562 = vmatprep.mubr.bf16.mxu0 %v1177
    %3563 = vmatmul.mubr.bf16.gmra.mrb[0].mxu0 %v1176
    %v3564 = vpop.f32.mrb[0].mxu0
    %v3565 = vadd.f32 %v3477, %v3564
    %v3566 = vpop.f32.mrb[0].mxu0
    %v3567 = vpop.f32.mrb[0].mxu0
    %v3568 = vadd.f32 %v3480, %v3567
    %v3569 = vpop.f32.mrb[0].mxu0
    %3570 = vmatprep.mubr.bf16.mxu0 %v1201
    %3571 = vmatmul.mubr.bf16.gmra.mrb[0].mxu0 %v1200
    %v3572 = vpop.f32.mrb[0].mxu0
    %v3573 = vadd.f32 %v3485, %v3572
    %v3574 = vpop.f32.mrb[0].mxu0
    %v3575 = vpop.f32.mrb[0].mxu0
    %v3576 = vpop.f32.mrb[0].mxu0
    %3577 = vdwg.mxu0
    %v3578 = vld [vmem:[%s3] sm:$0x3]
    %vm3579 = vcmask 801792
    %v3581 = vsel %vm3579, %v3578, 0
    %vm3583 = vcmask 1041408
    %v3585 = vsel %vm3583, %v3573, 0
    %3587 = vmatprep.subr.mxu0 0.0
    %3588 = vmatpush1.msra.mxu0 %v3525
    %3589 = vmatprep.subr.mxu0 0.0
    %3590 = vmatpush1.msra.mxu0 %v3528
    %3591 = vmatprep.subr.mxu0 0.0
    %3592 = vmatpush1.msra.mxu0 %v3533
    %3593 = vmatprep.subr.mxu0 0.0
    %3594 = vmatpush1.msra.mxu0 %v3536
    %3595 = vmatprep.subr.mxu0 0.0
    %3596 = vmatpush1.msra.mxu0 %v3541
    %3597 = vmatprep.subr.mxu0 0.0
    %3598 = vmatpush1.msra.mxu0 %v3544
    %3599 = vmatprep.subr.mxu0 0.0
    %3600 = vmatpush1.msra.mxu0 %v3549
    %3601 = vmatprep.subr.mxu0 0.0
    %3602 = vmatpush1.msra.mxu0 %v3552
    %3603 = vmatprep.subr.mxu0 0.0
    %3604 = vmatpush1.msra.mxu0 %v3557
    %3605 = vmatprep.subr.mxu0 0.0
    %3606 = vmatpush1.msra.mxu0 %v3560
    %3607 = vmatprep.subr.mxu0 0.0
    %3608 = vmatpush1.msra.mxu0 %v3565
    %3609 = vmatprep.subr.mxu0 0.0
    %3610 = vmatpush1.msra.mxu0 %v3568
    %3611 = vmatprep.subr.mxu0 0.0
    %3612 = vmatpush1.msra.mxu0 %v3585
    %3613 = vmatprep.subr.mxu0 0.0
    %3614 = vmatpush1.msra.mxu0 0.0
    %3615 = vmatprep.subr.mxu0 0.0
    %3616 = vmatpush1.msra.mxu0 0.0
    %3617 = vmatprep.subr.mxu0 0.0
    %3618 = vmatpush1.msra.mxu0 0.0
    %3619 = vmatprep.subr.mxu0 0.0
    %3620 = vmatpush1.msra.mxu0 0.0
    %3621 = vmatprep.subr.mxu0 0.0
    %3622 = vmatpush1.msra.mxu0 0.0
    %3623 = vmatprep.subr.mxu0 0.0
    %3624 = vmatpush1.msra.mxu0 0.0
    %3625 = vmatprep.subr.mxu0 0.0
    %3626 = vmatpush1.msra.mxu0 0.0
    %3627 = vmatprep.subr.mxu0 0.0
    %3628 = vmatpush1.msra.mxu0 0.0
    %3629 = vmatprep.subr.mxu0 0.0
    %3630 = vmatpush1.msra.mxu0 0.0
    %3631 = vmatprep.subr.mxu0 0.0
    %3632 = vmatpush1.msra.mxu0 0.0
    %3633 = vmatprep.subr.mxu0 0.0
    %3634 = vmatpush1.msra.mxu0 0.0
    %3635 = vmatprep.subr.mxu0 0.0
    %3636 = vmatpush1.msra.mxu0 0.0
    %3637 = vmatprep.subr.mxu0 0.0
    %3638 = vmatpush1.msra.mxu0 0.0
    %3639 = vmatprep.subr.mxu0 0.0
    %3640 = vmatpush1.msra.mxu0 0.0
    %3641 = vmatprep.subr.mxu0 0.0
    %3642 = vmatpush1.msra.mxu0 0.0
    %3643 = vmatprep.subr.mxu0 0.0
    %3644 = vmatpush1.msra.mxu0 0.0
    %3645 = vmatprep.subr.mxu0 0.0
    %3646 = vmatpush1.msra.mxu0 0.0
    %3647 = vmatprep.subr.mxu0 0.0
    %3648 = vmatpush1.msra.mxu0 0.0
    %3649 = vmatprep.subr.mxu0 0.0
    %3650 = vmatpush1.msra.mxu0 0.0
    %3651 = vmatprep.mubr.f32.mxu0 0.0
    %3652 = vmatmul.mubr.f32.gmra.mrb[0].mxu0 %v3581
    %v3653 = vpop.f32.mrb[0].mxu0
    %v3654 = vadd.f32 0.0, %v3653
    %v3655 = vpop.f32.mrb[0].mxu0
    %3656 = vdwg.mxu0
    %v3657 = vmul.f32 %v3654, %v3654
    %v3658 = vsel %vm3583, %v3657, 0.0
    %3659 = vadd.xlane.f32.xlu0 %v3658
    %v3660 = vpop.xlane.xlu0 %3659
    %v3661 = vadd.f32 %v3660, 1e-08
    %v3662 = vrsqrt.pop %v3661
    %v3663 = vmul.f32 %v3654, %v3662
    %v3664 = vld [vmem:[%s4] sm:$0x3]
    %v3665 = vld [vmem:[%s5] sm:$0xff]
    %v3666 = vld [vmem:[%s5 + $0x8] sm:$0xff]
    %v3667 = vld [vmem:[%s5 + $0x10] sm:$0xff]
    %v3668 = vld [vmem:[%s5 + $0x18] sm:$0xff]
    %v3669 = vld [vmem:[%s5 + $0x20] sm:$0xff]
    %v3670 = vld [vmem:[%s5 + $0x28] sm:$0xff]
    %v3671 = vld [vmem:[%s5 + $0x30] sm:$0xff]
    %v3672 = vld [vmem:[%s5 + $0x38] sm:$0xff]
    %vm3673 = vcmask 523264
    %v3675 = vsel %vm3673, %v3664, 0
    %3677 = vmatprep.subr.mxu0 0.0
    %3678 = vmatpush1.msra.mxu0 %v3665
    %3679 = vmatprep.subr.mxu0 0.0
    %3680 = vmatpush1.msra.mxu0 %v3666
    %3681 = vmatprep.subr.mxu0 0.0
    %3682 = vmatpush1.msra.mxu0 %v3667
    %3683 = vmatprep.subr.mxu0 0.0
    %3684 = vmatpush1.msra.mxu0 %v3668
    %3685 = vmatprep.subr.mxu0 0.0
    %3686 = vmatpush1.msra.mxu0 %v3669
    %3687 = vmatprep.subr.mxu0 0.0
    %3688 = vmatpush1.msra.mxu0 %v3670
    %3689 = vmatprep.subr.mxu0 0.0
    %3690 = vmatpush1.msra.mxu0 %v3671
    %3691 = vmatprep.subr.mxu0 0.0
    %3692 = vmatpush1.msra.mxu0 %v3672
    %3693 = vmatprep.subr.mxu0 0.0
    %3694 = vmatpush1.msra.mxu0 0.0
    %3695 = vmatprep.subr.mxu0 0.0
    %3696 = vmatpush1.msra.mxu0 0.0
    %3697 = vmatprep.subr.mxu0 0.0
    %3698 = vmatpush1.msra.mxu0 0.0
    %3699 = vmatprep.subr.mxu0 0.0
    %3700 = vmatpush1.msra.mxu0 0.0
    %3701 = vmatprep.subr.mxu0 0.0
    %3702 = vmatpush1.msra.mxu0 0.0
    %3703 = vmatprep.subr.mxu0 0.0
    %3704 = vmatpush1.msra.mxu0 0.0
    %3705 = vmatprep.subr.mxu0 0.0
    %3706 = vmatpush1.msra.mxu0 0.0
    %3707 = vmatprep.subr.mxu0 0.0
    %3708 = vmatpush1.msra.mxu0 0.0
    %3709 = vmatprep.subr.mxu0 0.0
    %3710 = vmatpush1.msra.mxu0 0.0
    %3711 = vmatprep.subr.mxu0 0.0
    %3712 = vmatpush1.msra.mxu0 0.0
    %3713 = vmatprep.subr.mxu0 0.0
    %3714 = vmatpush1.msra.mxu0 0.0
    %3715 = vmatprep.subr.mxu0 0.0
    %3716 = vmatpush1.msra.mxu0 0.0
    %3717 = vmatprep.subr.mxu0 0.0
    %3718 = vmatpush1.msra.mxu0 0.0
    %3719 = vmatprep.subr.mxu0 0.0
    %3720 = vmatpush1.msra.mxu0 0.0
    %3721 = vmatprep.subr.mxu0 0.0
    %3722 = vmatpush1.msra.mxu0 0.0
    %3723 = vmatprep.subr.mxu0 0.0
    %3724 = vmatpush1.msra.mxu0 0.0
    %3725 = vmatprep.subr.mxu0 0.0
    %3726 = vmatpush1.msra.mxu0 0.0
    %3727 = vmatprep.subr.mxu0 0.0
    %3728 = vmatpush1.msra.mxu0 0.0
    %3729 = vmatprep.subr.mxu0 0.0
    %3730 = vmatpush1.msra.mxu0 0.0
    %3731 = vmatprep.subr.mxu0 0.0
    %3732 = vmatpush1.msra.mxu0 0.0
    %3733 = vmatprep.subr.mxu0 0.0
    %3734 = vmatpush1.msra.mxu0 0.0
    %3735 = vmatprep.subr.mxu0 0.0
    %3736 = vmatpush1.msra.mxu0 0.0
    %3737 = vmatprep.subr.mxu0 0.0
    %3738 = vmatpush1.msra.mxu0 0.0
    %3739 = vmatprep.subr.mxu0 0.0
    %3740 = vmatpush1.msra.mxu0 0.0
    %3741 = vmatprep.mubr.f32.mxu0 0.0
    %3742 = vmatmul.mubr.f32.gmra.mrb[0].mxu0 %v3675
    %v3743 = vpop.f32.mrb[0].mxu0
    %v3744 = vadd.f32 0.0, %v3743
    %v3745 = vpop.f32.mrb[0].mxu0
    %3746 = vdwg.mxu0
    %v3747 = vmul.f32 %v3744, %v3744
    %v3748 = vsel %vm3583, %v3747, 0.0
    %3749 = vadd.xlane.f32.xlu0 %v3748
    %v3750 = vpop.xlane.xlu0 %3749
    %v3751 = vadd.f32 %v3750, 1e-08
    %v3752 = vrsqrt.pop %v3751
    %v3753 = vmul.f32 %v3744, %v3752
    %3754 = vmatprep.subr.mxu0 0.0
    %3755 = vmatpush1.xpose.msra.mxu0 %v3753
    %3756 = vmatprep.subr.mxu0 0.0
    %3757 = vmatpush1.xpose.msra.mxu0 0.0
    %3758 = vmatprep.subr.mxu0 0.0
    %3759 = vmatpush1.xpose.msra.mxu0 0.0
    %3760 = vmatprep.subr.mxu0 0.0
    %3761 = vmatpush1.xpose.msra.mxu0 0.0
    %3762 = vmatprep.subr.mxu0 0.0
    %3763 = vmatpush1.xpose.msra.mxu0 0.0
    %3764 = vmatprep.subr.mxu0 0.0
    %3765 = vmatpush1.xpose.msra.mxu0 0.0
    %3766 = vmatprep.subr.mxu0 0.0
    %3767 = vmatpush1.xpose.msra.mxu0 0.0
    %3768 = vmatprep.subr.mxu0 0.0
    %3769 = vmatpush1.xpose.msra.mxu0 0.0
    %3770 = vmatprep.subr.mxu0 0.0
    %3771 = vmatpush1.xpose.msra.mxu0 0.0
    %3772 = vmatprep.subr.mxu0 0.0
    %3773 = vmatpush1.xpose.msra.mxu0 0.0
    %3774 = vmatprep.subr.mxu0 0.0
    %3775 = vmatpush1.xpose.msra.mxu0 0.0
    %3776 = vmatprep.subr.mxu0 0.0
    %3777 = vmatpush1.xpose.msra.mxu0 0.0
    %3778 = vmatprep.subr.mxu0 0.0
    %3779 = vmatpush1.xpose.msra.mxu0 0.0
    %3780 = vmatprep.subr.mxu0 0.0
    %3781 = vmatpush1.xpose.msra.mxu0 0.0
    %3782 = vmatprep.subr.mxu0 0.0
    %3783 = vmatpush1.xpose.msra.mxu0 0.0
    %3784 = vmatprep.subr.mxu0 0.0
    %3785 = vmatpush1.xpose.msra.mxu0 0.0
    %3786 = vmatprep.subr.mxu0 0.0
    %3787 = vmatpush1.xpose.msra.mxu0 0.0
    %3788 = vmatprep.subr.mxu0 0.0
    %3789 = vmatpush1.xpose.msra.mxu0 0.0
    %3790 = vmatprep.subr.mxu0 0.0
    %3791 = vmatpush1.xpose.msra.mxu0 0.0
    %3792 = vmatprep.subr.mxu0 0.0
    %3793 = vmatpush1.xpose.msra.mxu0 0.0
    %3794 = vmatprep.subr.mxu0 0.0
    %3795 = vmatpush1.xpose.msra.mxu0 0.0
    %3796 = vmatprep.subr.mxu0 0.0
    %3797 = vmatpush1.xpose.msra.mxu0 0.0
    %3798 = vmatprep.subr.mxu0 0.0
    %3799 = vmatpush1.xpose.msra.mxu0 0.0
    %3800 = vmatprep.subr.mxu0 0.0
    %3801 = vmatpush1.xpose.msra.mxu0 0.0
    %3802 = vmatprep.subr.mxu0 0.0
    %3803 = vmatpush1.xpose.msra.mxu0 0.0
    %3804 = vmatprep.subr.mxu0 0.0
    %3805 = vmatpush1.xpose.msra.mxu0 0.0
    %3806 = vmatprep.subr.mxu0 0.0
    %3807 = vmatpush1.xpose.msra.mxu0 0.0
    %3808 = vmatprep.subr.mxu0 0.0
    %3809 = vmatpush1.xpose.msra.mxu0 0.0
    %3810 = vmatprep.subr.mxu0 0.0
    %3811 = vmatpush1.xpose.msra.mxu0 0.0
    %3812 = vmatprep.subr.mxu0 0.0
    %3813 = vmatpush1.xpose.msra.mxu0 0.0
    %3814 = vmatprep.subr.mxu0 0.0
    %3815 = vmatpush1.xpose.msra.mxu0 0.0
    %3816 = vmatprep.subr.mxu0 0.0
    %3817 = vmatpush1.xpose.msra.mxu0 0.0
    %3818 = vmatprep.mubr.f32.mxu0 0.0
    %3819 = vmatmul.mubr.f32.gmra.mrb[0].mxu0 %v3663
    %v3820 = vpop.f32.mrb[0].mxu0
    %v3821 = vadd.f32 0.0, %v3820
    %v3822 = vpop.f32.mrb[0].mxu0
    %3823 = vdwg.mxu0
    %s3824 = sld [smem:[#allocation2]]
    %s3825 = ssub.f32 0.0, %s3824
    %v3826 = vstv %s3825
    %v3827 = vmul.f32 %v3826, %v3821
    %vm3828 = vcmask 9216
    %3829 = vst.msk [vmem:[#allocation3] sm:$0x3] %vm3828, %v3827
    // Predicated region
    $region26: #{clip_forward.3} parent=1 // pred_check
      _
    $region27: #{clip_forward.3} parent=1 // pred_check_branch
      %3831 = sbr.rel (0) target = $region29
    $region28: #{clip_forward.3} parent=1 // pred_region
      %s3833 = ssub.s32 32, 32
      %3834 = vsyncadd [#allocation4], %s3833
      %s3836 = sshll.u32 [#allocation3], 4
      %s3837 = int_to_ptr.vmem [resolvable:$true] %s3836
      %3839 = dma.vmem_to_hbm [thread:$0]  %s3837, 32, %s6, [#allocation4]
    $region29: #{clip_forward.3} parent=1 // pred_fallthru
      _
    // Predicated region
    $region30: #{clip_forward.3} parent=1 // pred_check
      _
    $region31: #{clip_forward.3} parent=1 // pred_check_branch
      %3841 = sbr.rel (0) target = $region33
    $region32: #{clip_forward.3} parent=1 // pred_region
      %3842 = dma.done [#allocation4], 32
    $region33: #{clip_forward.3} parent=1 // pred_fallthru
      _
    %3843 = vsyncpa [#allocation4], 1

</llo_original>
